<compile_context>
chip_gen: v7x
topology: tpu7x:2x2x1
jax: 0.10.0
libtpu: 0.0.40
codegen_flags: <defaults>
</compile_context>

<pallas_src>
import functools

import jax
import jax.numpy as jnp
from jax import lax
from jax.experimental import pallas as pl
from jax.experimental.pallas import tpu as pltpu

N_STEPS = 5
N_ETYPES = 1  # fast path of DGL GatedGraphConv (single edge type)


# ----------------------------------------------------------------------------
# In-kernel building blocks
# ----------------------------------------------------------------------------
def _gru_layer(adj_ref, h, wmsg_ref, wih_ref, whh_ref,
               bmsg, b_rz, b_in, b_hn, n_steps, hidden):
    """One GatedGraphConv layer: n_steps of (msg linear -> in-edge sum -> GRUCell).

    adj_ref / weight refs are bf16 VMEM refs (read inside the step so the compiler is free
    to schedule the vector loads near the MXU pushes instead of pinning huge live ranges
    across the fully-unrolled body).  Biases are small (1, H)/(1, 2H) f32 rows.
    """
    H = hidden

    def step(_, h):
        h_b = h.astype(jnp.bfloat16)
        # per-node message after the edge-type linear (bias included; adj @ bias == deg * bias)
        m = jnp.dot(h_b, wmsg_ref[...], preferred_element_type=jnp.float32) + bmsg
        # sum aggregation over in-edges: bf16 x bf16 -> f32 accumulation (adj is exact 0/1)
        a = jnp.dot(adj_ref[...], m.astype(jnp.bfloat16),
                    preferred_element_type=jnp.float32)
        # GRUCell(a, h): single width-3H dot per operand, gates split by free lane slices
        gi = jnp.dot(a.astype(jnp.bfloat16), wih_ref[...],
                     preferred_element_type=jnp.float32)
        gh = jnp.dot(h_b, whh_ref[...], preferred_element_type=jnp.float32)
        rz = jax.nn.sigmoid(gi[:, 0:2 * H] + gh[:, 0:2 * H] + b_rz)
        r = rz[:, 0:H]
        z = rz[:, H:2 * H]
        n = jnp.tanh(gi[:, 2 * H:3 * H] + b_in + r * (gh[:, 2 * H:3 * H] + b_hn))
        # (1-z)*n + z*h  ==  n + z*(h - n)   (one fewer VALU op)
        return n + z * (h - n)

    # n_steps is a static Python int -> full unroll gives the LLO scheduler
    # cross-iteration visibility (matmul / VPU / EUP overlap).
    return lax.fori_loop(0, n_steps, step, h, unroll=True)


def ggsnn_fused_kernel(
        feat_ref, adj_ref,
        # layer 0
        wmsg0_ref, wih0_ref, whh0_ref, bmsg0_ref, brz0_ref, bin0_ref, bhn0_ref,
        # layer 1
        wmsg1_ref, wih1_ref, whh1_ref, bmsg1_ref, brz1_ref, bin1_ref, bhn1_ref,
        # classifier
        fcw_ref, fcb_ref,
        out_ref,
        *, n_steps, hidden):
    # features are already zero-padded to (N, hidden) f32 on the host
    h = feat_ref[...]

    h = _gru_layer(adj_ref, h, wmsg0_ref, wih0_ref, whh0_ref,
                   bmsg0_ref[...], brz0_ref[...], bin0_ref[...], bhn0_ref[...],
                   n_steps, hidden)
    h = _gru_layer(adj_ref, h, wmsg1_ref, wih1_ref, whh1_ref,
                   bmsg1_ref[...], brz1_ref[...], bin1_ref[...], bhn1_ref[...],
                   n_steps, hidden)

    # classifier: lane-dense (class dim zero-padded to 128); padded logits are exactly 0.
    out_ref[...] = (jnp.dot(h, fcw_ref[...], preferred_element_type=jnp.float32)
                    + fcb_ref[...])


# ----------------------------------------------------------------------------
# Wrapper (single pallas_call for the whole model)
# ----------------------------------------------------------------------------
def _full_spec(shape):
    # whole-array block (block_shape == array dims satisfies the (8,128) rule)
    nd = len(shape)
    return pl.BlockSpec(shape, lambda i, _nd=nd: (0,) * _nd)


def _vmem_limit_bytes(default=48 * 1024 * 1024):
    """~85% of the chip's physical VMEM (v6e -> ~109 MiB, v7x -> ~54 MiB)."""
    try:
        cap = pltpu.get_tpu_info().vmem_capacity_bytes
        return int(cap * 85 // 100)
    except Exception:
        return default


def ggsnn_model(adj_bf16, features, params, *, n_steps=N_STEPS):
    n, in_dim = features.shape
    hidden = params["layer0"]["wmsg"].shape[1]
    c_pad = params["fc_w"].shape[1]
    num_classes = params["num_classes"]

    # zero-pad features to the hidden width on the host (free layout plumbing)
    feat_padded = jnp.pad(features.astype(jnp.float32),
                          ((0, 0), (0, hidden - in_dim)))

    def layer_args(p):
        return (p["wmsg"], p["wih"], p["whh"],
                p["bmsg"], p["b_rz"], p["b_in"], p["b_hn"])

    args = (feat_padded, adj_bf16,
            *layer_args(params["layer0"]),
            *layer_args(params["layer1"]),
            params["fc_w"], params["fc_b"])

    kernel = functools.partial(ggsnn_fused_kernel, n_steps=n_steps, hidden=hidden)

    logits_padded = pl.pallas_call(
        kernel,
        out_shape=jax.ShapeDtypeStruct((n, c_pad), jnp.float32),
        grid=(1,),
        in_specs=[_full_spec(a.shape) for a in args],
        out_specs=_full_spec((n, c_pad)),
        compiler_params=pltpu.CompilerParams(
            dimension_semantics=("arbitrary",),
            vmem_limit_bytes=_vmem_limit_bytes()),
    )(*args)

    # strip the zero-padded classes on the host
    return logits_padded[:, :num_classes]


# ----------------------------------------------------------------------------
# Deterministic parameter init (PyTorch-style uniform(-1/sqrt(fan_in), +))
# ----------------------------------------------------------------------------
def _uniform(key, shape, fan_in):
    bound = 1.0 / jnp.sqrt(jnp.asarray(fan_in, jnp.float32))
    return jax.random.uniform(key, shape, jnp.float32, -bound, bound)


def init_ggsnn_layer_params(key, hidden):
    """GatedGraphConv(H, H) params, pre-laid-out for the kernel.

    Message linear pre-transposed to [in, out]; GRUCell gate weights concatenated
    [r|z|n] along the output dim to (H, 3H); r/z biases pre-summed (input + hidden),
    n biases kept separate (needed inside the r* term).  Matmul weights stored bf16.
    """
    H = hidden
    ks = jax.random.split(key, 6)
    wmsg = _uniform(ks[0], (H, H), H)
    bmsg = _uniform(ks[1], (1, H), H)
    wih = _uniform(ks[2], (H, 3 * H), H)      # [in, r|z|n]
    whh = _uniform(ks[3], (H, 3 * H), H)
    bih = _uniform(ks[4], (1, 3 * H), H)
    bhh = _uniform(ks[5], (1, 3 * H), H)
    return {
        "wmsg": wmsg.astype(jnp.bfloat16),
        "wih": wih.astype(jnp.bfloat16),
        "whh": whh.astype(jnp.bfloat16),
        "bmsg": bmsg,
        "b_rz": bih[:, :2 * H] + bhh[:, :2 * H],   # r and z biases only ever appear summed
        "b_in": bih[:, 2 * H:],
        "b_hn": bhh[:, 2 * H:],
    }


def init_model_params(key, in_dim, hidden, num_classes, class_pad=128):
    k0, k1, k2, k3 = jax.random.split(key, 4)
    fc_w = _uniform(k2, (hidden, num_classes), hidden)   # pre-transposed [in, out]
    fc_b = _uniform(k3, (1, num_classes), hidden)
    # lane-dense classifier output: zero-pad the class dim to `class_pad`.
    # Padded columns are exactly zero, so padded logits are zero and sliced off.
    fc_w = jnp.pad(fc_w, ((0, 0), (0, class_pad - num_classes)))
    fc_b = jnp.pad(fc_b, ((0, 0), (0, class_pad - num_classes)))
    return {
        "layer0": init_ggsnn_layer_params(k0, hidden),
        "layer1": init_ggsnn_layer_params(k1, hidden),
        "fc_w": fc_w,
        "fc_b": fc_b,
        "num_classes": num_classes,
    }


# ----------------------------------------------------------------------------
if __name__ == "__main__":
    # small shapes consistent with the module: N nodes, in_dim features,
    # hidden_dim = 128 (as in the spec), 2-way classifier, 5 propagation steps.
    N, IN_DIM, HIDDEN, NUM_CLASSES = 16, 8, 128, 2

    key = jax.random.PRNGKey(0)
    k_feat, k_adj, k_param = jax.random.split(key, 3)

    features = jax.random.normal(k_feat, (N, IN_DIM), jnp.float32)
    # dense in-adjacency A_in[v, u] = 1 if edge u -> v; exact 0/1 stored as bf16
    # (bf16 is exact for integer edge counts <= 256, so 0/1 is lossless).
    adj = (jax.random.uniform(k_adj, (N, N)) < 0.25).astype(jnp.bfloat16)

    params = init_model_params(k_param, IN_DIM, HIDDEN, NUM_CLASSES)

    logits = ggsnn_model(adj, features, params)
    jax.block_until_ready(logits)

    assert logits.shape == (N, NUM_CLASSES) and logits.dtype == jnp.float32
    print("KERNEL_OK")
</pallas_src>

<mosaic_0001>
module attributes {stable_mosaic.version = 11 : i64} {
  func.func @ggsnn_fused_kernel(%arg0: i32, %arg1: memref<16x128xf32, #tpu.memory_space<vmem>>, %arg2: memref<16x16xbf16, #tpu.memory_space<vmem>>, %arg3: memref<128x128xbf16, #tpu.memory_space<vmem>>, %arg4: memref<128x384xbf16, #tpu.memory_space<vmem>>, %arg5: memref<128x384xbf16, #tpu.memory_space<vmem>>, %arg6: memref<1x128xf32, #tpu.memory_space<vmem>>, %arg7: memref<1x256xf32, #tpu.memory_space<vmem>>, %arg8: memref<1x128xf32, #tpu.memory_space<vmem>>, %arg9: memref<1x128xf32, #tpu.memory_space<vmem>>, %arg10: memref<128x128xbf16, #tpu.memory_space<vmem>>, %arg11: memref<128x384xbf16, #tpu.memory_space<vmem>>, %arg12: memref<128x384xbf16, #tpu.memory_space<vmem>>, %arg13: memref<1x128xf32, #tpu.memory_space<vmem>>, %arg14: memref<1x256xf32, #tpu.memory_space<vmem>>, %arg15: memref<1x128xf32, #tpu.memory_space<vmem>>, %arg16: memref<1x128xf32, #tpu.memory_space<vmem>>, %arg17: memref<128x128xf32, #tpu.memory_space<vmem>>, %arg18: memref<1x128xf32, #tpu.memory_space<vmem>>, %arg19: memref<16x128xf32, #tpu.memory_space<vmem>>) attributes {dimension_semantics = [#tpu.dimension_semantics<arbitrary>], iteration_bounds = array<i64: 1>, scalar_prefetch = 0 : i64, scratch_operands = 0 : i64, tpu.core_type = #tpu.core_type<tc>, window_params = [{pipeline_mode = #tpu.pipeline_mode<synchronous>, transform_indices = @transform_0, window_bounds = array<i64: 16, 128>}, {pipeline_mode = #tpu.pipeline_mode<synchronous>, transform_indices = @transform_1, window_bounds = array<i64: 16, 16>}, {pipeline_mode = #tpu.pipeline_mode<synchronous>, transform_indices = @transform_2, window_bounds = array<i64: 128, 128>}, {pipeline_mode = #tpu.pipeline_mode<synchronous>, transform_indices = @transform_3, window_bounds = array<i64: 128, 384>}, {pipeline_mode = #tpu.pipeline_mode<synchronous>, transform_indices = @transform_4, window_bounds = array<i64: 128, 384>}, {pipeline_mode = #tpu.pipeline_mode<synchronous>, transform_indices = @transform_5, window_bounds = array<i64: 1, 128>}, {pipeline_mode = #tpu.pipeline_mode<synchronous>, transform_indices = @transform_6, window_bounds = array<i64: 1, 256>}, {pipeline_mode = #tpu.pipeline_mode<synchronous>, transform_indices = @transform_7, window_bounds = array<i64: 1, 128>}, {pipeline_mode = #tpu.pipeline_mode<synchronous>, transform_indices = @transform_8, window_bounds = array<i64: 1, 128>}, {pipeline_mode = #tpu.pipeline_mode<synchronous>, transform_indices = @transform_9, window_bounds = array<i64: 128, 128>}, {pipeline_mode = #tpu.pipeline_mode<synchronous>, transform_indices = @transform_10, window_bounds = array<i64: 128, 384>}, {pipeline_mode = #tpu.pipeline_mode<synchronous>, transform_indices = @transform_11, window_bounds = array<i64: 128, 384>}, {pipeline_mode = #tpu.pipeline_mode<synchronous>, transform_indices = @transform_12, window_bounds = array<i64: 1, 128>}, {pipeline_mode = #tpu.pipeline_mode<synchronous>, transform_indices = @transform_13, window_bounds = array<i64: 1, 256>}, {pipeline_mode = #tpu.pipeline_mode<synchronous>, transform_indices = @transform_14, window_bounds = array<i64: 1, 128>}, {pipeline_mode = #tpu.pipeline_mode<synchronous>, transform_indices = @transform_15, window_bounds = array<i64: 1, 128>}, {pipeline_mode = #tpu.pipeline_mode<synchronous>, transform_indices = @transform_16, window_bounds = array<i64: 128, 128>}, {pipeline_mode = #tpu.pipeline_mode<synchronous>, transform_indices = @transform_17, window_bounds = array<i64: 1, 128>}, {pipeline_mode = #tpu.pipeline_mode<synchronous>, transform_indices = @transform_18, window_bounds = array<i64: 16, 128>}]} {
    %c0 = arith.constant 0 : index
    %c0_0 = arith.constant 0 : index
    %0 = vector.load %arg1[%c0, %c0_0] : memref<16x128xf32, #tpu.memory_space<vmem>>, vector<16x128xf32>
    %c0_1 = arith.constant 0 : index
    %c0_2 = arith.constant 0 : index
    %1 = vector.load %arg6[%c0_1, %c0_2] : memref<1x128xf32, #tpu.memory_space<vmem>>, vector<1x128xf32>
    %c0_3 = arith.constant 0 : index
    %c0_4 = arith.constant 0 : index
    %2 = vector.load %arg7[%c0_3, %c0_4] : memref<1x256xf32, #tpu.memory_space<vmem>>, vector<1x256xf32>
    %c0_5 = arith.constant 0 : index
    %c0_6 = arith.constant 0 : index
    %3 = vector.load %arg8[%c0_5, %c0_6] : memref<1x128xf32, #tpu.memory_space<vmem>>, vector<1x128xf32>
    %c0_7 = arith.constant 0 : index
    %c0_8 = arith.constant 0 : index
    %4 = vector.load %arg9[%c0_7, %c0_8] : memref<1x128xf32, #tpu.memory_space<vmem>>, vector<1x128xf32>
    %c0_i32 = arith.constant 0 : i32
    %5 = arith.truncf %0 : vector<16x128xf32> to vector<16x128xbf16>
    %c0_9 = arith.constant 0 : index
    %c0_10 = arith.constant 0 : index
    %6 = vector.load %arg3[%c0_9, %c0_10] : memref<128x128xbf16, #tpu.memory_space<vmem>>, vector<128x128xbf16>
    %cst = arith.constant dense<0.000000e+00> : vector<16x128xf32>
    %7 = tpu.matmul %5, %6, %cst {dimension_numbers = #tpu.dot_dimension_numbers<[1], [0], [0], [1], [0, 0, 1, 1], [], []>} : vector<16x128xbf16>, vector<128x128xbf16>, vector<16x128xf32> -> vector<16x128xf32>
    %8 = vector.broadcast %1 : vector<1x128xf32> to vector<16x128xf32>
    %9 = arith.addf %7, %8 : vector<16x128xf32>
    %c0_11 = arith.constant 0 : index
    %c0_12 = arith.constant 0 : index
    %10 = vector.load %arg2[%c0_11, %c0_12] : memref<16x16xbf16, #tpu.memory_space<vmem>>, vector<16x16xbf16>
    %11 = arith.truncf %9 : vector<16x128xf32> to vector<16x128xbf16>
    %cst_13 = arith.constant dense<0.000000e+00> : vector<16x128xf32>
    %12 = tpu.matmul %10, %11, %cst_13 {dimension_numbers = #tpu.dot_dimension_numbers<[1], [0], [0], [1], [0, 0, 1, 1], [], []>} : vector<16x16xbf16>, vector<16x128xbf16>, vector<16x128xf32> -> vector<16x128xf32>
    %13 = arith.truncf %12 : vector<16x128xf32> to vector<16x128xbf16>
    %c0_14 = arith.constant 0 : index
    %c0_15 = arith.constant 0 : index
    %14 = vector.load %arg4[%c0_14, %c0_15] : memref<128x384xbf16, #tpu.memory_space<vmem>>, vector<128x384xbf16>
    %cst_16 = arith.constant dense<0.000000e+00> : vector<16x384xf32>
    %15 = tpu.matmul %13, %14, %cst_16 {dimension_numbers = #tpu.dot_dimension_numbers<[1], [0], [0], [1], [0, 0, 1, 1], [], []>} : vector<16x128xbf16>, vector<128x384xbf16>, vector<16x384xf32> -> vector<16x384xf32>
    %c0_17 = arith.constant 0 : index
    %c0_18 = arith.constant 0 : index
    %16 = vector.load %arg5[%c0_17, %c0_18] : memref<128x384xbf16, #tpu.memory_space<vmem>>, vector<128x384xbf16>
    %cst_19 = arith.constant dense<0.000000e+00> : vector<16x384xf32>
    %17 = tpu.matmul %5, %16, %cst_19 {dimension_numbers = #tpu.dot_dimension_numbers<[1], [0], [0], [1], [0, 0, 1, 1], [], []>} : vector<16x128xbf16>, vector<128x384xbf16>, vector<16x384xf32> -> vector<16x384xf32>
    %18 = vector.extract_strided_slice %15 {offsets = [0, 0], sizes = [16, 256], strides = [1, 1]} : vector<16x384xf32> to vector<16x256xf32>
    %19 = vector.extract_strided_slice %17 {offsets = [0, 0], sizes = [16, 256], strides = [1, 1]} : vector<16x384xf32> to vector<16x256xf32>
    %20 = arith.addf %18, %19 : vector<16x256xf32>
    %21 = vector.broadcast %2 : vector<1x256xf32> to vector<16x256xf32>
    %22 = arith.addf %20, %21 : vector<16x256xf32>
    %23 = arith.negf %22 : vector<16x256xf32>
    %24 = math.exp %23 : vector<16x256xf32>
    %cst_20 = arith.constant 1.000000e+00 : f32
    %25 = vector.broadcast %cst_20 : f32 to vector<16x256xf32>
    %26 = arith.addf %25, %24 : vector<16x256xf32>
    %27 = arith.divf %25, %26 : vector<16x256xf32>
    %28 = vector.extract_strided_slice %27 {offsets = [0, 0], sizes = [16, 128], strides = [1, 1]} : vector<16x256xf32> to vector<16x128xf32>
    %29 = vector.extract_strided_slice %27 {offsets = [0, 128], sizes = [16, 128], strides = [1, 1]} : vector<16x256xf32> to vector<16x128xf32>
    %30 = vector.extract_strided_slice %15 {offsets = [0, 256], sizes = [16, 128], strides = [1, 1]} : vector<16x384xf32> to vector<16x128xf32>
    %31 = vector.broadcast %3 : vector<1x128xf32> to vector<16x128xf32>
    %32 = arith.addf %30, %31 : vector<16x128xf32>
    %33 = vector.extract_strided_slice %17 {offsets = [0, 256], sizes = [16, 128], strides = [1, 1]} : vector<16x384xf32> to vector<16x128xf32>
    %34 = vector.broadcast %4 : vector<1x128xf32> to vector<16x128xf32>
    %35 = arith.addf %33, %34 : vector<16x128xf32>
    %36 = arith.mulf %28, %35 : vector<16x128xf32>
    %37 = arith.addf %32, %36 : vector<16x128xf32>
    %38 = math.tanh %37 : vector<16x128xf32>
    %39 = arith.subf %0, %38 : vector<16x128xf32>
    %40 = arith.mulf %29, %39 : vector<16x128xf32>
    %41 = arith.addf %38, %40 : vector<16x128xf32>
    %c1_i32 = arith.constant 1 : i32
    %42 = arith.truncf %41 : vector<16x128xf32> to vector<16x128xbf16>
    %c0_21 = arith.constant 0 : index
    %c0_22 = arith.constant 0 : index
    %43 = vector.load %arg3[%c0_21, %c0_22] : memref<128x128xbf16, #tpu.memory_space<vmem>>, vector<128x128xbf16>
    %cst_23 = arith.constant dense<0.000000e+00> : vector<16x128xf32>
    %44 = tpu.matmul %42, %43, %cst_23 {dimension_numbers = #tpu.dot_dimension_numbers<[1], [0], [0], [1], [0, 0, 1, 1], [], []>} : vector<16x128xbf16>, vector<128x128xbf16>, vector<16x128xf32> -> vector<16x128xf32>
    %45 = vector.broadcast %1 : vector<1x128xf32> to vector<16x128xf32>
    %46 = arith.addf %44, %45 : vector<16x128xf32>
    %c0_24 = arith.constant 0 : index
    %c0_25 = arith.constant 0 : index
    %47 = vector.load %arg2[%c0_24, %c0_25] : memref<16x16xbf16, #tpu.memory_space<vmem>>, vector<16x16xbf16>
    %48 = arith.truncf %46 : vector<16x128xf32> to vector<16x128xbf16>
    %cst_26 = arith.constant dense<0.000000e+00> : vector<16x128xf32>
    %49 = tpu.matmul %47, %48, %cst_26 {dimension_numbers = #tpu.dot_dimension_numbers<[1], [0], [0], [1], [0, 0, 1, 1], [], []>} : vector<16x16xbf16>, vector<16x128xbf16>, vector<16x128xf32> -> vector<16x128xf32>
    %50 = arith.truncf %49 : vector<16x128xf32> to vector<16x128xbf16>
    %c0_27 = arith.constant 0 : index
    %c0_28 = arith.constant 0 : index
    %51 = vector.load %arg4[%c0_27, %c0_28] : memref<128x384xbf16, #tpu.memory_space<vmem>>, vector<128x384xbf16>
    %cst_29 = arith.constant dense<0.000000e+00> : vector<16x384xf32>
    %52 = tpu.matmul %50, %51, %cst_29 {dimension_numbers = #tpu.dot_dimension_numbers<[1], [0], [0], [1], [0, 0, 1, 1], [], []>} : vector<16x128xbf16>, vector<128x384xbf16>, vector<16x384xf32> -> vector<16x384xf32>
    %c0_30 = arith.constant 0 : index
    %c0_31 = arith.constant 0 : index
    %53 = vector.load %arg5[%c0_30, %c0_31] : memref<128x384xbf16, #tpu.memory_space<vmem>>, vector<128x384xbf16>
    %cst_32 = arith.constant dense<0.000000e+00> : vector<16x384xf32>
    %54 = tpu.matmul %42, %53, %cst_32 {dimension_numbers = #tpu.dot_dimension_numbers<[1], [0], [0], [1], [0, 0, 1, 1], [], []>} : vector<16x128xbf16>, vector<128x384xbf16>, vector<16x384xf32> -> vector<16x384xf32>
    %55 = vector.extract_strided_slice %52 {offsets = [0, 0], sizes = [16, 256], strides = [1, 1]} : vector<16x384xf32> to vector<16x256xf32>
    %56 = vector.extract_strided_slice %54 {offsets = [0, 0], sizes = [16, 256], strides = [1, 1]} : vector<16x384xf32> to vector<16x256xf32>
    %57 = arith.addf %55, %56 : vector<16x256xf32>
    %58 = vector.broadcast %2 : vector<1x256xf32> to vector<16x256xf32>
    %59 = arith.addf %57, %58 : vector<16x256xf32>
    %60 = arith.negf %59 : vector<16x256xf32>
    %61 = math.exp %60 : vector<16x256xf32>
    %cst_33 = arith.constant 1.000000e+00 : f32
    %62 = vector.broadcast %cst_33 : f32 to vector<16x256xf32>
    %63 = arith.addf %62, %61 : vector<16x256xf32>
    %64 = arith.divf %62, %63 : vector<16x256xf32>
    %65 = vector.extract_strided_slice %64 {offsets = [0, 0], sizes = [16, 128], strides = [1, 1]} : vector<16x256xf32> to vector<16x128xf32>
    %66 = vector.extract_strided_slice %64 {offsets = [0, 128], sizes = [16, 128], strides = [1, 1]} : vector<16x256xf32> to vector<16x128xf32>
    %67 = vector.extract_strided_slice %52 {offsets = [0, 256], sizes = [16, 128], strides = [1, 1]} : vector<16x384xf32> to vector<16x128xf32>
    %68 = vector.broadcast %3 : vector<1x128xf32> to vector<16x128xf32>
    %69 = arith.addf %67, %68 : vector<16x128xf32>
    %70 = vector.extract_strided_slice %54 {offsets = [0, 256], sizes = [16, 128], strides = [1, 1]} : vector<16x384xf32> to vector<16x128xf32>
    %71 = vector.broadcast %4 : vector<1x128xf32> to vector<16x128xf32>
    %72 = arith.addf %70, %71 : vector<16x128xf32>
    %73 = arith.mulf %65, %72 : vector<16x128xf32>
    %74 = arith.addf %69, %73 : vector<16x128xf32>
    %75 = math.tanh %74 : vector<16x128xf32>
    %76 = arith.subf %41, %75 : vector<16x128xf32>
    %77 = arith.mulf %66, %76 : vector<16x128xf32>
    %78 = arith.addf %75, %77 : vector<16x128xf32>
    %c2_i32 = arith.constant 2 : i32
    %79 = arith.truncf %78 : vector<16x128xf32> to vector<16x128xbf16>
    %c0_34 = arith.constant 0 : index
    %c0_35 = arith.constant 0 : index
    %80 = vector.load %arg3[%c0_34, %c0_35] : memref<128x128xbf16, #tpu.memory_space<vmem>>, vector<128x128xbf16>
    %cst_36 = arith.constant dense<0.000000e+00> : vector<16x128xf32>
    %81 = tpu.matmul %79, %80, %cst_36 {dimension_numbers = #tpu.dot_dimension_numbers<[1], [0], [0], [1], [0, 0, 1, 1], [], []>} : vector<16x128xbf16>, vector<128x128xbf16>, vector<16x128xf32> -> vector<16x128xf32>
    %82 = vector.broadcast %1 : vector<1x128xf32> to vector<16x128xf32>
    %83 = arith.addf %81, %82 : vector<16x128xf32>
    %c0_37 = arith.constant 0 : index
    %c0_38 = arith.constant 0 : index
    %84 = vector.load %arg2[%c0_37, %c0_38] : memref<16x16xbf16, #tpu.memory_space<vmem>>, vector<16x16xbf16>
    %85 = arith.truncf %83 : vector<16x128xf32> to vector<16x128xbf16>
    %cst_39 = arith.constant dense<0.000000e+00> : vector<16x128xf32>
    %86 = tpu.matmul %84, %85, %cst_39 {dimension_numbers = #tpu.dot_dimension_numbers<[1], [0], [0], [1], [0, 0, 1, 1], [], []>} : vector<16x16xbf16>, vector<16x128xbf16>, vector<16x128xf32> -> vector<16x128xf32>
    %87 = arith.truncf %86 : vector<16x128xf32> to vector<16x128xbf16>
    %c0_40 = arith.constant 0 : index
    %c0_41 = arith.constant 0 : index
    %88 = vector.load %arg4[%c0_40, %c0_41] : memref<128x384xbf16, #tpu.memory_space<vmem>>, vector<128x384xbf16>
    %cst_42 = arith.constant dense<0.000000e+00> : vector<16x384xf32>
    %89 = tpu.matmul %87, %88, %cst_42 {dimension_numbers = #tpu.dot_dimension_numbers<[1], [0], [0], [1], [0, 0, 1, 1], [], []>} : vector<16x128xbf16>, vector<128x384xbf16>, vector<16x384xf32> -> vector<16x384xf32>
    %c0_43 = arith.constant 0 : index
    %c0_44 = arith.constant 0 : index
    %90 = vector.load %arg5[%c0_43, %c0_44] : memref<128x384xbf16, #tpu.memory_space<vmem>>, vector<128x384xbf16>
    %cst_45 = arith.constant dense<0.000000e+00> : vector<16x384xf32>
    %91 = tpu.matmul %79, %90, %cst_45 {dimension_numbers = #tpu.dot_dimension_numbers<[1], [0], [0], [1], [0, 0, 1, 1], [], []>} : vector<16x128xbf16>, vector<128x384xbf16>, vector<16x384xf32> -> vector<16x384xf32>
    %92 = vector.extract_strided_slice %89 {offsets = [0, 0], sizes = [16, 256], strides = [1, 1]} : vector<16x384xf32> to vector<16x256xf32>
    %93 = vector.extract_strided_slice %91 {offsets = [0, 0], sizes = [16, 256], strides = [1, 1]} : vector<16x384xf32> to vector<16x256xf32>
    %94 = arith.addf %92, %93 : vector<16x256xf32>
    %95 = vector.broadcast %2 : vector<1x256xf32> to vector<16x256xf32>
    %96 = arith.addf %94, %95 : vector<16x256xf32>
    %97 = arith.negf %96 : vector<16x256xf32>
    %98 = math.exp %97 : vector<16x256xf32>
    %cst_46 = arith.constant 1.000000e+00 : f32
    %99 = vector.broadcast %cst_46 : f32 to vector<16x256xf32>
    %100 = arith.addf %99, %98 : vector<16x256xf32>
    %101 = arith.divf %99, %100 : vector<16x256xf32>
    %102 = vector.extract_strided_slice %101 {offsets = [0, 0], sizes = [16, 128], strides = [1, 1]} : vector<16x256xf32> to vector<16x128xf32>
    %103 = vector.extract_strided_slice %101 {offsets = [0, 128], sizes = [16, 128], strides = [1, 1]} : vector<16x256xf32> to vector<16x128xf32>
    %104 = vector.extract_strided_slice %89 {offsets = [0, 256], sizes = [16, 128], strides = [1, 1]} : vector<16x384xf32> to vector<16x128xf32>
    %105 = vector.broadcast %3 : vector<1x128xf32> to vector<16x128xf32>
    %106 = arith.addf %104, %105 : vector<16x128xf32>
    %107 = vector.extract_strided_slice %91 {offsets = [0, 256], sizes = [16, 128], strides = [1, 1]} : vector<16x384xf32> to vector<16x128xf32>
    %108 = vector.broadcast %4 : vector<1x128xf32> to vector<16x128xf32>
    %109 = arith.addf %107, %108 : vector<16x128xf32>
    %110 = arith.mulf %102, %109 : vector<16x128xf32>
    %111 = arith.addf %106, %110 : vector<16x128xf32>
    %112 = math.tanh %111 : vector<16x128xf32>
    %113 = arith.subf %78, %112 : vector<16x128xf32>
    %114 = arith.mulf %103, %113 : vector<16x128xf32>
    %115 = arith.addf %112, %114 : vector<16x128xf32>
    %c3_i32 = arith.constant 3 : i32
    %116 = arith.truncf %115 : vector<16x128xf32> to vector<16x128xbf16>
    %c0_47 = arith.constant 0 : index
    %c0_48 = arith.constant 0 : index
    %117 = vector.load %arg3[%c0_47, %c0_48] : memref<128x128xbf16, #tpu.memory_space<vmem>>, vector<128x128xbf16>
    %cst_49 = arith.constant dense<0.000000e+00> : vector<16x128xf32>
    %118 = tpu.matmul %116, %117, %cst_49 {dimension_numbers = #tpu.dot_dimension_numbers<[1], [0], [0], [1], [0, 0, 1, 1], [], []>} : vector<16x128xbf16>, vector<128x128xbf16>, vector<16x128xf32> -> vector<16x128xf32>
    %119 = vector.broadcast %1 : vector<1x128xf32> to vector<16x128xf32>
    %120 = arith.addf %118, %119 : vector<16x128xf32>
    %c0_50 = arith.constant 0 : index
    %c0_51 = arith.constant 0 : index
    %121 = vector.load %arg2[%c0_50, %c0_51] : memref<16x16xbf16, #tpu.memory_space<vmem>>, vector<16x16xbf16>
    %122 = arith.truncf %120 : vector<16x128xf32> to vector<16x128xbf16>
    %cst_52 = arith.constant dense<0.000000e+00> : vector<16x128xf32>
    %123 = tpu.matmul %121, %122, %cst_52 {dimension_numbers = #tpu.dot_dimension_numbers<[1], [0], [0], [1], [0, 0, 1, 1], [], []>} : vector<16x16xbf16>, vector<16x128xbf16>, vector<16x128xf32> -> vector<16x128xf32>
    %124 = arith.truncf %123 : vector<16x128xf32> to vector<16x128xbf16>
    %c0_53 = arith.constant 0 : index
    %c0_54 = arith.constant 0 : index
    %125 = vector.load %arg4[%c0_53, %c0_54] : memref<128x384xbf16, #tpu.memory_space<vmem>>, vector<128x384xbf16>
    %cst_55 = arith.constant dense<0.000000e+00> : vector<16x384xf32>
    %126 = tpu.matmul %124, %125, %cst_55 {dimension_numbers = #tpu.dot_dimension_numbers<[1], [0], [0], [1], [0, 0, 1, 1], [], []>} : vector<16x128xbf16>, vector<128x384xbf16>, vector<16x384xf32> -> vector<16x384xf32>
    %c0_56 = arith.constant 0 : index
    %c0_57 = arith.constant 0 : index
    %127 = vector.load %arg5[%c0_56, %c0_57] : memref<128x384xbf16, #tpu.memory_space<vmem>>, vector<128x384xbf16>
    %cst_58 = arith.constant dense<0.000000e+00> : vector<16x384xf32>
    %128 = tpu.matmul %116, %127, %cst_58 {dimension_numbers = #tpu.dot_dimension_numbers<[1], [0], [0], [1], [0, 0, 1, 1], [], []>} : vector<16x128xbf16>, vector<128x384xbf16>, vector<16x384xf32> -> vector<16x384xf32>
    %129 = vector.extract_strided_slice %126 {offsets = [0, 0], sizes = [16, 256], strides = [1, 1]} : vector<16x384xf32> to vector<16x256xf32>
    %130 = vector.extract_strided_slice %128 {offsets = [0, 0], sizes = [16, 256], strides = [1, 1]} : vector<16x384xf32> to vector<16x256xf32>
    %131 = arith.addf %129, %130 : vector<16x256xf32>
    %132 = vector.broadcast %2 : vector<1x256xf32> to vector<16x256xf32>
    %133 = arith.addf %131, %132 : vector<16x256xf32>
    %134 = arith.negf %133 : vector<16x256xf32>
    %135 = math.exp %134 : vector<16x256xf32>
    %cst_59 = arith.constant 1.000000e+00 : f32
    %136 = vector.broadcast %cst_59 : f32 to vector<16x256xf32>
    %137 = arith.addf %136, %135 : vector<16x256xf32>
    %138 = arith.divf %136, %137 : vector<16x256xf32>
    %139 = vector.extract_strided_slice %138 {offsets = [0, 0], sizes = [16, 128], strides = [1, 1]} : vector<16x256xf32> to vector<16x128xf32>
    %140 = vector.extract_strided_slice %138 {offsets = [0, 128], sizes = [16, 128], strides = [1, 1]} : vector<16x256xf32> to vector<16x128xf32>
    %141 = vector.extract_strided_slice %126 {offsets = [0, 256], sizes = [16, 128], strides = [1, 1]} : vector<16x384xf32> to vector<16x128xf32>
    %142 = vector.broadcast %3 : vector<1x128xf32> to vector<16x128xf32>
    %143 = arith.addf %141, %142 : vector<16x128xf32>
    %144 = vector.extract_strided_slice %128 {offsets = [0, 256], sizes = [16, 128], strides = [1, 1]} : vector<16x384xf32> to vector<16x128xf32>
    %145 = vector.broadcast %4 : vector<1x128xf32> to vector<16x128xf32>
    %146 = arith.addf %144, %145 : vector<16x128xf32>
    %147 = arith.mulf %139, %146 : vector<16x128xf32>
    %148 = arith.addf %143, %147 : vector<16x128xf32>
    %149 = math.tanh %148 : vector<16x128xf32>
    %150 = arith.subf %115, %149 : vector<16x128xf32>
    %151 = arith.mulf %140, %150 : vector<16x128xf32>
    %152 = arith.addf %149, %151 : vector<16x128xf32>
    %c4_i32 = arith.constant 4 : i32
    %153 = arith.truncf %152 : vector<16x128xf32> to vector<16x128xbf16>
    %c0_60 = arith.constant 0 : index
    %c0_61 = arith.constant 0 : index
    %154 = vector.load %arg3[%c0_60, %c0_61] : memref<128x128xbf16, #tpu.memory_space<vmem>>, vector<128x128xbf16>
    %cst_62 = arith.constant dense<0.000000e+00> : vector<16x128xf32>
    %155 = tpu.matmul %153, %154, %cst_62 {dimension_numbers = #tpu.dot_dimension_numbers<[1], [0], [0], [1], [0, 0, 1, 1], [], []>} : vector<16x128xbf16>, vector<128x128xbf16>, vector<16x128xf32> -> vector<16x128xf32>
    %156 = vector.broadcast %1 : vector<1x128xf32> to vector<16x128xf32>
    %157 = arith.addf %155, %156 : vector<16x128xf32>
    %c0_63 = arith.constant 0 : index
    %c0_64 = arith.constant 0 : index
    %158 = vector.load %arg2[%c0_63, %c0_64] : memref<16x16xbf16, #tpu.memory_space<vmem>>, vector<16x16xbf16>
    %159 = arith.truncf %157 : vector<16x128xf32> to vector<16x128xbf16>
    %cst_65 = arith.constant dense<0.000000e+00> : vector<16x128xf32>
    %160 = tpu.matmul %158, %159, %cst_65 {dimension_numbers = #tpu.dot_dimension_numbers<[1], [0], [0], [1], [0, 0, 1, 1], [], []>} : vector<16x16xbf16>, vector<16x128xbf16>, vector<16x128xf32> -> vector<16x128xf32>
    %161 = arith.truncf %160 : vector<16x128xf32> to vector<16x128xbf16>
    %c0_66 = arith.constant 0 : index
    %c0_67 = arith.constant 0 : index
    %162 = vector.load %arg4[%c0_66, %c0_67] : memref<128x384xbf16, #tpu.memory_space<vmem>>, vector<128x384xbf16>
    %cst_68 = arith.constant dense<0.000000e+00> : vector<16x384xf32>
    %163 = tpu.matmul %161, %162, %cst_68 {dimension_numbers = #tpu.dot_dimension_numbers<[1], [0], [0], [1], [0, 0, 1, 1], [], []>} : vector<16x128xbf16>, vector<128x384xbf16>, vector<16x384xf32> -> vector<16x384xf32>
    %c0_69 = arith.constant 0 : index
    %c0_70 = arith.constant 0 : index
    %164 = vector.load %arg5[%c0_69, %c0_70] : memref<128x384xbf16, #tpu.memory_space<vmem>>, vector<128x384xbf16>
    %cst_71 = arith.constant dense<0.000000e+00> : vector<16x384xf32>
    %165 = tpu.matmul %153, %164, %cst_71 {dimension_numbers = #tpu.dot_dimension_numbers<[1], [0], [0], [1], [0, 0, 1, 1], [], []>} : vector<16x128xbf16>, vector<128x384xbf16>, vector<16x384xf32> -> vector<16x384xf32>
    %166 = vector.extract_strided_slice %163 {offsets = [0, 0], sizes = [16, 256], strides = [1, 1]} : vector<16x384xf32> to vector<16x256xf32>
    %167 = vector.extract_strided_slice %165 {offsets = [0, 0], sizes = [16, 256], strides = [1, 1]} : vector<16x384xf32> to vector<16x256xf32>
    %168 = arith.addf %166, %167 : vector<16x256xf32>
    %169 = vector.broadcast %2 : vector<1x256xf32> to vector<16x256xf32>
    %170 = arith.addf %168, %169 : vector<16x256xf32>
    %171 = arith.negf %170 : vector<16x256xf32>
    %172 = math.exp %171 : vector<16x256xf32>
    %cst_72 = arith.constant 1.000000e+00 : f32
    %173 = vector.broadcast %cst_72 : f32 to vector<16x256xf32>
    %174 = arith.addf %173, %172 : vector<16x256xf32>
    %175 = arith.divf %173, %174 : vector<16x256xf32>
    %176 = vector.extract_strided_slice %175 {offsets = [0, 0], sizes = [16, 128], strides = [1, 1]} : vector<16x256xf32> to vector<16x128xf32>
    %177 = vector.extract_strided_slice %175 {offsets = [0, 128], sizes = [16, 128], strides = [1, 1]} : vector<16x256xf32> to vector<16x128xf32>
    %178 = vector.extract_strided_slice %163 {offsets = [0, 256], sizes = [16, 128], strides = [1, 1]} : vector<16x384xf32> to vector<16x128xf32>
    %179 = vector.broadcast %3 : vector<1x128xf32> to vector<16x128xf32>
    %180 = arith.addf %178, %179 : vector<16x128xf32>
    %181 = vector.extract_strided_slice %165 {offsets = [0, 256], sizes = [16, 128], strides = [1, 1]} : vector<16x384xf32> to vector<16x128xf32>
    %182 = vector.broadcast %4 : vector<1x128xf32> to vector<16x128xf32>
    %183 = arith.addf %181, %182 : vector<16x128xf32>
    %184 = arith.mulf %176, %183 : vector<16x128xf32>
    %185 = arith.addf %180, %184 : vector<16x128xf32>
    %186 = math.tanh %185 : vector<16x128xf32>
    %187 = arith.subf %152, %186 : vector<16x128xf32>
    %188 = arith.mulf %177, %187 : vector<16x128xf32>
    %189 = arith.addf %186, %188 : vector<16x128xf32>
    %c0_73 = arith.constant 0 : index
    %c0_74 = arith.constant 0 : index
    %190 = vector.load %arg13[%c0_73, %c0_74] : memref<1x128xf32, #tpu.memory_space<vmem>>, vector<1x128xf32>
    %c0_75 = arith.constant 0 : index
    %c0_76 = arith.constant 0 : index
    %191 = vector.load %arg14[%c0_75, %c0_76] : memref<1x256xf32, #tpu.memory_space<vmem>>, vector<1x256xf32>
    %c0_77 = arith.constant 0 : index
    %c0_78 = arith.constant 0 : index
    %192 = vector.load %arg15[%c0_77, %c0_78] : memref<1x128xf32, #tpu.memory_space<vmem>>, vector<1x128xf32>
    %c0_79 = arith.constant 0 : index
    %c0_80 = arith.constant 0 : index
    %193 = vector.load %arg16[%c0_79, %c0_80] : memref<1x128xf32, #tpu.memory_space<vmem>>, vector<1x128xf32>
    %c0_i32_81 = arith.constant 0 : i32
    %194 = arith.truncf %189 : vector<16x128xf32> to vector<16x128xbf16>
    %c0_82 = arith.constant 0 : index
    %c0_83 = arith.constant 0 : index
    %195 = vector.load %arg10[%c0_82, %c0_83] : memref<128x128xbf16, #tpu.memory_space<vmem>>, vector<128x128xbf16>
    %cst_84 = arith.constant dense<0.000000e+00> : vector<16x128xf32>
    %196 = tpu.matmul %194, %195, %cst_84 {dimension_numbers = #tpu.dot_dimension_numbers<[1], [0], [0], [1], [0, 0, 1, 1], [], []>} : vector<16x128xbf16>, vector<128x128xbf16>, vector<16x128xf32> -> vector<16x128xf32>
    %197 = vector.broadcast %190 : vector<1x128xf32> to vector<16x128xf32>
    %198 = arith.addf %196, %197 : vector<16x128xf32>
    %c0_85 = arith.constant 0 : index
    %c0_86 = arith.constant 0 : index
    %199 = vector.load %arg2[%c0_85, %c0_86] : memref<16x16xbf16, #tpu.memory_space<vmem>>, vector<16x16xbf16>
    %200 = arith.truncf %198 : vector<16x128xf32> to vector<16x128xbf16>
    %cst_87 = arith.constant dense<0.000000e+00> : vector<16x128xf32>
    %201 = tpu.matmul %199, %200, %cst_87 {dimension_numbers = #tpu.dot_dimension_numbers<[1], [0], [0], [1], [0, 0, 1, 1], [], []>} : vector<16x16xbf16>, vector<16x128xbf16>, vector<16x128xf32> -> vector<16x128xf32>
    %202 = arith.truncf %201 : vector<16x128xf32> to vector<16x128xbf16>
    %c0_88 = arith.constant 0 : index
    %c0_89 = arith.constant 0 : index
    %203 = vector.load %arg11[%c0_88, %c0_89] : memref<128x384xbf16, #tpu.memory_space<vmem>>, vector<128x384xbf16>
    %cst_90 = arith.constant dense<0.000000e+00> : vector<16x384xf32>
    %204 = tpu.matmul %202, %203, %cst_90 {dimension_numbers = #tpu.dot_dimension_numbers<[1], [0], [0], [1], [0, 0, 1, 1], [], []>} : vector<16x128xbf16>, vector<128x384xbf16>, vector<16x384xf32> -> vector<16x384xf32>
    %c0_91 = arith.constant 0 : index
    %c0_92 = arith.constant 0 : index
    %205 = vector.load %arg12[%c0_91, %c0_92] : memref<128x384xbf16, #tpu.memory_space<vmem>>, vector<128x384xbf16>
    %cst_93 = arith.constant dense<0.000000e+00> : vector<16x384xf32>
    %206 = tpu.matmul %194, %205, %cst_93 {dimension_numbers = #tpu.dot_dimension_numbers<[1], [0], [0], [1], [0, 0, 1, 1], [], []>} : vector<16x128xbf16>, vector<128x384xbf16>, vector<16x384xf32> -> vector<16x384xf32>
    %207 = vector.extract_strided_slice %204 {offsets = [0, 0], sizes = [16, 256], strides = [1, 1]} : vector<16x384xf32> to vector<16x256xf32>
    %208 = vector.extract_strided_slice %206 {offsets = [0, 0], sizes = [16, 256], strides = [1, 1]} : vector<16x384xf32> to vector<16x256xf32>
    %209 = arith.addf %207, %208 : vector<16x256xf32>
    %210 = vector.broadcast %191 : vector<1x256xf32> to vector<16x256xf32>
    %211 = arith.addf %209, %210 : vector<16x256xf32>
    %212 = arith.negf %211 : vector<16x256xf32>
    %213 = math.exp %212 : vector<16x256xf32>
    %cst_94 = arith.constant 1.000000e+00 : f32
    %214 = vector.broadcast %cst_94 : f32 to vector<16x256xf32>
    %215 = arith.addf %214, %213 : vector<16x256xf32>
    %216 = arith.divf %214, %215 : vector<16x256xf32>
    %217 = vector.extract_strided_slice %216 {offsets = [0, 0], sizes = [16, 128], strides = [1, 1]} : vector<16x256xf32> to vector<16x128xf32>
    %218 = vector.extract_strided_slice %216 {offsets = [0, 128], sizes = [16, 128], strides = [1, 1]} : vector<16x256xf32> to vector<16x128xf32>
    %219 = vector.extract_strided_slice %204 {offsets = [0, 256], sizes = [16, 128], strides = [1, 1]} : vector<16x384xf32> to vector<16x128xf32>
    %220 = vector.broadcast %192 : vector<1x128xf32> to vector<16x128xf32>
    %221 = arith.addf %219, %220 : vector<16x128xf32>
    %222 = vector.extract_strided_slice %206 {offsets = [0, 256], sizes = [16, 128], strides = [1, 1]} : vector<16x384xf32> to vector<16x128xf32>
    %223 = vector.broadcast %193 : vector<1x128xf32> to vector<16x128xf32>
    %224 = arith.addf %222, %223 : vector<16x128xf32>
    %225 = arith.mulf %217, %224 : vector<16x128xf32>
    %226 = arith.addf %221, %225 : vector<16x128xf32>
    %227 = math.tanh %226 : vector<16x128xf32>
    %228 = arith.subf %189, %227 : vector<16x128xf32>
    %229 = arith.mulf %218, %228 : vector<16x128xf32>
    %230 = arith.addf %227, %229 : vector<16x128xf32>
    %c1_i32_95 = arith.constant 1 : i32
    %231 = arith.truncf %230 : vector<16x128xf32> to vector<16x128xbf16>
    %c0_96 = arith.constant 0 : index
    %c0_97 = arith.constant 0 : index
    %232 = vector.load %arg10[%c0_96, %c0_97] : memref<128x128xbf16, #tpu.memory_space<vmem>>, vector<128x128xbf16>
    %cst_98 = arith.constant dense<0.000000e+00> : vector<16x128xf32>
    %233 = tpu.matmul %231, %232, %cst_98 {dimension_numbers = #tpu.dot_dimension_numbers<[1], [0], [0], [1], [0, 0, 1, 1], [], []>} : vector<16x128xbf16>, vector<128x128xbf16>, vector<16x128xf32> -> vector<16x128xf32>
    %234 = vector.broadcast %190 : vector<1x128xf32> to vector<16x128xf32>
    %235 = arith.addf %233, %234 : vector<16x128xf32>
    %c0_99 = arith.constant 0 : index
    %c0_100 = arith.constant 0 : index
    %236 = vector.load %arg2[%c0_99, %c0_100] : memref<16x16xbf16, #tpu.memory_space<vmem>>, vector<16x16xbf16>
    %237 = arith.truncf %235 : vector<16x128xf32> to vector<16x128xbf16>
    %cst_101 = arith.constant dense<0.000000e+00> : vector<16x128xf32>
    %238 = tpu.matmul %236, %237, %cst_101 {dimension_numbers = #tpu.dot_dimension_numbers<[1], [0], [0], [1], [0, 0, 1, 1], [], []>} : vector<16x16xbf16>, vector<16x128xbf16>, vector<16x128xf32> -> vector<16x128xf32>
    %239 = arith.truncf %238 : vector<16x128xf32> to vector<16x128xbf16>
    %c0_102 = arith.constant 0 : index
    %c0_103 = arith.constant 0 : index
    %240 = vector.load %arg11[%c0_102, %c0_103] : memref<128x384xbf16, #tpu.memory_space<vmem>>, vector<128x384xbf16>
    %cst_104 = arith.constant dense<0.000000e+00> : vector<16x384xf32>
    %241 = tpu.matmul %239, %240, %cst_104 {dimension_numbers = #tpu.dot_dimension_numbers<[1], [0], [0], [1], [0, 0, 1, 1], [], []>} : vector<16x128xbf16>, vector<128x384xbf16>, vector<16x384xf32> -> vector<16x384xf32>
    %c0_105 = arith.constant 0 : index
    %c0_106 = arith.constant 0 : index
    %242 = vector.load %arg12[%c0_105, %c0_106] : memref<128x384xbf16, #tpu.memory_space<vmem>>, vector<128x384xbf16>
    %cst_107 = arith.constant dense<0.000000e+00> : vector<16x384xf32>
    %243 = tpu.matmul %231, %242, %cst_107 {dimension_numbers = #tpu.dot_dimension_numbers<[1], [0], [0], [1], [0, 0, 1, 1], [], []>} : vector<16x128xbf16>, vector<128x384xbf16>, vector<16x384xf32> -> vector<16x384xf32>
    %244 = vector.extract_strided_slice %241 {offsets = [0, 0], sizes = [16, 256], strides = [1, 1]} : vector<16x384xf32> to vector<16x256xf32>
    %245 = vector.extract_strided_slice %243 {offsets = [0, 0], sizes = [16, 256], strides = [1, 1]} : vector<16x384xf32> to vector<16x256xf32>
    %246 = arith.addf %244, %245 : vector<16x256xf32>
    %247 = vector.broadcast %191 : vector<1x256xf32> to vector<16x256xf32>
    %248 = arith.addf %246, %247 : vector<16x256xf32>
    %249 = arith.negf %248 : vector<16x256xf32>
    %250 = math.exp %249 : vector<16x256xf32>
    %cst_108 = arith.constant 1.000000e+00 : f32
    %251 = vector.broadcast %cst_108 : f32 to vector<16x256xf32>
    %252 = arith.addf %251, %250 : vector<16x256xf32>
    %253 = arith.divf %251, %252 : vector<16x256xf32>
    %254 = vector.extract_strided_slice %253 {offsets = [0, 0], sizes = [16, 128], strides = [1, 1]} : vector<16x256xf32> to vector<16x128xf32>
    %255 = vector.extract_strided_slice %253 {offsets = [0, 128], sizes = [16, 128], strides = [1, 1]} : vector<16x256xf32> to vector<16x128xf32>
    %256 = vector.extract_strided_slice %241 {offsets = [0, 256], sizes = [16, 128], strides = [1, 1]} : vector<16x384xf32> to vector<16x128xf32>
    %257 = vector.broadcast %192 : vector<1x128xf32> to vector<16x128xf32>
    %258 = arith.addf %256, %257 : vector<16x128xf32>
    %259 = vector.extract_strided_slice %243 {offsets = [0, 256], sizes = [16, 128], strides = [1, 1]} : vector<16x384xf32> to vector<16x128xf32>
    %260 = vector.broadcast %193 : vector<1x128xf32> to vector<16x128xf32>
    %261 = arith.addf %259, %260 : vector<16x128xf32>
    %262 = arith.mulf %254, %261 : vector<16x128xf32>
    %263 = arith.addf %258, %262 : vector<16x128xf32>
    %264 = math.tanh %263 : vector<16x128xf32>
    %265 = arith.subf %230, %264 : vector<16x128xf32>
    %266 = arith.mulf %255, %265 : vector<16x128xf32>
    %267 = arith.addf %264, %266 : vector<16x128xf32>
    %c2_i32_109 = arith.constant 2 : i32
    %268 = arith.truncf %267 : vector<16x128xf32> to vector<16x128xbf16>
    %c0_110 = arith.constant 0 : index
    %c0_111 = arith.constant 0 : index
    %269 = vector.load %arg10[%c0_110, %c0_111] : memref<128x128xbf16, #tpu.memory_space<vmem>>, vector<128x128xbf16>
    %cst_112 = arith.constant dense<0.000000e+00> : vector<16x128xf32>
    %270 = tpu.matmul %268, %269, %cst_112 {dimension_numbers = #tpu.dot_dimension_numbers<[1], [0], [0], [1], [0, 0, 1, 1], [], []>} : vector<16x128xbf16>, vector<128x128xbf16>, vector<16x128xf32> -> vector<16x128xf32>
    %271 = vector.broadcast %190 : vector<1x128xf32> to vector<16x128xf32>
    %272 = arith.addf %270, %271 : vector<16x128xf32>
    %c0_113 = arith.constant 0 : index
    %c0_114 = arith.constant 0 : index
    %273 = vector.load %arg2[%c0_113, %c0_114] : memref<16x16xbf16, #tpu.memory_space<vmem>>, vector<16x16xbf16>
    %274 = arith.truncf %272 : vector<16x128xf32> to vector<16x128xbf16>
    %cst_115 = arith.constant dense<0.000000e+00> : vector<16x128xf32>
    %275 = tpu.matmul %273, %274, %cst_115 {dimension_numbers = #tpu.dot_dimension_numbers<[1], [0], [0], [1], [0, 0, 1, 1], [], []>} : vector<16x16xbf16>, vector<16x128xbf16>, vector<16x128xf32> -> vector<16x128xf32>
    %276 = arith.truncf %275 : vector<16x128xf32> to vector<16x128xbf16>
    %c0_116 = arith.constant 0 : index
    %c0_117 = arith.constant 0 : index
    %277 = vector.load %arg11[%c0_116, %c0_117] : memref<128x384xbf16, #tpu.memory_space<vmem>>, vector<128x384xbf16>
    %cst_118 = arith.constant dense<0.000000e+00> : vector<16x384xf32>
    %278 = tpu.matmul %276, %277, %cst_118 {dimension_numbers = #tpu.dot_dimension_numbers<[1], [0], [0], [1], [0, 0, 1, 1], [], []>} : vector<16x128xbf16>, vector<128x384xbf16>, vector<16x384xf32> -> vector<16x384xf32>
    %c0_119 = arith.constant 0 : index
    %c0_120 = arith.constant 0 : index
    %279 = vector.load %arg12[%c0_119, %c0_120] : memref<128x384xbf16, #tpu.memory_space<vmem>>, vector<128x384xbf16>
    %cst_121 = arith.constant dense<0.000000e+00> : vector<16x384xf32>
    %280 = tpu.matmul %268, %279, %cst_121 {dimension_numbers = #tpu.dot_dimension_numbers<[1], [0], [0], [1], [0, 0, 1, 1], [], []>} : vector<16x128xbf16>, vector<128x384xbf16>, vector<16x384xf32> -> vector<16x384xf32>
    %281 = vector.extract_strided_slice %278 {offsets = [0, 0], sizes = [16, 256], strides = [1, 1]} : vector<16x384xf32> to vector<16x256xf32>
    %282 = vector.extract_strided_slice %280 {offsets = [0, 0], sizes = [16, 256], strides = [1, 1]} : vector<16x384xf32> to vector<16x256xf32>
    %283 = arith.addf %281, %282 : vector<16x256xf32>
    %284 = vector.broadcast %191 : vector<1x256xf32> to vector<16x256xf32>
    %285 = arith.addf %283, %284 : vector<16x256xf32>
    %286 = arith.negf %285 : vector<16x256xf32>
    %287 = math.exp %286 : vector<16x256xf32>
    %cst_122 = arith.constant 1.000000e+00 : f32
    %288 = vector.broadcast %cst_122 : f32 to vector<16x256xf32>
    %289 = arith.addf %288, %287 : vector<16x256xf32>
    %290 = arith.divf %288, %289 : vector<16x256xf32>
    %291 = vector.extract_strided_slice %290 {offsets = [0, 0], sizes = [16, 128], strides = [1, 1]} : vector<16x256xf32> to vector<16x128xf32>
    %292 = vector.extract_strided_slice %290 {offsets = [0, 128], sizes = [16, 128], strides = [1, 1]} : vector<16x256xf32> to vector<16x128xf32>
    %293 = vector.extract_strided_slice %278 {offsets = [0, 256], sizes = [16, 128], strides = [1, 1]} : vector<16x384xf32> to vector<16x128xf32>
    %294 = vector.broadcast %192 : vector<1x128xf32> to vector<16x128xf32>
    %295 = arith.addf %293, %294 : vector<16x128xf32>
    %296 = vector.extract_strided_slice %280 {offsets = [0, 256], sizes = [16, 128], strides = [1, 1]} : vector<16x384xf32> to vector<16x128xf32>
    %297 = vector.broadcast %193 : vector<1x128xf32> to vector<16x128xf32>
    %298 = arith.addf %296, %297 : vector<16x128xf32>
    %299 = arith.mulf %291, %298 : vector<16x128xf32>
    %300 = arith.addf %295, %299 : vector<16x128xf32>
    %301 = math.tanh %300 : vector<16x128xf32>
    %302 = arith.subf %267, %301 : vector<16x128xf32>
    %303 = arith.mulf %292, %302 : vector<16x128xf32>
    %304 = arith.addf %301, %303 : vector<16x128xf32>
    %c3_i32_123 = arith.constant 3 : i32
    %305 = arith.truncf %304 : vector<16x128xf32> to vector<16x128xbf16>
    %c0_124 = arith.constant 0 : index
    %c0_125 = arith.constant 0 : index
    %306 = vector.load %arg10[%c0_124, %c0_125] : memref<128x128xbf16, #tpu.memory_space<vmem>>, vector<128x128xbf16>
    %cst_126 = arith.constant dense<0.000000e+00> : vector<16x128xf32>
    %307 = tpu.matmul %305, %306, %cst_126 {dimension_numbers = #tpu.dot_dimension_numbers<[1], [0], [0], [1], [0, 0, 1, 1], [], []>} : vector<16x128xbf16>, vector<128x128xbf16>, vector<16x128xf32> -> vector<16x128xf32>
    %308 = vector.broadcast %190 : vector<1x128xf32> to vector<16x128xf32>
    %309 = arith.addf %307, %308 : vector<16x128xf32>
    %c0_127 = arith.constant 0 : index
    %c0_128 = arith.constant 0 : index
    %310 = vector.load %arg2[%c0_127, %c0_128] : memref<16x16xbf16, #tpu.memory_space<vmem>>, vector<16x16xbf16>
    %311 = arith.truncf %309 : vector<16x128xf32> to vector<16x128xbf16>
    %cst_129 = arith.constant dense<0.000000e+00> : vector<16x128xf32>
    %312 = tpu.matmul %310, %311, %cst_129 {dimension_numbers = #tpu.dot_dimension_numbers<[1], [0], [0], [1], [0, 0, 1, 1], [], []>} : vector<16x16xbf16>, vector<16x128xbf16>, vector<16x128xf32> -> vector<16x128xf32>
    %313 = arith.truncf %312 : vector<16x128xf32> to vector<16x128xbf16>
    %c0_130 = arith.constant 0 : index
    %c0_131 = arith.constant 0 : index
    %314 = vector.load %arg11[%c0_130, %c0_131] : memref<128x384xbf16, #tpu.memory_space<vmem>>, vector<128x384xbf16>
    %cst_132 = arith.constant dense<0.000000e+00> : vector<16x384xf32>
    %315 = tpu.matmul %313, %314, %cst_132 {dimension_numbers = #tpu.dot_dimension_numbers<[1], [0], [0], [1], [0, 0, 1, 1], [], []>} : vector<16x128xbf16>, vector<128x384xbf16>, vector<16x384xf32> -> vector<16x384xf32>
    %c0_133 = arith.constant 0 : index
    %c0_134 = arith.constant 0 : index
    %316 = vector.load %arg12[%c0_133, %c0_134] : memref<128x384xbf16, #tpu.memory_space<vmem>>, vector<128x384xbf16>
    %cst_135 = arith.constant dense<0.000000e+00> : vector<16x384xf32>
    %317 = tpu.matmul %305, %316, %cst_135 {dimension_numbers = #tpu.dot_dimension_numbers<[1], [0], [0], [1], [0, 0, 1, 1], [], []>} : vector<16x128xbf16>, vector<128x384xbf16>, vector<16x384xf32> -> vector<16x384xf32>
    %318 = vector.extract_strided_slice %315 {offsets = [0, 0], sizes = [16, 256], strides = [1, 1]} : vector<16x384xf32> to vector<16x256xf32>
    %319 = vector.extract_strided_slice %317 {offsets = [0, 0], sizes = [16, 256], strides = [1, 1]} : vector<16x384xf32> to vector<16x256xf32>
    %320 = arith.addf %318, %319 : vector<16x256xf32>
    %321 = vector.broadcast %191 : vector<1x256xf32> to vector<16x256xf32>
    %322 = arith.addf %320, %321 : vector<16x256xf32>
    %323 = arith.negf %322 : vector<16x256xf32>
    %324 = math.exp %323 : vector<16x256xf32>
    %cst_136 = arith.constant 1.000000e+00 : f32
    %325 = vector.broadcast %cst_136 : f32 to vector<16x256xf32>
    %326 = arith.addf %325, %324 : vector<16x256xf32>
    %327 = arith.divf %325, %326 : vector<16x256xf32>
    %328 = vector.extract_strided_slice %327 {offsets = [0, 0], sizes = [16, 128], strides = [1, 1]} : vector<16x256xf32> to vector<16x128xf32>
    %329 = vector.extract_strided_slice %327 {offsets = [0, 128], sizes = [16, 128], strides = [1, 1]} : vector<16x256xf32> to vector<16x128xf32>
    %330 = vector.extract_strided_slice %315 {offsets = [0, 256], sizes = [16, 128], strides = [1, 1]} : vector<16x384xf32> to vector<16x128xf32>
    %331 = vector.broadcast %192 : vector<1x128xf32> to vector<16x128xf32>
    %332 = arith.addf %330, %331 : vector<16x128xf32>
    %333 = vector.extract_strided_slice %317 {offsets = [0, 256], sizes = [16, 128], strides = [1, 1]} : vector<16x384xf32> to vector<16x128xf32>
    %334 = vector.broadcast %193 : vector<1x128xf32> to vector<16x128xf32>
    %335 = arith.addf %333, %334 : vector<16x128xf32>
    %336 = arith.mulf %328, %335 : vector<16x128xf32>
    %337 = arith.addf %332, %336 : vector<16x128xf32>
    %338 = math.tanh %337 : vector<16x128xf32>
    %339 = arith.subf %304, %338 : vector<16x128xf32>
    %340 = arith.mulf %329, %339 : vector<16x128xf32>
    %341 = arith.addf %338, %340 : vector<16x128xf32>
    %c4_i32_137 = arith.constant 4 : i32
    %342 = arith.truncf %341 : vector<16x128xf32> to vector<16x128xbf16>
    %c0_138 = arith.constant 0 : index
    %c0_139 = arith.constant 0 : index
    %343 = vector.load %arg10[%c0_138, %c0_139] : memref<128x128xbf16, #tpu.memory_space<vmem>>, vector<128x128xbf16>
    %cst_140 = arith.constant dense<0.000000e+00> : vector<16x128xf32>
    %344 = tpu.matmul %342, %343, %cst_140 {dimension_numbers = #tpu.dot_dimension_numbers<[1], [0], [0], [1], [0, 0, 1, 1], [], []>} : vector<16x128xbf16>, vector<128x128xbf16>, vector<16x128xf32> -> vector<16x128xf32>
    %345 = vector.broadcast %190 : vector<1x128xf32> to vector<16x128xf32>
    %346 = arith.addf %344, %345 : vector<16x128xf32>
    %c0_141 = arith.constant 0 : index
    %c0_142 = arith.constant 0 : index
    %347 = vector.load %arg2[%c0_141, %c0_142] : memref<16x16xbf16, #tpu.memory_space<vmem>>, vector<16x16xbf16>
    %348 = arith.truncf %346 : vector<16x128xf32> to vector<16x128xbf16>
    %cst_143 = arith.constant dense<0.000000e+00> : vector<16x128xf32>
    %349 = tpu.matmul %347, %348, %cst_143 {dimension_numbers = #tpu.dot_dimension_numbers<[1], [0], [0], [1], [0, 0, 1, 1], [], []>} : vector<16x16xbf16>, vector<16x128xbf16>, vector<16x128xf32> -> vector<16x128xf32>
    %350 = arith.truncf %349 : vector<16x128xf32> to vector<16x128xbf16>
    %c0_144 = arith.constant 0 : index
    %c0_145 = arith.constant 0 : index
    %351 = vector.load %arg11[%c0_144, %c0_145] : memref<128x384xbf16, #tpu.memory_space<vmem>>, vector<128x384xbf16>
    %cst_146 = arith.constant dense<0.000000e+00> : vector<16x384xf32>
    %352 = tpu.matmul %350, %351, %cst_146 {dimension_numbers = #tpu.dot_dimension_numbers<[1], [0], [0], [1], [0, 0, 1, 1], [], []>} : vector<16x128xbf16>, vector<128x384xbf16>, vector<16x384xf32> -> vector<16x384xf32>
    %c0_147 = arith.constant 0 : index
    %c0_148 = arith.constant 0 : index
    %353 = vector.load %arg12[%c0_147, %c0_148] : memref<128x384xbf16, #tpu.memory_space<vmem>>, vector<128x384xbf16>
    %cst_149 = arith.constant dense<0.000000e+00> : vector<16x384xf32>
    %354 = tpu.matmul %342, %353, %cst_149 {dimension_numbers = #tpu.dot_dimension_numbers<[1], [0], [0], [1], [0, 0, 1, 1], [], []>} : vector<16x128xbf16>, vector<128x384xbf16>, vector<16x384xf32> -> vector<16x384xf32>
    %355 = vector.extract_strided_slice %352 {offsets = [0, 0], sizes = [16, 256], strides = [1, 1]} : vector<16x384xf32> to vector<16x256xf32>
    %356 = vector.extract_strided_slice %354 {offsets = [0, 0], sizes = [16, 256], strides = [1, 1]} : vector<16x384xf32> to vector<16x256xf32>
    %357 = arith.addf %355, %356 : vector<16x256xf32>
    %358 = vector.broadcast %191 : vector<1x256xf32> to vector<16x256xf32>
    %359 = arith.addf %357, %358 : vector<16x256xf32>
    %360 = arith.negf %359 : vector<16x256xf32>
    %361 = math.exp %360 : vector<16x256xf32>
    %cst_150 = arith.constant 1.000000e+00 : f32
    %362 = vector.broadcast %cst_150 : f32 to vector<16x256xf32>
    %363 = arith.addf %362, %361 : vector<16x256xf32>
    %364 = arith.divf %362, %363 : vector<16x256xf32>
    %365 = vector.extract_strided_slice %364 {offsets = [0, 0], sizes = [16, 128], strides = [1, 1]} : vector<16x256xf32> to vector<16x128xf32>
    %366 = vector.extract_strided_slice %364 {offsets = [0, 128], sizes = [16, 128], strides = [1, 1]} : vector<16x256xf32> to vector<16x128xf32>
    %367 = vector.extract_strided_slice %352 {offsets = [0, 256], sizes = [16, 128], strides = [1, 1]} : vector<16x384xf32> to vector<16x128xf32>
    %368 = vector.broadcast %192 : vector<1x128xf32> to vector<16x128xf32>
    %369 = arith.addf %367, %368 : vector<16x128xf32>
    %370 = vector.extract_strided_slice %354 {offsets = [0, 256], sizes = [16, 128], strides = [1, 1]} : vector<16x384xf32> to vector<16x128xf32>
    %371 = vector.broadcast %193 : vector<1x128xf32> to vector<16x128xf32>
    %372 = arith.addf %370, %371 : vector<16x128xf32>
    %373 = arith.mulf %365, %372 : vector<16x128xf32>
    %374 = arith.addf %369, %373 : vector<16x128xf32>
    %375 = math.tanh %374 : vector<16x128xf32>
    %376 = arith.subf %341, %375 : vector<16x128xf32>
    %377 = arith.mulf %366, %376 : vector<16x128xf32>
    %378 = arith.addf %375, %377 : vector<16x128xf32>
    %c0_151 = arith.constant 0 : index
    %c0_152 = arith.constant 0 : index
    %379 = vector.load %arg17[%c0_151, %c0_152] : memref<128x128xf32, #tpu.memory_space<vmem>>, vector<128x128xf32>
    %cst_153 = arith.constant dense<0.000000e+00> : vector<16x128xf32>
    %380 = tpu.matmul %378, %379, %cst_153 {dimension_numbers = #tpu.dot_dimension_numbers<[1], [0], [0], [1], [0, 0, 1, 1], [], []>} : vector<16x128xf32>, vector<128x128xf32>, vector<16x128xf32> -> vector<16x128xf32>
    %c0_154 = arith.constant 0 : index
    %c0_155 = arith.constant 0 : index
    %381 = vector.load %arg18[%c0_154, %c0_155] : memref<1x128xf32, #tpu.memory_space<vmem>>, vector<1x128xf32>
    %382 = vector.broadcast %381 : vector<1x128xf32> to vector<16x128xf32>
    %383 = arith.addf %380, %382 : vector<16x128xf32>
    %c0_156 = arith.constant 0 : index
    %c0_157 = arith.constant 0 : index
    %384 = vector.load %arg19[%c0_156, %c0_157] : memref<16x128xf32, #tpu.memory_space<vmem>>, vector<16x128xf32>
    tpu.vector_store %arg19[%c0_156, %c0_157], %383 {strides = array<i32>} : memref<16x128xf32, #tpu.memory_space<vmem>>, vector<16x128xf32>,
    return
  }
  func.func @transform_0(%arg0: i32) -> (i32, i32) {
    %c0_i32 = arith.constant 0 : i32
    %c0_i32_0 = arith.constant 0 : i32
    %c0_i32_1 = arith.constant 0 : i32
    return %c0_i32, %c0_i32_0 : i32, i32
  }
  func.func @transform_1(%arg0: i32) -> (i32, i32) {
    %c0_i32 = arith.constant 0 : i32
    %c0_i32_0 = arith.constant 0 : i32
    %c0_i32_1 = arith.constant 0 : i32
    return %c0_i32, %c0_i32_0 : i32, i32
  }
  func.func @transform_2(%arg0: i32) -> (i32, i32) {
    %c0_i32 = arith.constant 0 : i32
    %c0_i32_0 = arith.constant 0 : i32
    %c0_i32_1 = arith.constant 0 : i32
    return %c0_i32, %c0_i32_0 : i32, i32
  }
  func.func @transform_3(%arg0: i32) -> (i32, i32) {
    %c0_i32 = arith.constant 0 : i32
    %c0_i32_0 = arith.constant 0 : i32
    %c0_i32_1 = arith.constant 0 : i32
    return %c0_i32, %c0_i32_0 : i32, i32
  }
  func.func @transform_4(%arg0: i32) -> (i32, i32) {
    %c0_i32 = arith.constant 0 : i32
    %c0_i32_0 = arith.constant 0 : i32
    %c0_i32_1 = arith.constant 0 : i32
    return %c0_i32, %c0_i32_0 : i32, i32
  }
  func.func @transform_5(%arg0: i32) -> (i32, i32) {
    %c0_i32 = arith.constant 0 : i32
    %c0_i32_0 = arith.constant 0 : i32
    %c0_i32_1 = arith.constant 0 : i32
    return %c0_i32, %c0_i32_0 : i32, i32
  }
  func.func @transform_6(%arg0: i32) -> (i32, i32) {
    %c0_i32 = arith.constant 0 : i32
    %c0_i32_0 = arith.constant 0 : i32
    %c0_i32_1 = arith.constant 0 : i32
    return %c0_i32, %c0_i32_0 : i32, i32
  }
  func.func @transform_7(%arg0: i32) -> (i32, i32) {
    %c0_i32 = arith.constant 0 : i32
    %c0_i32_0 = arith.constant 0 : i32
    %c0_i32_1 = arith.constant 0 : i32
    return %c0_i32, %c0_i32_0 : i32, i32
  }
  func.func @transform_8(%arg0: i32) -> (i32, i32) {
    %c0_i32 = arith.constant 0 : i32
    %c0_i32_0 = arith.constant 0 : i32
    %c0_i32_1 = arith.constant 0 : i32
    return %c0_i32, %c0_i32_0 : i32, i32
  }
  func.func @transform_9(%arg0: i32) -> (i32, i32) {
    %c0_i32 = arith.constant 0 : i32
    %c0_i32_0 = arith.constant 0 : i32
    %c0_i32_1 = arith.constant 0 : i32
    return %c0_i32, %c0_i32_0 : i32, i32
  }
  func.func @transform_10(%arg0: i32) -> (i32, i32) {
    %c0_i32 = arith.constant 0 : i32
    %c0_i32_0 = arith.constant 0 : i32
    %c0_i32_1 = arith.constant 0 : i32
    return %c0_i32, %c0_i32_0 : i32, i32
  }
  func.func @transform_11(%arg0: i32) -> (i32, i32) {
    %c0_i32 = arith.constant 0 : i32
    %c0_i32_0 = arith.constant 0 : i32
    %c0_i32_1 = arith.constant 0 : i32
    return %c0_i32, %c0_i32_0 : i32, i32
  }
  func.func @transform_12(%arg0: i32) -> (i32, i32) {
    %c0_i32 = arith.constant 0 : i32
    %c0_i32_0 = arith.constant 0 : i32
    %c0_i32_1 = arith.constant 0 : i32
    return %c0_i32, %c0_i32_0 : i32, i32
  }
  func.func @transform_13(%arg0: i32) -> (i32, i32) {
    %c0_i32 = arith.constant 0 : i32
    %c0_i32_0 = arith.constant 0 : i32
    %c0_i32_1 = arith.constant 0 : i32
    return %c0_i32, %c0_i32_0 : i32, i32
  }
  func.func @transform_14(%arg0: i32) -> (i32, i32) {
    %c0_i32 = arith.constant 0 : i32
    %c0_i32_0 = arith.constant 0 : i32
    %c0_i32_1 = arith.constant 0 : i32
    return %c0_i32, %c0_i32_0 : i32, i32
  }
  func.func @transform_15(%arg0: i32) -> (i32, i32) {
    %c0_i32 = arith.constant 0 : i32
    %c0_i32_0 = arith.constant 0 : i32
    %c0_i32_1 = arith.constant 0 : i32
    return %c0_i32, %c0_i32_0 : i32, i32
  }
  func.func @transform_16(%arg0: i32) -> (i32, i32) {
    %c0_i32 = arith.constant 0 : i32
    %c0_i32_0 = arith.constant 0 : i32
    %c0_i32_1 = arith.constant 0 : i32
    return %c0_i32, %c0_i32_0 : i32, i32
  }
  func.func @transform_17(%arg0: i32) -> (i32, i32) {
    %c0_i32 = arith.constant 0 : i32
    %c0_i32_0 = arith.constant 0 : i32
    %c0_i32_1 = arith.constant 0 : i32
    return %c0_i32, %c0_i32_0 : i32, i32
  }
  func.func @transform_18(%arg0: i32) -> (i32, i32) {
    %c0_i32 = arith.constant 0 : i32
    %c0_i32_0 = arith.constant 0 : i32
    %c0_i32_1 = arith.constant 0 : i32
    return %c0_i32, %c0_i32_0 : i32, i32
  }
}

</mosaic_0001>

<llo_original>
// kernel: tpu_custom_call.1
$region0: #{tpu_custom_call.1}
  #allocation0 [shape = 'u32[]', space=smem, size = 0x4, offset = 0x4, fixed_abs, tag = 'smem constant byte address 0x4 - core index']
  #allocation1 [shape = 'u32[144,128]{1,0:T(1,128)}', space=vmem, size = 0x12000, scoped, tag = 'internal scratch']
  %s0 = inlined_call_operand.hbm [shape: f32[16,128], index: 0, kind: input, shape index: {}]
  %s1 = inlined_call_operand.hbm [shape: bf16[16,16], index: 1, kind: input, shape index: {}]
  %s2 = inlined_call_operand.hbm [shape: bf16[128,128], index: 2, kind: input, shape index: {}]
  %s3 = inlined_call_operand.hbm [shape: bf16[128,384], index: 3, kind: input, shape index: {}]
  %s4 = inlined_call_operand.hbm [shape: bf16[128,384], index: 4, kind: input, shape index: {}]
  %s5 = inlined_call_operand.vmem [shape: f32[1,128], index: 5, kind: input, shape index: {}]
  %s6 = inlined_call_operand.vmem [shape: f32[1,256], index: 6, kind: input, shape index: {}]
  %s7 = inlined_call_operand.vmem [shape: f32[1,128], index: 7, kind: input, shape index: {}]
  %s8 = inlined_call_operand.vmem [shape: f32[1,128], index: 8, kind: input, shape index: {}]
  %s9 = inlined_call_operand.hbm [shape: bf16[128,128], index: 9, kind: input, shape index: {}]
  %s10 = inlined_call_operand.hbm [shape: bf16[128,384], index: 10, kind: input, shape index: {}]
  %s11 = inlined_call_operand.hbm [shape: bf16[128,384], index: 11, kind: input, shape index: {}]
  %s12 = inlined_call_operand.vmem [shape: f32[1,128], index: 12, kind: input, shape index: {}]
  %s13 = inlined_call_operand.vmem [shape: f32[1,256], index: 13, kind: input, shape index: {}]
  %s14 = inlined_call_operand.vmem [shape: f32[1,128], index: 14, kind: input, shape index: {}]
  %s15 = inlined_call_operand.vmem [shape: f32[1,128], index: 15, kind: input, shape index: {}]
  %s16 = inlined_call_operand.hbm [shape: f32[128,128], index: 16, kind: input, shape index: {}]
  %s17 = inlined_call_operand.vmem [shape: f32[1,128], index: 17, kind: input, shape index: {}]
  %s18 = inlined_call_operand.hbm [shape: f32[16,128], index: 18, kind: output, shape index: {}]
  %s19 = sld [smem:[#allocation0]]
  $region118: #{tpu_custom_call.1} parent=0
    _
  %s21 = ssub.s32 1, %s19
  %s22 = scalar_select 0, %s21, %s19
  $region1: #{tpu_custom_call.1} parent=0
    #allocation2 [shape = 'u8[8192]{0}', space=vmem, size = 0x2000, scoped, tag = 'input window, operand 0, single buffered']
    #allocation3 [shape = 's32[1]{0}', space=sflag, size = 0x4, scoped, tag = 'scoped memory for tpu_custom_call.1']
    #allocation4 [shape = 's32[1]{0}', space=sflag, size = 0x4, scoped, tag = 'scoped memory for tpu_custom_call.1']
    #allocation5 [shape = 'u8[4096]{0}', space=vmem, size = 0x1000, scoped, tag = 'input window, operand 1, single buffered']
    #allocation6 [shape = 's32[1]{0}', space=sflag, size = 0x4, scoped, tag = 'scoped memory for tpu_custom_call.1']
    #allocation7 [shape = 'u8[32768]{0}', space=vmem, size = 0x8000, scoped, tag = 'input window, operand 2, single buffered']
    #allocation8 [shape = 'u8[98304]{0}', space=vmem, size = 0x18000, scoped, tag = 'input window, operand 3, single buffered']
    #allocation9 [shape = 's32[1]{0}', space=sflag, size = 0x4, scoped, tag = 'scoped memory for tpu_custom_call.1']
    #allocation10 [shape = 'u8[98304]{0}', space=vmem, size = 0x18000, scoped, tag = 'input window, operand 4, single buffered']
    #allocation11 [shape = 'u8[32768]{0}', space=vmem, size = 0x8000, scoped, tag = 'input window, operand 9, single buffered']
    #allocation12 [shape = 's32[1]{0}', space=sflag, size = 0x4, scoped, tag = 'scoped memory for tpu_custom_call.1']
    #allocation13 [shape = 'u8[98304]{0}', space=vmem, size = 0x18000, scoped, tag = 'input window, operand 10, single buffered']
    #allocation14 [shape = 'u8[98304]{0}', space=vmem, size = 0x18000, scoped, tag = 'input window, operand 11, single buffered']
    #allocation15 [shape = 's32[1]{0}', space=sflag, size = 0x4, scoped, tag = 'scoped memory for tpu_custom_call.1']
    #allocation16 [shape = 'u8[65536]{0}', space=vmem, size = 0x10000, scoped, tag = 'input window, operand 16, single buffered']
    #allocation17 [shape = 'u8[8192]{0}', space=vmem, size = 0x2000, scoped, tag = 'output window, operand 0, single buffered']
    %23 = vsyncpa [#allocation3], 0
    %24 = vsyncpa [#allocation6], 0
    %25 = vsyncpa [#allocation9], 0
    %26 = vsyncpa [#allocation12], 0
    %27 = vsyncpa [#allocation15], 0
    %28 = vsyncpa [#allocation4], 0
    // Predicated region
    $region2: #{tpu_custom_call.1} parent=1 // pred_check
      _
    $region3: #{tpu_custom_call.1} parent=1 // pred_check_branch
      %30 = sbr.rel (0) target = $region5
    $region4: #{tpu_custom_call.1} parent=1 // pred_region
      %s32 = ssub.s32 256, 256
      %33 = vsyncadd [#allocation3], %s32
      %s34 = sshll.u32 [#allocation2], 4
      %s35 = int_to_ptr.vmem [resolvable:$true] %s34
      %40 = dma.hbm_to_vmem [thread:$0]  %s0, 256, %s35, [#allocation3], 128, 128, 8
    $region5: #{tpu_custom_call.1} parent=1 // pred_fallthru
      _
    // Predicated region
    $region6: #{tpu_custom_call.1} parent=1 // pred_check
      _
    $region7: #{tpu_custom_call.1} parent=1 // pred_check_branch
      %42 = sbr.rel (0) target = $region9
    $region8: #{tpu_custom_call.1} parent=1 // pred_region
      %s44 = ssub.s32 128, 128
      %45 = vsyncadd [#allocation6], %s44
      %s46 = sshll.u32 [#allocation5], 4
      %s47 = int_to_ptr.vmem [resolvable:$true] %s46
      %52 = dma.hbm_to_vmem [thread:$0]  %s1, 128, %s47, [#allocation6], 64, 64, 4
    $region9: #{tpu_custom_call.1} parent=1 // pred_fallthru
      _
    // Predicated region
    $region10: #{tpu_custom_call.1} parent=1 // pred_check
      _
    $region11: #{tpu_custom_call.1} parent=1 // pred_check_branch
      %54 = sbr.rel (0) target = $region13
    $region12: #{tpu_custom_call.1} parent=1 // pred_region
      %s56 = ssub.s32 1024, 1024
      %57 = vsyncadd [#allocation6], %s56
      %s58 = sshll.u32 [#allocation7], 4
      %s59 = int_to_ptr.vmem [resolvable:$true] %s58
      %64 = dma.hbm_to_vmem [thread:$0]  %s2, 1024, %s59, [#allocation6], 64, 64, 4
    $region13: #{tpu_custom_call.1} parent=1 // pred_fallthru
      _
    // Predicated region
    $region14: #{tpu_custom_call.1} parent=1 // pred_check
      _
    $region15: #{tpu_custom_call.1} parent=1 // pred_check_branch
      %66 = sbr.rel (0) target = $region17
    $region16: #{tpu_custom_call.1} parent=1 // pred_region
      %s68 = ssub.s32 3072, 3072
      %69 = vsyncadd [#allocation9], %s68
      %s70 = sshll.u32 [#allocation8], 4
      %s71 = int_to_ptr.vmem [resolvable:$true] %s70
      %76 = dma.hbm_to_vmem [thread:$0]  %s3, 3072, %s71, [#allocation9], 192, 192, 12
    $region17: #{tpu_custom_call.1} parent=1 // pred_fallthru
      _
    // Predicated region
    $region18: #{tpu_custom_call.1} parent=1 // pred_check
      _
    $region19: #{tpu_custom_call.1} parent=1 // pred_check_branch
      %78 = sbr.rel (0) target = $region21
    $region20: #{tpu_custom_call.1} parent=1 // pred_region
      %s80 = ssub.s32 3072, 3072
      %81 = vsyncadd [#allocation9], %s80
      %s82 = sshll.u32 [#allocation10], 4
      %s83 = int_to_ptr.vmem [resolvable:$true] %s82
      %88 = dma.hbm_to_vmem [thread:$0]  %s4, 3072, %s83, [#allocation9], 192, 192, 12
    $region21: #{tpu_custom_call.1} parent=1 // pred_fallthru
      _
    // Predicated region
    $region22: #{tpu_custom_call.1} parent=1 // pred_check
      _
    $region23: #{tpu_custom_call.1} parent=1 // pred_check_branch
      %90 = sbr.rel (0) target = $region25
    $region24: #{tpu_custom_call.1} parent=1 // pred_region
      _
    $region25: #{tpu_custom_call.1} parent=1 // pred_fallthru
      _
    // Predicated region
    $region26: #{tpu_custom_call.1} parent=1 // pred_check
      _
    $region27: #{tpu_custom_call.1} parent=1 // pred_check_branch
      %92 = sbr.rel (0) target = $region29
    $region28: #{tpu_custom_call.1} parent=1 // pred_region
      _
    $region29: #{tpu_custom_call.1} parent=1 // pred_fallthru
      _
    // Predicated region
    $region30: #{tpu_custom_call.1} parent=1 // pred_check
      _
    $region31: #{tpu_custom_call.1} parent=1 // pred_check_branch
      %94 = sbr.rel (0) target = $region33
    $region32: #{tpu_custom_call.1} parent=1 // pred_region
      _
    $region33: #{tpu_custom_call.1} parent=1 // pred_fallthru
      _
    // Predicated region
    $region34: #{tpu_custom_call.1} parent=1 // pred_check
      _
    $region35: #{tpu_custom_call.1} parent=1 // pred_check_branch
      %96 = sbr.rel (0) target = $region37
    $region36: #{tpu_custom_call.1} parent=1 // pred_region
      _
    $region37: #{tpu_custom_call.1} parent=1 // pred_fallthru
      _
    // Predicated region
    $region38: #{tpu_custom_call.1} parent=1 // pred_check
      _
    $region39: #{tpu_custom_call.1} parent=1 // pred_check_branch
      %98 = sbr.rel (0) target = $region41
    $region40: #{tpu_custom_call.1} parent=1 // pred_region
      %s100 = ssub.s32 1024, 1024
      %101 = vsyncadd [#allocation12], %s100
      %s102 = sshll.u32 [#allocation11], 4
      %s103 = int_to_ptr.vmem [resolvable:$true] %s102
      %108 = dma.hbm_to_vmem [thread:$0]  %s9, 1024, %s103, [#allocation12], 64, 64, 4
    $region41: #{tpu_custom_call.1} parent=1 // pred_fallthru
      _
    // Predicated region
    $region42: #{tpu_custom_call.1} parent=1 // pred_check
      _
    $region43: #{tpu_custom_call.1} parent=1 // pred_check_branch
      %110 = sbr.rel (0) target = $region45
    $region44: #{tpu_custom_call.1} parent=1 // pred_region
      %s112 = ssub.s32 3072, 3072
      %113 = vsyncadd [#allocation12], %s112
      %s114 = sshll.u32 [#allocation13], 4
      %s115 = int_to_ptr.vmem [resolvable:$true] %s114
      %120 = dma.hbm_to_vmem [thread:$0]  %s10, 3072, %s115, [#allocation12], 192, 192, 12
    $region45: #{tpu_custom_call.1} parent=1 // pred_fallthru
      _
    // Predicated region
    $region46: #{tpu_custom_call.1} parent=1 // pred_check
      _
    $region47: #{tpu_custom_call.1} parent=1 // pred_check_branch
      %122 = sbr.rel (0) target = $region49
    $region48: #{tpu_custom_call.1} parent=1 // pred_region
      %s124 = ssub.s32 3072, 3072
      %125 = vsyncadd [#allocation15], %s124
      %s126 = sshll.u32 [#allocation14], 4
      %s127 = int_to_ptr.vmem [resolvable:$true] %s126
      %132 = dma.hbm_to_vmem [thread:$0]  %s11, 3072, %s127, [#allocation15], 192, 192, 12
    $region49: #{tpu_custom_call.1} parent=1 // pred_fallthru
      _
    // Predicated region
    $region50: #{tpu_custom_call.1} parent=1 // pred_check
      _
    $region51: #{tpu_custom_call.1} parent=1 // pred_check_branch
      %134 = sbr.rel (0) target = $region53
    $region52: #{tpu_custom_call.1} parent=1 // pred_region
      _
    $region53: #{tpu_custom_call.1} parent=1 // pred_fallthru
      _
    // Predicated region
    $region54: #{tpu_custom_call.1} parent=1 // pred_check
      _
    $region55: #{tpu_custom_call.1} parent=1 // pred_check_branch
      %136 = sbr.rel (0) target = $region57
    $region56: #{tpu_custom_call.1} parent=1 // pred_region
      _
    $region57: #{tpu_custom_call.1} parent=1 // pred_fallthru
      _
    // Predicated region
    $region58: #{tpu_custom_call.1} parent=1 // pred_check
      _
    $region59: #{tpu_custom_call.1} parent=1 // pred_check_branch
      %138 = sbr.rel (0) target = $region61
    $region60: #{tpu_custom_call.1} parent=1 // pred_region
      _
    $region61: #{tpu_custom_call.1} parent=1 // pred_fallthru
      _
    // Predicated region
    $region62: #{tpu_custom_call.1} parent=1 // pred_check
      _
    $region63: #{tpu_custom_call.1} parent=1 // pred_check_branch
      %140 = sbr.rel (0) target = $region65
    $region64: #{tpu_custom_call.1} parent=1 // pred_region
      _
    $region65: #{tpu_custom_call.1} parent=1 // pred_fallthru
      _
    // Predicated region
    $region66: #{tpu_custom_call.1} parent=1 // pred_check
      _
    $region67: #{tpu_custom_call.1} parent=1 // pred_check_branch
      %142 = sbr.rel (0) target = $region69
    $region68: #{tpu_custom_call.1} parent=1 // pred_region
      %s144 = ssub.s32 2048, 2048
      %145 = vsyncadd [#allocation15], %s144
      %s146 = sshll.u32 [#allocation16], 4
      %s147 = int_to_ptr.vmem [resolvable:$true] %s146
      %152 = dma.hbm_to_vmem [thread:$0]  %s16, 2048, %s147, [#allocation15], 128, 128, 8
    $region69: #{tpu_custom_call.1} parent=1 // pred_fallthru
      _
    // Predicated region
    $region70: #{tpu_custom_call.1} parent=1 // pred_check
      _
    $region71: #{tpu_custom_call.1} parent=1 // pred_check_branch
      %154 = sbr.rel (0) target = $region73
    $region72: #{tpu_custom_call.1} parent=1 // pred_region
      _
    $region73: #{tpu_custom_call.1} parent=1 // pred_fallthru
      _
    // Predicated region
    $region74: #{tpu_custom_call.1} parent=1 // pred_check
      _
    $region75: #{tpu_custom_call.1} parent=1 // pred_check_branch
      %156 = sbr.rel (0) target = $region77
    $region76: #{tpu_custom_call.1} parent=1 // pred_region
      %157 = dma.done [#allocation3], 256
    $region77: #{tpu_custom_call.1} parent=1 // pred_fallthru
      _
    // Predicated region
    $region78: #{tpu_custom_call.1} parent=1 // pred_check
      _
    $region79: #{tpu_custom_call.1} parent=1 // pred_check_branch
      %159 = sbr.rel (0) target = $region81
    $region80: #{tpu_custom_call.1} parent=1 // pred_region
      %160 = dma.done [#allocation6], 128
    $region81: #{tpu_custom_call.1} parent=1 // pred_fallthru
      _
    // Predicated region
    $region82: #{tpu_custom_call.1} parent=1 // pred_check
      _
    $region83: #{tpu_custom_call.1} parent=1 // pred_check_branch
      %162 = sbr.rel (0) target = $region85
    $region84: #{tpu_custom_call.1} parent=1 // pred_region
      %163 = dma.done [#allocation6], 1024
    $region85: #{tpu_custom_call.1} parent=1 // pred_fallthru
      _
    // Predicated region
    $region86: #{tpu_custom_call.1} parent=1 // pred_check
      _
    $region87: #{tpu_custom_call.1} parent=1 // pred_check_branch
      %165 = sbr.rel (0) target = $region89
    $region88: #{tpu_custom_call.1} parent=1 // pred_region
      %166 = dma.done [#allocation9], 3072
    $region89: #{tpu_custom_call.1} parent=1 // pred_fallthru
      _
    // Predicated region
    $region90: #{tpu_custom_call.1} parent=1 // pred_check
      _
    $region91: #{tpu_custom_call.1} parent=1 // pred_check_branch
      %168 = sbr.rel (0) target = $region93
    $region92: #{tpu_custom_call.1} parent=1 // pred_region
      %169 = dma.done [#allocation9], 3072
    $region93: #{tpu_custom_call.1} parent=1 // pred_fallthru
      _
    // Predicated region
    $region94: #{tpu_custom_call.1} parent=1 // pred_check
      _
    $region95: #{tpu_custom_call.1} parent=1 // pred_check_branch
      %171 = sbr.rel (0) target = $region97
    $region96: #{tpu_custom_call.1} parent=1 // pred_region
      %172 = dma.done [#allocation12], 1024
    $region97: #{tpu_custom_call.1} parent=1 // pred_fallthru
      _
    // Predicated region
    $region98: #{tpu_custom_call.1} parent=1 // pred_check
      _
    $region99: #{tpu_custom_call.1} parent=1 // pred_check_branch
      %174 = sbr.rel (0) target = $region101
    $region100: #{tpu_custom_call.1} parent=1 // pred_region
      %175 = dma.done [#allocation12], 3072
    $region101: #{tpu_custom_call.1} parent=1 // pred_fallthru
      _
    // Predicated region
    $region102: #{tpu_custom_call.1} parent=1 // pred_check
      _
    $region103: #{tpu_custom_call.1} parent=1 // pred_check_branch
      %177 = sbr.rel (0) target = $region105
    $region104: #{tpu_custom_call.1} parent=1 // pred_region
      %178 = dma.done [#allocation15], 3072
    $region105: #{tpu_custom_call.1} parent=1 // pred_fallthru
      _
    // Predicated region
    $region106: #{tpu_custom_call.1} parent=1 // pred_check
      _
    $region107: #{tpu_custom_call.1} parent=1 // pred_check_branch
      %180 = sbr.rel (0) target = $region109
    $region108: #{tpu_custom_call.1} parent=1 // pred_region
      %181 = dma.done [#allocation15], 2048
    $region109: #{tpu_custom_call.1} parent=1 // pred_fallthru
      _
    %v183 = vld [vmem:[#allocation2] sm:$0xff]
    %v184 = vld [vmem:[#allocation2 + $0x8] sm:$0xff]
    %v185 = vld [vmem:[%s5] sm:$0x1]
    %v186 = vld [vmem:[%s6] sm:$0x3]
    %v187 = vld [vmem:[%s7] sm:$0x1]
    %v188 = vld [vmem:[%s8] sm:$0x1]
    %v189 = vpack.c.bf16 %v184, %v183
    %v190 = vld [vmem:[#allocation7] sm:$0xf]
    %v191 = vld [vmem:[#allocation7 + $0x4] sm:$0xf]
    %v192 = vld [vmem:[#allocation7 + $0x8] sm:$0xf]
    %v193 = vld [vmem:[#allocation7 + $0xc] sm:$0xf]
    %v194 = vld [vmem:[#allocation7 + $0x10] sm:$0xf]
    %v195 = vld [vmem:[#allocation7 + $0x14] sm:$0xf]
    %v196 = vld [vmem:[#allocation7 + $0x18] sm:$0xf]
    %v197 = vld [vmem:[#allocation7 + $0x1c] sm:$0xf]
    %v198 = vld [vmem:[#allocation7 + $0x20] sm:$0xf]
    %v199 = vld [vmem:[#allocation7 + $0x24] sm:$0xf]
    %v200 = vld [vmem:[#allocation7 + $0x28] sm:$0xf]
    %v201 = vld [vmem:[#allocation7 + $0x2c] sm:$0xf]
    %v202 = vld [vmem:[#allocation7 + $0x30] sm:$0xf]
    %v203 = vld [vmem:[#allocation7 + $0x34] sm:$0xf]
    %v204 = vld [vmem:[#allocation7 + $0x38] sm:$0xf]
    %v205 = vld [vmem:[#allocation7 + $0x3c] sm:$0xf]
    %v207 = vlaneseq
    %v208 = vshrl.u32 %v207, 7
    %v209 = vsub.s32 0, %v208
    %v210 = vrot.slane %v185, %v209
    %v228 = vunpack.c.l.b16 %v190
    %v229 = vunpack.c.l.b16 %v191
    %v230 = vunpack.c.l.b16 %v192
    %v231 = vunpack.c.l.b16 %v193
    %v232 = vunpack.c.l.b16 %v194
    %v233 = vunpack.c.l.b16 %v195
    %v234 = vunpack.c.l.b16 %v196
    %v235 = vunpack.c.l.b16 %v197
    %v236 = vunpack.c.l.b16 %v198
    %v237 = vunpack.c.l.b16 %v199
    %v238 = vunpack.c.l.b16 %v200
    %v239 = vunpack.c.l.b16 %v201
    %v240 = vunpack.c.l.b16 %v202
    %v241 = vunpack.c.l.b16 %v203
    %v242 = vunpack.c.l.b16 %v204
    %v243 = vunpack.c.l.b16 %v205
    %v244 = vpack.c.b16 %v229, %v228
    %v245 = vpack.c.b16 %v231, %v230
    %v246 = vpack.c.b16 %v233, %v232
    %v247 = vpack.c.b16 %v235, %v234
    %v248 = vpack.c.b16 %v237, %v236
    %v249 = vpack.c.b16 %v239, %v238
    %v250 = vpack.c.b16 %v241, %v240
    %v251 = vpack.c.b16 %v243, %v242
    %260 = vmatprep.subr.bf16.mxu0 0
    %261 = vmatpush1.bf16.msra.mxu0 %v244
    %262 = vmatprep.subr.bf16.mxu0 0
    %263 = vmatpush1.bf16.msra.mxu0 %v245
    %264 = vmatprep.subr.bf16.mxu0 0
    %265 = vmatpush1.bf16.msra.mxu0 %v246
    %266 = vmatprep.subr.bf16.mxu0 0
    %267 = vmatpush1.bf16.msra.mxu0 %v247
    %268 = vmatprep.subr.bf16.mxu0 0
    %269 = vmatpush1.bf16.msra.mxu0 %v248
    %270 = vmatprep.subr.bf16.mxu0 0
    %271 = vmatpush1.bf16.msra.mxu0 %v249
    %272 = vmatprep.subr.bf16.mxu0 0
    %273 = vmatpush1.bf16.msra.mxu0 %v250
    %274 = vmatprep.subr.bf16.mxu0 0
    %275 = vmatpush1.bf16.msra.mxu0 %v251
    %276 = vmatprep.subr.bf16.mxu0 0
    %277 = vmatpush1.bf16.msra.mxu0 0
    %278 = vmatprep.subr.bf16.mxu0 0
    %279 = vmatpush1.bf16.msra.mxu0 0
    %280 = vmatprep.subr.bf16.mxu0 0
    %281 = vmatpush1.bf16.msra.mxu0 0
    %282 = vmatprep.subr.bf16.mxu0 0
    %283 = vmatpush1.bf16.msra.mxu0 0
    %284 = vmatprep.subr.bf16.mxu0 0
    %285 = vmatpush1.bf16.msra.mxu0 0
    %286 = vmatprep.subr.bf16.mxu0 0
    %287 = vmatpush1.bf16.msra.mxu0 0
    %288 = vmatprep.subr.bf16.mxu0 0
    %289 = vmatpush1.bf16.msra.mxu0 0
    %290 = vmatprep.subr.bf16.mxu0 0
    %291 = vmatpush1.bf16.msra.mxu0 0
    %292 = vmatprep.mubr.bf16.mxu0 0
    %293 = vmatmul.mubr.bf16.gmra.mrb[0].mxu0 %v189
    %v294 = vpop.f32.mrb[0].mxu0
    %v295 = vadd.f32 %v210, %v294
    %v296 = vpop.f32.mrb[0].mxu0
    %v297 = vpop.f32.mrb[0].mxu0
    %v298 = vadd.f32 %v210, %v297
    %v299 = vpop.f32.mrb[0].mxu0
    %300 = vdwg.mxu0
    %v301 = vld [vmem:[#allocation5] sm:$0xf]
    %v302 = vld [vmem:[#allocation5 + $0x4] sm:$0xf]
    %v303 = vpack.c.bf16 %v298, %v295
    %v306 = vunpack.c.l.b16 %v301
    %v307 = vunpack.c.l.b16 %v302
    %v308 = vpack.c.b16 %v307, %v306
    %vm309 = vcmask 130048
    %v311 = vsel %vm309, %v308, 0
    %313 = vmatprep.subr.bf16.mxu0 0
    %314 = vmatpush1.bf16.msra.mxu0 %v303
    %315 = vmatprep.subr.bf16.mxu0 0
    %316 = vmatpush1.bf16.msra.mxu0 0
    %317 = vmatprep.subr.bf16.mxu0 0
    %318 = vmatpush1.bf16.msra.mxu0 0
    %319 = vmatprep.subr.bf16.mxu0 0
    %320 = vmatpush1.bf16.msra.mxu0 0
    %321 = vmatprep.subr.bf16.mxu0 0
    %322 = vmatpush1.bf16.msra.mxu0 0
    %323 = vmatprep.subr.bf16.mxu0 0
    %324 = vmatpush1.bf16.msra.mxu0 0
    %325 = vmatprep.subr.bf16.mxu0 0
    %326 = vmatpush1.bf16.msra.mxu0 0
    %327 = vmatprep.subr.bf16.mxu0 0
    %328 = vmatpush1.bf16.msra.mxu0 0
    %329 = vmatprep.subr.bf16.mxu0 0
    %330 = vmatpush1.bf16.msra.mxu0 0
    %331 = vmatprep.subr.bf16.mxu0 0
    %332 = vmatpush1.bf16.msra.mxu0 0
    %333 = vmatprep.subr.bf16.mxu0 0
    %334 = vmatpush1.bf16.msra.mxu0 0
    %335 = vmatprep.subr.bf16.mxu0 0
    %336 = vmatpush1.bf16.msra.mxu0 0
    %337 = vmatprep.subr.bf16.mxu0 0
    %338 = vmatpush1.bf16.msra.mxu0 0
    %339 = vmatprep.subr.bf16.mxu0 0
    %340 = vmatpush1.bf16.msra.mxu0 0
    %341 = vmatprep.subr.bf16.mxu0 0
    %342 = vmatpush1.bf16.msra.mxu0 0
    %343 = vmatprep.subr.bf16.mxu0 0
    %344 = vmatpush1.bf16.msra.mxu0 0
    %345 = vmatprep.mubr.bf16.mxu0 0
    %346 = vmatmul.mubr.bf16.gmra.mrb[0].mxu0 %v311
    %v347 = vpop.f32.mrb[0].mxu0
    %v348 = vadd.f32 0.0, %v347
    %v349 = vpop.f32.mrb[0].mxu0
    %v350 = vpop.f32.mrb[0].mxu0
    %v351 = vadd.f32 0.0, %v350
    %v352 = vpop.f32.mrb[0].mxu0
    %353 = vdwg.mxu0
    %v354 = vpack.c.bf16 %v351, %v348
    %v355 = vld [vmem:[#allocation8] sm:$0xff]
    %v356 = vld [vmem:[#allocation8 + $0x8] sm:$0xf]
    %v357 = vld [vmem:[#allocation8 + $0xc] sm:$0xff]
    %v358 = vld [vmem:[#allocation8 + $0x14] sm:$0xf]
    %v359 = vld [vmem:[#allocation8 + $0x18] sm:$0xff]
    %v360 = vld [vmem:[#allocation8 + $0x20] sm:$0xf]
    %v361 = vld [vmem:[#allocation8 + $0x24] sm:$0xff]
    %v362 = vld [vmem:[#allocation8 + $0x2c] sm:$0xf]
    %v363 = vld [vmem:[#allocation8 + $0x30] sm:$0xff]
    %v364 = vld [vmem:[#allocation8 + $0x38] sm:$0xf]
    %v365 = vld [vmem:[#allocation8 + $0x3c] sm:$0xff]
    %v366 = vld [vmem:[#allocation8 + $0x44] sm:$0xf]
    %v367 = vld [vmem:[#allocation8 + $0x48] sm:$0xff]
    %v368 = vld [vmem:[#allocation8 + $0x50] sm:$0xf]
    %v369 = vld [vmem:[#allocation8 + $0x54] sm:$0xff]
    %v370 = vld [vmem:[#allocation8 + $0x5c] sm:$0xf]
    %v371 = vld [vmem:[#allocation8 + $0x60] sm:$0xff]
    %v372 = vld [vmem:[#allocation8 + $0x68] sm:$0xf]
    %v373 = vld [vmem:[#allocation8 + $0x6c] sm:$0xff]
    %v374 = vld [vmem:[#allocation8 + $0x74] sm:$0xf]
    %v375 = vld [vmem:[#allocation8 + $0x78] sm:$0xff]
    %v376 = vld [vmem:[#allocation8 + $0x80] sm:$0xf]
    %v377 = vld [vmem:[#allocation8 + $0x84] sm:$0xff]
    %v378 = vld [vmem:[#allocation8 + $0x8c] sm:$0xf]
    %v379 = vld [vmem:[#allocation8 + $0x90] sm:$0xff]
    %v380 = vld [vmem:[#allocation8 + $0x98] sm:$0xf]
    %v381 = vld [vmem:[#allocation8 + $0x9c] sm:$0xff]
    %v382 = vld [vmem:[#allocation8 + $0xa4] sm:$0xf]
    %v383 = vld [vmem:[#allocation8 + $0xa8] sm:$0xff]
    %v384 = vld [vmem:[#allocation8 + $0xb0] sm:$0xf]
    %v385 = vld [vmem:[#allocation8 + $0xb4] sm:$0xff]
    %v386 = vld [vmem:[#allocation8 + $0xbc] sm:$0xf]
    %v419 = vunpack.c.l.b16 %v355
    %v420 = vunpack.c.h.b16 %v355
    %v421 = vunpack.c.l.b16 %v356
    %v422 = vunpack.c.l.b16 %v357
    %v423 = vunpack.c.h.b16 %v357
    %v424 = vunpack.c.l.b16 %v358
    %v425 = vunpack.c.l.b16 %v359
    %v426 = vunpack.c.h.b16 %v359
    %v427 = vunpack.c.l.b16 %v360
    %v428 = vunpack.c.l.b16 %v361
    %v429 = vunpack.c.h.b16 %v361
    %v430 = vunpack.c.l.b16 %v362
    %v431 = vunpack.c.l.b16 %v363
    %v432 = vunpack.c.h.b16 %v363
    %v433 = vunpack.c.l.b16 %v364
    %v434 = vunpack.c.l.b16 %v365
    %v435 = vunpack.c.h.b16 %v365
    %v436 = vunpack.c.l.b16 %v366
    %v437 = vunpack.c.l.b16 %v367
    %v438 = vunpack.c.h.b16 %v367
    %v439 = vunpack.c.l.b16 %v368
    %v440 = vunpack.c.l.b16 %v369
    %v441 = vunpack.c.h.b16 %v369
    %v442 = vunpack.c.l.b16 %v370
    %v443 = vunpack.c.l.b16 %v371
    %v444 = vunpack.c.h.b16 %v371
    %v445 = vunpack.c.l.b16 %v372
    %v446 = vunpack.c.l.b16 %v373
    %v447 = vunpack.c.h.b16 %v373
    %v448 = vunpack.c.l.b16 %v374
    %v449 = vunpack.c.l.b16 %v375
    %v450 = vunpack.c.h.b16 %v375
    %v451 = vunpack.c.l.b16 %v376
    %v452 = vunpack.c.l.b16 %v377
    %v453 = vunpack.c.h.b16 %v377
    %v454 = vunpack.c.l.b16 %v378
    %v455 = vunpack.c.l.b16 %v379
    %v456 = vunpack.c.h.b16 %v379
    %v457 = vunpack.c.l.b16 %v380
    %v458 = vunpack.c.l.b16 %v381
    %v459 = vunpack.c.h.b16 %v381
    %v460 = vunpack.c.l.b16 %v382
    %v461 = vunpack.c.l.b16 %v383
    %v462 = vunpack.c.h.b16 %v383
    %v463 = vunpack.c.l.b16 %v384
    %v464 = vunpack.c.l.b16 %v385
    %v465 = vunpack.c.h.b16 %v385
    %v466 = vunpack.c.l.b16 %v386
    %v467 = vpack.c.b16 %v422, %v419
    %v468 = vpack.c.b16 %v423, %v420
    %v469 = vpack.c.b16 %v424, %v421
    %v470 = vpack.c.b16 %v428, %v425
    %v471 = vpack.c.b16 %v429, %v426
    %v472 = vpack.c.b16 %v430, %v427
    %v473 = vpack.c.b16 %v434, %v431
    %v474 = vpack.c.b16 %v435, %v432
    %v475 = vpack.c.b16 %v436, %v433
    %v476 = vpack.c.b16 %v440, %v437
    %v477 = vpack.c.b16 %v441, %v438
    %v478 = vpack.c.b16 %v442, %v439
    %v479 = vpack.c.b16 %v446, %v443
    %v480 = vpack.c.b16 %v447, %v444
    %v481 = vpack.c.b16 %v448, %v445
    %v482 = vpack.c.b16 %v452, %v449
    %v483 = vpack.c.b16 %v453, %v450
    %v484 = vpack.c.b16 %v454, %v451
    %v485 = vpack.c.b16 %v458, %v455
    %v486 = vpack.c.b16 %v459, %v456
    %v487 = vpack.c.b16 %v460, %v457
    %v488 = vpack.c.b16 %v464, %v461
    %v489 = vpack.c.b16 %v465, %v462
    %v490 = vpack.c.b16 %v466, %v463
    %515 = vmatprep.subr.bf16.mxu0 %v468
    %516 = vmatpush1.bf16.msra.mxu0 %v467
    %517 = vmatprep.subr.bf16.mxu0 %v471
    %518 = vmatpush1.bf16.msra.mxu0 %v470
    %519 = vmatprep.subr.bf16.mxu0 %v474
    %520 = vmatpush1.bf16.msra.mxu0 %v473
    %521 = vmatprep.subr.bf16.mxu0 %v477
    %522 = vmatpush1.bf16.msra.mxu0 %v476
    %523 = vmatprep.subr.bf16.mxu0 %v480
    %524 = vmatpush1.bf16.msra.mxu0 %v479
    %525 = vmatprep.subr.bf16.mxu0 %v483
    %526 = vmatpush1.bf16.msra.mxu0 %v482
    %527 = vmatprep.subr.bf16.mxu0 %v486
    %528 = vmatpush1.bf16.msra.mxu0 %v485
    %529 = vmatprep.subr.bf16.mxu0 %v489
    %530 = vmatpush1.bf16.msra.mxu0 %v488
    %531 = vmatprep.subr.bf16.mxu0 0
    %532 = vmatpush1.bf16.msra.mxu0 0
    %533 = vmatprep.subr.bf16.mxu0 0
    %534 = vmatpush1.bf16.msra.mxu0 0
    %535 = vmatprep.subr.bf16.mxu0 0
    %536 = vmatpush1.bf16.msra.mxu0 0
    %537 = vmatprep.subr.bf16.mxu0 0
    %538 = vmatpush1.bf16.msra.mxu0 0
    %539 = vmatprep.subr.bf16.mxu0 0
    %540 = vmatpush1.bf16.msra.mxu0 0
    %541 = vmatprep.subr.bf16.mxu0 0
    %542 = vmatpush1.bf16.msra.mxu0 0
    %543 = vmatprep.subr.bf16.mxu0 0
    %544 = vmatpush1.bf16.msra.mxu0 0
    %545 = vmatprep.subr.bf16.mxu0 0
    %546 = vmatpush1.bf16.msra.mxu0 0
    %547 = vmatprep.mubr.bf16.mxu0 0
    %548 = vmatmul.mubr.bf16.gmra.mrb[0].mxu0 %v354
    %v549 = vpop.f32.mrb[0].mxu0
    %v550 = vadd.f32 0.0, %v549
    %v551 = vpop.f32.mrb[0].mxu0
    %v552 = vadd.f32 0.0, %v551
    %v553 = vpop.f32.mrb[0].mxu0
    %v554 = vadd.f32 0.0, %v553
    %v555 = vpop.f32.mrb[0].mxu0
    %v556 = vadd.f32 0.0, %v555
    %557 = vdwg.mxu0
    %558 = vmatprep.subr.bf16.mxu0 0
    %559 = vmatpush1.bf16.msra.mxu0 %v469
    %560 = vmatprep.subr.bf16.mxu0 0
    %561 = vmatpush1.bf16.msra.mxu0 %v472
    %562 = vmatprep.subr.bf16.mxu0 0
    %563 = vmatpush1.bf16.msra.mxu0 %v475
    %564 = vmatprep.subr.bf16.mxu0 0
    %565 = vmatpush1.bf16.msra.mxu0 %v478
    %566 = vmatprep.subr.bf16.mxu0 0
    %567 = vmatpush1.bf16.msra.mxu0 %v481
    %568 = vmatprep.subr.bf16.mxu0 0
    %569 = vmatpush1.bf16.msra.mxu0 %v484
    %570 = vmatprep.subr.bf16.mxu0 0
    %571 = vmatpush1.bf16.msra.mxu0 %v487
    %572 = vmatprep.subr.bf16.mxu0 0
    %573 = vmatpush1.bf16.msra.mxu0 %v490
    %574 = vmatprep.subr.bf16.mxu0 0
    %575 = vmatpush1.bf16.msra.mxu0 0
    %576 = vmatprep.subr.bf16.mxu0 0
    %577 = vmatpush1.bf16.msra.mxu0 0
    %578 = vmatprep.subr.bf16.mxu0 0
    %579 = vmatpush1.bf16.msra.mxu0 0
    %580 = vmatprep.subr.bf16.mxu0 0
    %581 = vmatpush1.bf16.msra.mxu0 0
    %582 = vmatprep.subr.bf16.mxu0 0
    %583 = vmatpush1.bf16.msra.mxu0 0
    %584 = vmatprep.subr.bf16.mxu0 0
    %585 = vmatpush1.bf16.msra.mxu0 0
    %586 = vmatprep.subr.bf16.mxu0 0
    %587 = vmatpush1.bf16.msra.mxu0 0
    %588 = vmatprep.subr.bf16.mxu0 0
    %589 = vmatpush1.bf16.msra.mxu0 0
    %590 = vmatprep.mubr.bf16.mxu0 0
    %591 = vmatmul.mubr.bf16.gmra.mrb[0].mxu0 %v354
    %v592 = vpop.f32.mrb[0].mxu0
    %v593 = vadd.f32 0.0, %v592
    %v594 = vpop.f32.mrb[0].mxu0
    %v595 = vpop.f32.mrb[0].mxu0
    %v596 = vadd.f32 0.0, %v595
    %v597 = vpop.f32.mrb[0].mxu0
    %598 = vdwg.mxu0
    %v599 = vld [vmem:[#allocation10] sm:$0xff]
    %v600 = vld [vmem:[#allocation10 + $0x8] sm:$0xf]
    %v601 = vld [vmem:[#allocation10 + $0xc] sm:$0xff]
    %v602 = vld [vmem:[#allocation10 + $0x14] sm:$0xf]
    %v603 = vld [vmem:[#allocation10 + $0x18] sm:$0xff]
    %v604 = vld [vmem:[#allocation10 + $0x20] sm:$0xf]
    %v605 = vld [vmem:[#allocation10 + $0x24] sm:$0xff]
    %v606 = vld [vmem:[#allocation10 + $0x2c] sm:$0xf]
    %v607 = vld [vmem:[#allocation10 + $0x30] sm:$0xff]
    %v608 = vld [vmem:[#allocation10 + $0x38] sm:$0xf]
    %v609 = vld [vmem:[#allocation10 + $0x3c] sm:$0xff]
    %v610 = vld [vmem:[#allocation10 + $0x44] sm:$0xf]
    %v611 = vld [vmem:[#allocation10 + $0x48] sm:$0xff]
    %v612 = vld [vmem:[#allocation10 + $0x50] sm:$0xf]
    %v613 = vld [vmem:[#allocation10 + $0x54] sm:$0xff]
    %v614 = vld [vmem:[#allocation10 + $0x5c] sm:$0xf]
    %v615 = vld [vmem:[#allocation10 + $0x60] sm:$0xff]
    %v616 = vld [vmem:[#allocation10 + $0x68] sm:$0xf]
    %v617 = vld [vmem:[#allocation10 + $0x6c] sm:$0xff]
    %v618 = vld [vmem:[#allocation10 + $0x74] sm:$0xf]
    %v619 = vld [vmem:[#allocation10 + $0x78] sm:$0xff]
    %v620 = vld [vmem:[#allocation10 + $0x80] sm:$0xf]
    %v621 = vld [vmem:[#allocation10 + $0x84] sm:$0xff]
    %v622 = vld [vmem:[#allocation10 + $0x8c] sm:$0xf]
    %v623 = vld [vmem:[#allocation10 + $0x90] sm:$0xff]
    %v624 = vld [vmem:[#allocation10 + $0x98] sm:$0xf]
    %v625 = vld [vmem:[#allocation10 + $0x9c] sm:$0xff]
    %v626 = vld [vmem:[#allocation10 + $0xa4] sm:$0xf]
    %v627 = vld [vmem:[#allocation10 + $0xa8] sm:$0xff]
    %v628 = vld [vmem:[#allocation10 + $0xb0] sm:$0xf]
    %v629 = vld [vmem:[#allocation10 + $0xb4] sm:$0xff]
    %v630 = vld [vmem:[#allocation10 + $0xbc] sm:$0xf]
    %v663 = vunpack.c.l.b16 %v599
    %v664 = vunpack.c.h.b16 %v599
    %v665 = vunpack.c.l.b16 %v600
    %v666 = vunpack.c.l.b16 %v601
    %v667 = vunpack.c.h.b16 %v601
    %v668 = vunpack.c.l.b16 %v602
    %v669 = vunpack.c.l.b16 %v603
    %v670 = vunpack.c.h.b16 %v603
    %v671 = vunpack.c.l.b16 %v604
    %v672 = vunpack.c.l.b16 %v605
    %v673 = vunpack.c.h.b16 %v605
    %v674 = vunpack.c.l.b16 %v606
    %v675 = vunpack.c.l.b16 %v607
    %v676 = vunpack.c.h.b16 %v607
    %v677 = vunpack.c.l.b16 %v608
    %v678 = vunpack.c.l.b16 %v609
    %v679 = vunpack.c.h.b16 %v609
    %v680 = vunpack.c.l.b16 %v610
    %v681 = vunpack.c.l.b16 %v611
    %v682 = vunpack.c.h.b16 %v611
    %v683 = vunpack.c.l.b16 %v612
    %v684 = vunpack.c.l.b16 %v613
    %v685 = vunpack.c.h.b16 %v613
    %v686 = vunpack.c.l.b16 %v614
    %v687 = vunpack.c.l.b16 %v615
    %v688 = vunpack.c.h.b16 %v615
    %v689 = vunpack.c.l.b16 %v616
    %v690 = vunpack.c.l.b16 %v617
    %v691 = vunpack.c.h.b16 %v617
    %v692 = vunpack.c.l.b16 %v618
    %v693 = vunpack.c.l.b16 %v619
    %v694 = vunpack.c.h.b16 %v619
    %v695 = vunpack.c.l.b16 %v620
    %v696 = vunpack.c.l.b16 %v621
    %v697 = vunpack.c.h.b16 %v621
    %v698 = vunpack.c.l.b16 %v622
    %v699 = vunpack.c.l.b16 %v623
    %v700 = vunpack.c.h.b16 %v623
    %v701 = vunpack.c.l.b16 %v624
    %v702 = vunpack.c.l.b16 %v625
    %v703 = vunpack.c.h.b16 %v625
    %v704 = vunpack.c.l.b16 %v626
    %v705 = vunpack.c.l.b16 %v627
    %v706 = vunpack.c.h.b16 %v627
    %v707 = vunpack.c.l.b16 %v628
    %v708 = vunpack.c.l.b16 %v629
    %v709 = vunpack.c.h.b16 %v629
    %v710 = vunpack.c.l.b16 %v630
    %v711 = vpack.c.b16 %v666, %v663
    %v712 = vpack.c.b16 %v667, %v664
    %v713 = vpack.c.b16 %v668, %v665
    %v714 = vpack.c.b16 %v672, %v669
    %v715 = vpack.c.b16 %v673, %v670
    %v716 = vpack.c.b16 %v674, %v671
    %v717 = vpack.c.b16 %v678, %v675
    %v718 = vpack.c.b16 %v679, %v676
    %v719 = vpack.c.b16 %v680, %v677
    %v720 = vpack.c.b16 %v684, %v681
    %v721 = vpack.c.b16 %v685, %v682
    %v722 = vpack.c.b16 %v686, %v683
    %v723 = vpack.c.b16 %v690, %v687
    %v724 = vpack.c.b16 %v691, %v688
    %v725 = vpack.c.b16 %v692, %v689
    %v726 = vpack.c.b16 %v696, %v693
    %v727 = vpack.c.b16 %v697, %v694
    %v728 = vpack.c.b16 %v698, %v695
    %v729 = vpack.c.b16 %v702, %v699
    %v730 = vpack.c.b16 %v703, %v700
    %v731 = vpack.c.b16 %v704, %v701
    %v732 = vpack.c.b16 %v708, %v705
    %v733 = vpack.c.b16 %v709, %v706
    %v734 = vpack.c.b16 %v710, %v707
    %759 = vmatprep.subr.bf16.mxu0 %v712
    %760 = vmatpush1.bf16.msra.mxu0 %v711
    %761 = vmatprep.subr.bf16.mxu0 %v715
    %762 = vmatpush1.bf16.msra.mxu0 %v714
    %763 = vmatprep.subr.bf16.mxu0 %v718
    %764 = vmatpush1.bf16.msra.mxu0 %v717
    %765 = vmatprep.subr.bf16.mxu0 %v721
    %766 = vmatpush1.bf16.msra.mxu0 %v720
    %767 = vmatprep.subr.bf16.mxu0 %v724
    %768 = vmatpush1.bf16.msra.mxu0 %v723
    %769 = vmatprep.subr.bf16.mxu0 %v727
    %770 = vmatpush1.bf16.msra.mxu0 %v726
    %771 = vmatprep.subr.bf16.mxu0 %v730
    %772 = vmatpush1.bf16.msra.mxu0 %v729
    %773 = vmatprep.subr.bf16.mxu0 %v733
    %774 = vmatpush1.bf16.msra.mxu0 %v732
    %775 = vmatprep.subr.bf16.mxu0 0
    %776 = vmatpush1.bf16.msra.mxu0 0
    %777 = vmatprep.subr.bf16.mxu0 0
    %778 = vmatpush1.bf16.msra.mxu0 0
    %779 = vmatprep.subr.bf16.mxu0 0
    %780 = vmatpush1.bf16.msra.mxu0 0
    %781 = vmatprep.subr.bf16.mxu0 0
    %782 = vmatpush1.bf16.msra.mxu0 0
    %783 = vmatprep.subr.bf16.mxu0 0
    %784 = vmatpush1.bf16.msra.mxu0 0
    %785 = vmatprep.subr.bf16.mxu0 0
    %786 = vmatpush1.bf16.msra.mxu0 0
    %787 = vmatprep.subr.bf16.mxu0 0
    %788 = vmatpush1.bf16.msra.mxu0 0
    %789 = vmatprep.subr.bf16.mxu0 0
    %790 = vmatpush1.bf16.msra.mxu0 0
    %791 = vmatprep.mubr.bf16.mxu0 0
    %792 = vmatmul.mubr.bf16.gmra.mrb[0].mxu0 %v189
    %v793 = vpop.f32.mrb[0].mxu0
    %v794 = vadd.f32 0.0, %v793
    %v795 = vpop.f32.mrb[0].mxu0
    %v796 = vadd.f32 0.0, %v795
    %v797 = vpop.f32.mrb[0].mxu0
    %v798 = vadd.f32 0.0, %v797
    %v799 = vpop.f32.mrb[0].mxu0
    %v800 = vadd.f32 0.0, %v799
    %801 = vdwg.mxu0
    %802 = vmatprep.subr.bf16.mxu0 0
    %803 = vmatpush1.bf16.msra.mxu0 %v713
    %804 = vmatprep.subr.bf16.mxu0 0
    %805 = vmatpush1.bf16.msra.mxu0 %v716
    %806 = vmatprep.subr.bf16.mxu0 0
    %807 = vmatpush1.bf16.msra.mxu0 %v719
    %808 = vmatprep.subr.bf16.mxu0 0
    %809 = vmatpush1.bf16.msra.mxu0 %v722
    %810 = vmatprep.subr.bf16.mxu0 0
    %811 = vmatpush1.bf16.msra.mxu0 %v725
    %812 = vmatprep.subr.bf16.mxu0 0
    %813 = vmatpush1.bf16.msra.mxu0 %v728
    %814 = vmatprep.subr.bf16.mxu0 0
    %815 = vmatpush1.bf16.msra.mxu0 %v731
    %816 = vmatprep.subr.bf16.mxu0 0
    %817 = vmatpush1.bf16.msra.mxu0 %v734
    %818 = vmatprep.subr.bf16.mxu0 0
    %819 = vmatpush1.bf16.msra.mxu0 0
    %820 = vmatprep.subr.bf16.mxu0 0
    %821 = vmatpush1.bf16.msra.mxu0 0
    %822 = vmatprep.subr.bf16.mxu0 0
    %823 = vmatpush1.bf16.msra.mxu0 0
    %824 = vmatprep.subr.bf16.mxu0 0
    %825 = vmatpush1.bf16.msra.mxu0 0
    %826 = vmatprep.subr.bf16.mxu0 0
    %827 = vmatpush1.bf16.msra.mxu0 0
    %828 = vmatprep.subr.bf16.mxu0 0
    %829 = vmatpush1.bf16.msra.mxu0 0
    %830 = vmatprep.subr.bf16.mxu0 0
    %831 = vmatpush1.bf16.msra.mxu0 0
    %832 = vmatprep.subr.bf16.mxu0 0
    %833 = vmatpush1.bf16.msra.mxu0 0
    %834 = vmatprep.mubr.bf16.mxu0 0
    %835 = vmatmul.mubr.bf16.gmra.mrb[0].mxu0 %v189
    %v836 = vpop.f32.mrb[0].mxu0
    %v837 = vadd.f32 0.0, %v836
    %v838 = vpop.f32.mrb[0].mxu0
    %v839 = vpop.f32.mrb[0].mxu0
    %v840 = vadd.f32 0.0, %v839
    %v841 = vpop.f32.mrb[0].mxu0
    %842 = vdwg.mxu0
    %v843 = vadd.f32 %v550, %v794
    %v844 = vadd.f32 %v552, %v796
    %v845 = vadd.f32 %v554, %v798
    %v846 = vadd.f32 %v556, %v800
    %v848 = vlaneseq
    %v849 = vshrl.u32 %v848, 7
    %v850 = vsub.s32 0, %v849
    %v851 = vrot.slane %v186, %v850
    %v852 = vlaneseq
    %v853 = vshrl.u32 %v852, 7
    %v854 = vsub.s32 1, %v853
    %v855 = vrot.slane %v186, %v854
    %v858 = vadd.f32 %v843, %v851
    %v859 = vadd.f32 %v844, %v855
    %v860 = vadd.f32 %v845, %v851
    %v861 = vadd.f32 %v846, %v855
    %v862 = vxor.u32 %v858, 2147483648
    %v863 = vxor.u32 %v859, 2147483648
    %v864 = vxor.u32 %v860, 2147483648
    %v865 = vxor.u32 %v861, 2147483648
    %v866 = vmul.f32 %v862, 1.442695
    %v867 = vpow.pop %v866
    %v868 = vmul.f32 %v863, 1.442695
    %v869 = vpow.pop %v868
    %v870 = vmul.f32 %v864, 1.442695
    %v871 = vpow.pop %v870
    %v872 = vmul.f32 %v865, 1.442695
    %v873 = vpow.pop %v872
    %v874 = vadd.f32 %v867, 1.0
    %v875 = vadd.f32 %v869, 1.0
    %v876 = vadd.f32 %v871, 1.0
    %v877 = vadd.f32 %v873, 1.0
    %v878 = vrcp.pop %v874
    %v879 = vmul.f32 1.0, %v878
    %v880 = vrcp.pop %v875
    %v881 = vmul.f32 1.0, %v880
    %v882 = vrcp.pop %v876
    %v883 = vmul.f32 1.0, %v882
    %v884 = vrcp.pop %v877
    %v885 = vmul.f32 1.0, %v884
    %v887 = vlaneseq
    %v888 = vshrl.u32 %v887, 7
    %v889 = vsub.s32 0, %v888
    %v890 = vrot.slane %v187, %v889
    %v892 = vadd.f32 %v593, %v890
    %v893 = vadd.f32 %v596, %v890
    %v895 = vlaneseq
    %v896 = vshrl.u32 %v895, 7
    %v897 = vsub.s32 0, %v896
    %v898 = vrot.slane %v188, %v897
    %v900 = vadd.f32 %v837, %v898
    %v901 = vadd.f32 %v840, %v898
    %v902 = vmul.f32 %v879, %v900
    %v903 = vmul.f32 %v883, %v901
    %v904 = vadd.f32 %v892, %v902
    %v905 = vadd.f32 %v893, %v903
    %v906 = vtanh.pop %v904
    %v907 = vtanh.pop %v905
    %v908 = vsub.f32 %v183, %v906
    %v909 = vsub.f32 %v184, %v907
    %v910 = vmul.f32 %v881, %v908
    %v911 = vmul.f32 %v885, %v909
    %v912 = vadd.f32 %v906, %v910
    %v913 = vadd.f32 %v907, %v911
    %v914 = vpack.c.bf16 %v913, %v912
    %915 = vmatprep.subr.bf16.mxu0 0
    %916 = vmatpush1.bf16.msra.mxu0 %v244
    %917 = vmatprep.subr.bf16.mxu0 0
    %918 = vmatpush1.bf16.msra.mxu0 %v245
    %919 = vmatprep.subr.bf16.mxu0 0
    %920 = vmatpush1.bf16.msra.mxu0 %v246
    %921 = vmatprep.subr.bf16.mxu0 0
    %922 = vmatpush1.bf16.msra.mxu0 %v247
    %923 = vmatprep.subr.bf16.mxu0 0
    %924 = vmatpush1.bf16.msra.mxu0 %v248
    %925 = vmatprep.subr.bf16.mxu0 0
    %926 = vmatpush1.bf16.msra.mxu0 %v249
    %927 = vmatprep.subr.bf16.mxu0 0
    %928 = vmatpush1.bf16.msra.mxu0 %v250
    %929 = vmatprep.subr.bf16.mxu0 0
    %930 = vmatpush1.bf16.msra.mxu0 %v251
    %931 = vmatprep.subr.bf16.mxu0 0
    %932 = vmatpush1.bf16.msra.mxu0 0
    %933 = vmatprep.subr.bf16.mxu0 0
    %934 = vmatpush1.bf16.msra.mxu0 0
    %935 = vmatprep.subr.bf16.mxu0 0
    %936 = vmatpush1.bf16.msra.mxu0 0
    %937 = vmatprep.subr.bf16.mxu0 0
    %938 = vmatpush1.bf16.msra.mxu0 0
    %939 = vmatprep.subr.bf16.mxu0 0
    %940 = vmatpush1.bf16.msra.mxu0 0
    %941 = vmatprep.subr.bf16.mxu0 0
    %942 = vmatpush1.bf16.msra.mxu0 0
    %943 = vmatprep.subr.bf16.mxu0 0
    %944 = vmatpush1.bf16.msra.mxu0 0
    %945 = vmatprep.subr.bf16.mxu0 0
    %946 = vmatpush1.bf16.msra.mxu0 0
    %947 = vmatprep.mubr.bf16.mxu0 0
    %948 = vmatmul.mubr.bf16.gmra.mrb[0].mxu0 %v914
    %v949 = vpop.f32.mrb[0].mxu0
    %v950 = vadd.f32 %v210, %v949
    %v951 = vpop.f32.mrb[0].mxu0
    %v952 = vpop.f32.mrb[0].mxu0
    %v953 = vadd.f32 %v210, %v952
    %v954 = vpop.f32.mrb[0].mxu0
    %955 = vdwg.mxu0
    %v956 = vpack.c.bf16 %v953, %v950
    %957 = vmatprep.subr.bf16.mxu0 0
    %958 = vmatpush1.bf16.msra.mxu0 %v956
    %959 = vmatprep.subr.bf16.mxu0 0
    %960 = vmatpush1.bf16.msra.mxu0 0
    %961 = vmatprep.subr.bf16.mxu0 0
    %962 = vmatpush1.bf16.msra.mxu0 0
    %963 = vmatprep.subr.bf16.mxu0 0
    %964 = vmatpush1.bf16.msra.mxu0 0
    %965 = vmatprep.subr.bf16.mxu0 0
    %966 = vmatpush1.bf16.msra.mxu0 0
    %967 = vmatprep.subr.bf16.mxu0 0
    %968 = vmatpush1.bf16.msra.mxu0 0
    %969 = vmatprep.subr.bf16.mxu0 0
    %970 = vmatpush1.bf16.msra.mxu0 0
    %971 = vmatprep.subr.bf16.mxu0 0
    %972 = vmatpush1.bf16.msra.mxu0 0
    %973 = vmatprep.subr.bf16.mxu0 0
    %974 = vmatpush1.bf16.msra.mxu0 0
    %975 = vmatprep.subr.bf16.mxu0 0
    %976 = vmatpush1.bf16.msra.mxu0 0
    %977 = vmatprep.subr.bf16.mxu0 0
    %978 = vmatpush1.bf16.msra.mxu0 0
    %979 = vmatprep.subr.bf16.mxu0 0
    %980 = vmatpush1.bf16.msra.mxu0 0
    %981 = vmatprep.subr.bf16.mxu0 0
    %982 = vmatpush1.bf16.msra.mxu0 0
    %983 = vmatprep.subr.bf16.mxu0 0
    %984 = vmatpush1.bf16.msra.mxu0 0
    %985 = vmatprep.subr.bf16.mxu0 0
    %986 = vmatpush1.bf16.msra.mxu0 0
    %987 = vmatprep.subr.bf16.mxu0 0
    %988 = vmatpush1.bf16.msra.mxu0 0
    %989 = vmatprep.mubr.bf16.mxu0 0
    %990 = vmatmul.mubr.bf16.gmra.mrb[0].mxu0 %v311
    %v991 = vpop.f32.mrb[0].mxu0
    %v992 = vadd.f32 0.0, %v991
    %v993 = vpop.f32.mrb[0].mxu0
    %v994 = vpop.f32.mrb[0].mxu0
    %v995 = vadd.f32 0.0, %v994
    %v996 = vpop.f32.mrb[0].mxu0
    %997 = vdwg.mxu0
    %v998 = vpack.c.bf16 %v995, %v992
    %999 = vmatprep.subr.bf16.mxu0 %v468
    %1000 = vmatpush1.bf16.msra.mxu0 %v467
    %1001 = vmatprep.subr.bf16.mxu0 %v471
    %1002 = vmatpush1.bf16.msra.mxu0 %v470
    %1003 = vmatprep.subr.bf16.mxu0 %v474
    %1004 = vmatpush1.bf16.msra.mxu0 %v473
    %1005 = vmatprep.subr.bf16.mxu0 %v477
    %1006 = vmatpush1.bf16.msra.mxu0 %v476
    %1007 = vmatprep.subr.bf16.mxu0 %v480
    %1008 = vmatpush1.bf16.msra.mxu0 %v479
    %1009 = vmatprep.subr.bf16.mxu0 %v483
    %1010 = vmatpush1.bf16.msra.mxu0 %v482
    %1011 = vmatprep.subr.bf16.mxu0 %v486
    %1012 = vmatpush1.bf16.msra.mxu0 %v485
    %1013 = vmatprep.subr.bf16.mxu0 %v489
    %1014 = vmatpush1.bf16.msra.mxu0 %v488
    %1015 = vmatprep.subr.bf16.mxu0 0
    %1016 = vmatpush1.bf16.msra.mxu0 0
    %1017 = vmatprep.subr.bf16.mxu0 0
    %1018 = vmatpush1.bf16.msra.mxu0 0
    %1019 = vmatprep.subr.bf16.mxu0 0
    %1020 = vmatpush1.bf16.msra.mxu0 0
    %1021 = vmatprep.subr.bf16.mxu0 0
    %1022 = vmatpush1.bf16.msra.mxu0 0
    %1023 = vmatprep.subr.bf16.mxu0 0
    %1024 = vmatpush1.bf16.msra.mxu0 0
    %1025 = vmatprep.subr.bf16.mxu0 0
    %1026 = vmatpush1.bf16.msra.mxu0 0
    %1027 = vmatprep.subr.bf16.mxu0 0
    %1028 = vmatpush1.bf16.msra.mxu0 0
    %1029 = vmatprep.subr.bf16.mxu0 0
    %1030 = vmatpush1.bf16.msra.mxu0 0
    %1031 = vmatprep.mubr.bf16.mxu0 0
    %1032 = vmatmul.mubr.bf16.gmra.mrb[0].mxu0 %v998
    %v1033 = vpop.f32.mrb[0].mxu0
    %v1034 = vadd.f32 0.0, %v1033
    %v1035 = vpop.f32.mrb[0].mxu0
    %v1036 = vadd.f32 0.0, %v1035
    %v1037 = vpop.f32.mrb[0].mxu0
    %v1038 = vadd.f32 0.0, %v1037
    %v1039 = vpop.f32.mrb[0].mxu0
    %v1040 = vadd.f32 0.0, %v1039
    %1041 = vdwg.mxu0
    %1042 = vmatprep.subr.bf16.mxu0 0
    %1043 = vmatpush1.bf16.msra.mxu0 %v469
    %1044 = vmatprep.subr.bf16.mxu0 0
    %1045 = vmatpush1.bf16.msra.mxu0 %v472
    %1046 = vmatprep.subr.bf16.mxu0 0
    %1047 = vmatpush1.bf16.msra.mxu0 %v475
    %1048 = vmatprep.subr.bf16.mxu0 0
    %1049 = vmatpush1.bf16.msra.mxu0 %v478
    %1050 = vmatprep.subr.bf16.mxu0 0
    %1051 = vmatpush1.bf16.msra.mxu0 %v481
    %1052 = vmatprep.subr.bf16.mxu0 0
    %1053 = vmatpush1.bf16.msra.mxu0 %v484
    %1054 = vmatprep.subr.bf16.mxu0 0
    %1055 = vmatpush1.bf16.msra.mxu0 %v487
    %1056 = vmatprep.subr.bf16.mxu0 0
    %1057 = vmatpush1.bf16.msra.mxu0 %v490
    %1058 = vmatprep.subr.bf16.mxu0 0
    %1059 = vmatpush1.bf16.msra.mxu0 0
    %1060 = vmatprep.subr.bf16.mxu0 0
    %1061 = vmatpush1.bf16.msra.mxu0 0
    %1062 = vmatprep.subr.bf16.mxu0 0
    %1063 = vmatpush1.bf16.msra.mxu0 0
    %1064 = vmatprep.subr.bf16.mxu0 0
    %1065 = vmatpush1.bf16.msra.mxu0 0
    %1066 = vmatprep.subr.bf16.mxu0 0
    %1067 = vmatpush1.bf16.msra.mxu0 0
    %1068 = vmatprep.subr.bf16.mxu0 0
    %1069 = vmatpush1.bf16.msra.mxu0 0
    %1070 = vmatprep.subr.bf16.mxu0 0
    %1071 = vmatpush1.bf16.msra.mxu0 0
    %1072 = vmatprep.subr.bf16.mxu0 0
    %1073 = vmatpush1.bf16.msra.mxu0 0
    %1074 = vmatprep.mubr.bf16.mxu0 0
    %1075 = vmatmul.mubr.bf16.gmra.mrb[0].mxu0 %v998
    %v1076 = vpop.f32.mrb[0].mxu0
    %v1077 = vadd.f32 0.0, %v1076
    %v1078 = vpop.f32.mrb[0].mxu0
    %v1079 = vpop.f32.mrb[0].mxu0
    %v1080 = vadd.f32 0.0, %v1079
    %v1081 = vpop.f32.mrb[0].mxu0
    %1082 = vdwg.mxu0
    %1083 = vmatprep.subr.bf16.mxu0 %v712
    %1084 = vmatpush1.bf16.msra.mxu0 %v711
    %1085 = vmatprep.subr.bf16.mxu0 %v715
    %1086 = vmatpush1.bf16.msra.mxu0 %v714
    %1087 = vmatprep.subr.bf16.mxu0 %v718
    %1088 = vmatpush1.bf16.msra.mxu0 %v717
    %1089 = vmatprep.subr.bf16.mxu0 %v721
    %1090 = vmatpush1.bf16.msra.mxu0 %v720
    %1091 = vmatprep.subr.bf16.mxu0 %v724
    %1092 = vmatpush1.bf16.msra.mxu0 %v723
    %1093 = vmatprep.subr.bf16.mxu0 %v727
    %1094 = vmatpush1.bf16.msra.mxu0 %v726
    %1095 = vmatprep.subr.bf16.mxu0 %v730
    %1096 = vmatpush1.bf16.msra.mxu0 %v729
    %1097 = vmatprep.subr.bf16.mxu0 %v733
    %1098 = vmatpush1.bf16.msra.mxu0 %v732
    %1099 = vmatprep.subr.bf16.mxu0 0
    %1100 = vmatpush1.bf16.msra.mxu0 0
    %1101 = vmatprep.subr.bf16.mxu0 0
    %1102 = vmatpush1.bf16.msra.mxu0 0
    %1103 = vmatprep.subr.bf16.mxu0 0
    %1104 = vmatpush1.bf16.msra.mxu0 0
    %1105 = vmatprep.subr.bf16.mxu0 0
    %1106 = vmatpush1.bf16.msra.mxu0 0
    %1107 = vmatprep.subr.bf16.mxu0 0
    %1108 = vmatpush1.bf16.msra.mxu0 0
    %1109 = vmatprep.subr.bf16.mxu0 0
    %1110 = vmatpush1.bf16.msra.mxu0 0
    %1111 = vmatprep.subr.bf16.mxu0 0
    %1112 = vmatpush1.bf16.msra.mxu0 0
    %1113 = vmatprep.subr.bf16.mxu0 0
    %1114 = vmatpush1.bf16.msra.mxu0 0
    %1115 = vmatprep.mubr.bf16.mxu0 0
    %1116 = vmatmul.mubr.bf16.gmra.mrb[0].mxu0 %v914
    %v1117 = vpop.f32.mrb[0].mxu0
    %v1118 = vadd.f32 0.0, %v1117
    %v1119 = vpop.f32.mrb[0].mxu0
    %v1120 = vadd.f32 0.0, %v1119
    %v1121 = vpop.f32.mrb[0].mxu0
    %v1122 = vadd.f32 0.0, %v1121
    %v1123 = vpop.f32.mrb[0].mxu0
    %v1124 = vadd.f32 0.0, %v1123
    %1125 = vdwg.mxu0
    %1126 = vmatprep.subr.bf16.mxu0 0
    %1127 = vmatpush1.bf16.msra.mxu0 %v713
    %1128 = vmatprep.subr.bf16.mxu0 0
    %1129 = vmatpush1.bf16.msra.mxu0 %v716
    %1130 = vmatprep.subr.bf16.mxu0 0
    %1131 = vmatpush1.bf16.msra.mxu0 %v719
    %1132 = vmatprep.subr.bf16.mxu0 0
    %1133 = vmatpush1.bf16.msra.mxu0 %v722
    %1134 = vmatprep.subr.bf16.mxu0 0
    %1135 = vmatpush1.bf16.msra.mxu0 %v725
    %1136 = vmatprep.subr.bf16.mxu0 0
    %1137 = vmatpush1.bf16.msra.mxu0 %v728
    %1138 = vmatprep.subr.bf16.mxu0 0
    %1139 = vmatpush1.bf16.msra.mxu0 %v731
    %1140 = vmatprep.subr.bf16.mxu0 0
    %1141 = vmatpush1.bf16.msra.mxu0 %v734
    %1142 = vmatprep.subr.bf16.mxu0 0
    %1143 = vmatpush1.bf16.msra.mxu0 0
    %1144 = vmatprep.subr.bf16.mxu0 0
    %1145 = vmatpush1.bf16.msra.mxu0 0
    %1146 = vmatprep.subr.bf16.mxu0 0
    %1147 = vmatpush1.bf16.msra.mxu0 0
    %1148 = vmatprep.subr.bf16.mxu0 0
    %1149 = vmatpush1.bf16.msra.mxu0 0
    %1150 = vmatprep.subr.bf16.mxu0 0
    %1151 = vmatpush1.bf16.msra.mxu0 0
    %1152 = vmatprep.subr.bf16.mxu0 0
    %1153 = vmatpush1.bf16.msra.mxu0 0
    %1154 = vmatprep.subr.bf16.mxu0 0
    %1155 = vmatpush1.bf16.msra.mxu0 0
    %1156 = vmatprep.subr.bf16.mxu0 0
    %1157 = vmatpush1.bf16.msra.mxu0 0
    %1158 = vmatprep.mubr.bf16.mxu0 0
    %1159 = vmatmul.mubr.bf16.gmra.mrb[0].mxu0 %v914
    %v1160 = vpop.f32.mrb[0].mxu0
    %v1161 = vadd.f32 0.0, %v1160
    %v1162 = vpop.f32.mrb[0].mxu0
    %v1163 = vpop.f32.mrb[0].mxu0
    %v1164 = vadd.f32 0.0, %v1163
    %v1165 = vpop.f32.mrb[0].mxu0
    %1166 = vdwg.mxu0
    %v1167 = vadd.f32 %v1034, %v1118
    %v1168 = vadd.f32 %v1036, %v1120
    %v1169 = vadd.f32 %v1038, %v1122
    %v1170 = vadd.f32 %v1040, %v1124
    %v1171 = vadd.f32 %v1167, %v851
    %v1172 = vadd.f32 %v1168, %v855
    %v1173 = vadd.f32 %v1169, %v851
    %v1174 = vadd.f32 %v1170, %v855
    %v1175 = vxor.u32 %v1171, 2147483648
    %v1176 = vxor.u32 %v1172, 2147483648
    %v1177 = vxor.u32 %v1173, 2147483648
    %v1178 = vxor.u32 %v1174, 2147483648
    %v1179 = vmul.f32 %v1175, 1.442695
    %v1180 = vpow.pop %v1179
    %v1181 = vmul.f32 %v1176, 1.442695
    %v1182 = vpow.pop %v1181
    %v1183 = vmul.f32 %v1177, 1.442695
    %v1184 = vpow.pop %v1183
    %v1185 = vmul.f32 %v1178, 1.442695
    %v1186 = vpow.pop %v1185
    %v1187 = vadd.f32 %v1180, 1.0
    %v1188 = vadd.f32 %v1182, 1.0
    %v1189 = vadd.f32 %v1184, 1.0
    %v1190 = vadd.f32 %v1186, 1.0
    %v1191 = vrcp.pop %v1187
    %v1192 = vmul.f32 1.0, %v1191
    %v1193 = vrcp.pop %v1188
    %v1194 = vmul.f32 1.0, %v1193
    %v1195 = vrcp.pop %v1189
    %v1196 = vmul.f32 1.0, %v1195
    %v1197 = vrcp.pop %v1190
    %v1198 = vmul.f32 1.0, %v1197
    %v1199 = vadd.f32 %v1077, %v890
    %v1200 = vadd.f32 %v1080, %v890
    %v1201 = vadd.f32 %v1161, %v898
    %v1202 = vadd.f32 %v1164, %v898
    %v1203 = vmul.f32 %v1192, %v1201
    %v1204 = vmul.f32 %v1196, %v1202
    %v1205 = vadd.f32 %v1199, %v1203
    %v1206 = vadd.f32 %v1200, %v1204
    %v1207 = vtanh.pop %v1205
    %v1208 = vtanh.pop %v1206
    %v1209 = vsub.f32 %v912, %v1207
    %v1210 = vsub.f32 %v913, %v1208
    %v1211 = vmul.f32 %v1194, %v1209
    %v1212 = vmul.f32 %v1198, %v1210
    %v1213 = vadd.f32 %v1207, %v1211
    %v1214 = vadd.f32 %v1208, %v1212
    %v1215 = vpack.c.bf16 %v1214, %v1213
    %1216 = vmatprep.subr.bf16.mxu0 0
    %1217 = vmatpush1.bf16.msra.mxu0 %v244
    %1218 = vmatprep.subr.bf16.mxu0 0
    %1219 = vmatpush1.bf16.msra.mxu0 %v245
    %1220 = vmatprep.subr.bf16.mxu0 0
    %1221 = vmatpush1.bf16.msra.mxu0 %v246
    %1222 = vmatprep.subr.bf16.mxu0 0
    %1223 = vmatpush1.bf16.msra.mxu0 %v247
    %1224 = vmatprep.subr.bf16.mxu0 0
    %1225 = vmatpush1.bf16.msra.mxu0 %v248
    %1226 = vmatprep.subr.bf16.mxu0 0
    %1227 = vmatpush1.bf16.msra.mxu0 %v249
    %1228 = vmatprep.subr.bf16.mxu0 0
    %1229 = vmatpush1.bf16.msra.mxu0 %v250
    %1230 = vmatprep.subr.bf16.mxu0 0
    %1231 = vmatpush1.bf16.msra.mxu0 %v251
    %1232 = vmatprep.subr.bf16.mxu0 0
    %1233 = vmatpush1.bf16.msra.mxu0 0
    %1234 = vmatprep.subr.bf16.mxu0 0
    %1235 = vmatpush1.bf16.msra.mxu0 0
    %1236 = vmatprep.subr.bf16.mxu0 0
    %1237 = vmatpush1.bf16.msra.mxu0 0
    %1238 = vmatprep.subr.bf16.mxu0 0
    %1239 = vmatpush1.bf16.msra.mxu0 0
    %1240 = vmatprep.subr.bf16.mxu0 0
    %1241 = vmatpush1.bf16.msra.mxu0 0
    %1242 = vmatprep.subr.bf16.mxu0 0
    %1243 = vmatpush1.bf16.msra.mxu0 0
    %1244 = vmatprep.subr.bf16.mxu0 0
    %1245 = vmatpush1.bf16.msra.mxu0 0
    %1246 = vmatprep.subr.bf16.mxu0 0
    %1247 = vmatpush1.bf16.msra.mxu0 0
    %1248 = vmatprep.mubr.bf16.mxu0 0
    %1249 = vmatmul.mubr.bf16.gmra.mrb[0].mxu0 %v1215
    %v1250 = vpop.f32.mrb[0].mxu0
    %v1251 = vadd.f32 %v210, %v1250
    %v1252 = vpop.f32.mrb[0].mxu0
    %v1253 = vpop.f32.mrb[0].mxu0
    %v1254 = vadd.f32 %v210, %v1253
    %v1255 = vpop.f32.mrb[0].mxu0
    %1256 = vdwg.mxu0
    %v1257 = vpack.c.bf16 %v1254, %v1251
    %1258 = vmatprep.subr.bf16.mxu0 0
    %1259 = vmatpush1.bf16.msra.mxu0 %v1257
    %1260 = vmatprep.subr.bf16.mxu0 0
    %1261 = vmatpush1.bf16.msra.mxu0 0
    %1262 = vmatprep.subr.bf16.mxu0 0
    %1263 = vmatpush1.bf16.msra.mxu0 0
    %1264 = vmatprep.subr.bf16.mxu0 0
    %1265 = vmatpush1.bf16.msra.mxu0 0
    %1266 = vmatprep.subr.bf16.mxu0 0
    %1267 = vmatpush1.bf16.msra.mxu0 0
    %1268 = vmatprep.subr.bf16.mxu0 0
    %1269 = vmatpush1.bf16.msra.mxu0 0
    %1270 = vmatprep.subr.bf16.mxu0 0
    %1271 = vmatpush1.bf16.msra.mxu0 0
    %1272 = vmatprep.subr.bf16.mxu0 0
    %1273 = vmatpush1.bf16.msra.mxu0 0
    %1274 = vmatprep.subr.bf16.mxu0 0
    %1275 = vmatpush1.bf16.msra.mxu0 0
    %1276 = vmatprep.subr.bf16.mxu0 0
    %1277 = vmatpush1.bf16.msra.mxu0 0
    %1278 = vmatprep.subr.bf16.mxu0 0
    %1279 = vmatpush1.bf16.msra.mxu0 0
    %1280 = vmatprep.subr.bf16.mxu0 0
    %1281 = vmatpush1.bf16.msra.mxu0 0
    %1282 = vmatprep.subr.bf16.mxu0 0
    %1283 = vmatpush1.bf16.msra.mxu0 0
    %1284 = vmatprep.subr.bf16.mxu0 0
    %1285 = vmatpush1.bf16.msra.mxu0 0
    %1286 = vmatprep.subr.bf16.mxu0 0
    %1287 = vmatpush1.bf16.msra.mxu0 0
    %1288 = vmatprep.subr.bf16.mxu0 0
    %1289 = vmatpush1.bf16.msra.mxu0 0
    %1290 = vmatprep.mubr.bf16.mxu0 0
    %1291 = vmatmul.mubr.bf16.gmra.mrb[0].mxu0 %v311
    %v1292 = vpop.f32.mrb[0].mxu0
    %v1293 = vadd.f32 0.0, %v1292
    %v1294 = vpop.f32.mrb[0].mxu0
    %v1295 = vpop.f32.mrb[0].mxu0
    %v1296 = vadd.f32 0.0, %v1295
    %v1297 = vpop.f32.mrb[0].mxu0
    %1298 = vdwg.mxu0
    %v1299 = vpack.c.bf16 %v1296, %v1293
    %1300 = vmatprep.subr.bf16.mxu0 %v468
    %1301 = vmatpush1.bf16.msra.mxu0 %v467
    %1302 = vmatprep.subr.bf16.mxu0 %v471
    %1303 = vmatpush1.bf16.msra.mxu0 %v470
    %1304 = vmatprep.subr.bf16.mxu0 %v474
    %1305 = vmatpush1.bf16.msra.mxu0 %v473
    %1306 = vmatprep.subr.bf16.mxu0 %v477
    %1307 = vmatpush1.bf16.msra.mxu0 %v476
    %1308 = vmatprep.subr.bf16.mxu0 %v480
    %1309 = vmatpush1.bf16.msra.mxu0 %v479
    %1310 = vmatprep.subr.bf16.mxu0 %v483
    %1311 = vmatpush1.bf16.msra.mxu0 %v482
    %1312 = vmatprep.subr.bf16.mxu0 %v486
    %1313 = vmatpush1.bf16.msra.mxu0 %v485
    %1314 = vmatprep.subr.bf16.mxu0 %v489
    %1315 = vmatpush1.bf16.msra.mxu0 %v488
    %1316 = vmatprep.subr.bf16.mxu0 0
    %1317 = vmatpush1.bf16.msra.mxu0 0
    %1318 = vmatprep.subr.bf16.mxu0 0
    %1319 = vmatpush1.bf16.msra.mxu0 0
    %1320 = vmatprep.subr.bf16.mxu0 0
    %1321 = vmatpush1.bf16.msra.mxu0 0
    %1322 = vmatprep.subr.bf16.mxu0 0
    %1323 = vmatpush1.bf16.msra.mxu0 0
    %1324 = vmatprep.subr.bf16.mxu0 0
    %1325 = vmatpush1.bf16.msra.mxu0 0
    %1326 = vmatprep.subr.bf16.mxu0 0
    %1327 = vmatpush1.bf16.msra.mxu0 0
    %1328 = vmatprep.subr.bf16.mxu0 0
    %1329 = vmatpush1.bf16.msra.mxu0 0
    %1330 = vmatprep.subr.bf16.mxu0 0
    %1331 = vmatpush1.bf16.msra.mxu0 0
    %1332 = vmatprep.mubr.bf16.mxu0 0
    %1333 = vmatmul.mubr.bf16.gmra.mrb[0].mxu0 %v1299
    %v1334 = vpop.f32.mrb[0].mxu0
    %v1335 = vadd.f32 0.0, %v1334
    %v1336 = vpop.f32.mrb[0].mxu0
    %v1337 = vadd.f32 0.0, %v1336
    %v1338 = vpop.f32.mrb[0].mxu0
    %v1339 = vadd.f32 0.0, %v1338
    %v1340 = vpop.f32.mrb[0].mxu0
    %v1341 = vadd.f32 0.0, %v1340
    %1342 = vdwg.mxu0
    %1343 = vmatprep.subr.bf16.mxu0 0
    %1344 = vmatpush1.bf16.msra.mxu0 %v469
    %1345 = vmatprep.subr.bf16.mxu0 0
    %1346 = vmatpush1.bf16.msra.mxu0 %v472
    %1347 = vmatprep.subr.bf16.mxu0 0
    %1348 = vmatpush1.bf16.msra.mxu0 %v475
    %1349 = vmatprep.subr.bf16.mxu0 0
    %1350 = vmatpush1.bf16.msra.mxu0 %v478
    %1351 = vmatprep.subr.bf16.mxu0 0
    %1352 = vmatpush1.bf16.msra.mxu0 %v481
    %1353 = vmatprep.subr.bf16.mxu0 0
    %1354 = vmatpush1.bf16.msra.mxu0 %v484
    %1355 = vmatprep.subr.bf16.mxu0 0
    %1356 = vmatpush1.bf16.msra.mxu0 %v487
    %1357 = vmatprep.subr.bf16.mxu0 0
    %1358 = vmatpush1.bf16.msra.mxu0 %v490
    %1359 = vmatprep.subr.bf16.mxu0 0
    %1360 = vmatpush1.bf16.msra.mxu0 0
    %1361 = vmatprep.subr.bf16.mxu0 0
    %1362 = vmatpush1.bf16.msra.mxu0 0
    %1363 = vmatprep.subr.bf16.mxu0 0
    %1364 = vmatpush1.bf16.msra.mxu0 0
    %1365 = vmatprep.subr.bf16.mxu0 0
    %1366 = vmatpush1.bf16.msra.mxu0 0
    %1367 = vmatprep.subr.bf16.mxu0 0
    %1368 = vmatpush1.bf16.msra.mxu0 0
    %1369 = vmatprep.subr.bf16.mxu0 0
    %1370 = vmatpush1.bf16.msra.mxu0 0
    %1371 = vmatprep.subr.bf16.mxu0 0
    %1372 = vmatpush1.bf16.msra.mxu0 0
    %1373 = vmatprep.subr.bf16.mxu0 0
    %1374 = vmatpush1.bf16.msra.mxu0 0
    %1375 = vmatprep.mubr.bf16.mxu0 0
    %1376 = vmatmul.mubr.bf16.gmra.mrb[0].mxu0 %v1299
    %v1377 = vpop.f32.mrb[0].mxu0
    %v1378 = vadd.f32 0.0, %v1377
    %v1379 = vpop.f32.mrb[0].mxu0
    %v1380 = vpop.f32.mrb[0].mxu0
    %v1381 = vadd.f32 0.0, %v1380
    %v1382 = vpop.f32.mrb[0].mxu0
    %1383 = vdwg.mxu0
    %1384 = vmatprep.subr.bf16.mxu0 %v712
    %1385 = vmatpush1.bf16.msra.mxu0 %v711
    %1386 = vmatprep.subr.bf16.mxu0 %v715
    %1387 = vmatpush1.bf16.msra.mxu0 %v714
    %1388 = vmatprep.subr.bf16.mxu0 %v718
    %1389 = vmatpush1.bf16.msra.mxu0 %v717
    %1390 = vmatprep.subr.bf16.mxu0 %v721
    %1391 = vmatpush1.bf16.msra.mxu0 %v720
    %1392 = vmatprep.subr.bf16.mxu0 %v724
    %1393 = vmatpush1.bf16.msra.mxu0 %v723
    %1394 = vmatprep.subr.bf16.mxu0 %v727
    %1395 = vmatpush1.bf16.msra.mxu0 %v726
    %1396 = vmatprep.subr.bf16.mxu0 %v730
    %1397 = vmatpush1.bf16.msra.mxu0 %v729
    %1398 = vmatprep.subr.bf16.mxu0 %v733
    %1399 = vmatpush1.bf16.msra.mxu0 %v732
    %1400 = vmatprep.subr.bf16.mxu0 0
    %1401 = vmatpush1.bf16.msra.mxu0 0
    %1402 = vmatprep.subr.bf16.mxu0 0
    %1403 = vmatpush1.bf16.msra.mxu0 0
    %1404 = vmatprep.subr.bf16.mxu0 0
    %1405 = vmatpush1.bf16.msra.mxu0 0
    %1406 = vmatprep.subr.bf16.mxu0 0
    %1407 = vmatpush1.bf16.msra.mxu0 0
    %1408 = vmatprep.subr.bf16.mxu0 0
    %1409 = vmatpush1.bf16.msra.mxu0 0
    %1410 = vmatprep.subr.bf16.mxu0 0
    %1411 = vmatpush1.bf16.msra.mxu0 0
    %1412 = vmatprep.subr.bf16.mxu0 0
    %1413 = vmatpush1.bf16.msra.mxu0 0
    %1414 = vmatprep.subr.bf16.mxu0 0
    %1415 = vmatpush1.bf16.msra.mxu0 0
    %1416 = vmatprep.mubr.bf16.mxu0 0
    %1417 = vmatmul.mubr.bf16.gmra.mrb[0].mxu0 %v1215
    %v1418 = vpop.f32.mrb[0].mxu0
    %v1419 = vadd.f32 0.0, %v1418
    %v1420 = vpop.f32.mrb[0].mxu0
    %v1421 = vadd.f32 0.0, %v1420
    %v1422 = vpop.f32.mrb[0].mxu0
    %v1423 = vadd.f32 0.0, %v1422
    %v1424 = vpop.f32.mrb[0].mxu0
    %v1425 = vadd.f32 0.0, %v1424
    %1426 = vdwg.mxu0
    %1427 = vmatprep.subr.bf16.mxu0 0
    %1428 = vmatpush1.bf16.msra.mxu0 %v713
    %1429 = vmatprep.subr.bf16.mxu0 0
    %1430 = vmatpush1.bf16.msra.mxu0 %v716
    %1431 = vmatprep.subr.bf16.mxu0 0
    %1432 = vmatpush1.bf16.msra.mxu0 %v719
    %1433 = vmatprep.subr.bf16.mxu0 0
    %1434 = vmatpush1.bf16.msra.mxu0 %v722
    %1435 = vmatprep.subr.bf16.mxu0 0
    %1436 = vmatpush1.bf16.msra.mxu0 %v725
    %1437 = vmatprep.subr.bf16.mxu0 0
    %1438 = vmatpush1.bf16.msra.mxu0 %v728
    %1439 = vmatprep.subr.bf16.mxu0 0
    %1440 = vmatpush1.bf16.msra.mxu0 %v731
    %1441 = vmatprep.subr.bf16.mxu0 0
    %1442 = vmatpush1.bf16.msra.mxu0 %v734
    %1443 = vmatprep.subr.bf16.mxu0 0
    %1444 = vmatpush1.bf16.msra.mxu0 0
    %1445 = vmatprep.subr.bf16.mxu0 0
    %1446 = vmatpush1.bf16.msra.mxu0 0
    %1447 = vmatprep.subr.bf16.mxu0 0
    %1448 = vmatpush1.bf16.msra.mxu0 0
    %1449 = vmatprep.subr.bf16.mxu0 0
    %1450 = vmatpush1.bf16.msra.mxu0 0
    %1451 = vmatprep.subr.bf16.mxu0 0
    %1452 = vmatpush1.bf16.msra.mxu0 0
    %1453 = vmatprep.subr.bf16.mxu0 0
    %1454 = vmatpush1.bf16.msra.mxu0 0
    %1455 = vmatprep.subr.bf16.mxu0 0
    %1456 = vmatpush1.bf16.msra.mxu0 0
    %1457 = vmatprep.subr.bf16.mxu0 0
    %1458 = vmatpush1.bf16.msra.mxu0 0
    %1459 = vmatprep.mubr.bf16.mxu0 0
    %1460 = vmatmul.mubr.bf16.gmra.mrb[0].mxu0 %v1215
    %v1461 = vpop.f32.mrb[0].mxu0
    %v1462 = vadd.f32 0.0, %v1461
    %v1463 = vpop.f32.mrb[0].mxu0
    %v1464 = vpop.f32.mrb[0].mxu0
    %v1465 = vadd.f32 0.0, %v1464
    %v1466 = vpop.f32.mrb[0].mxu0
    %1467 = vdwg.mxu0
    %v1468 = vadd.f32 %v1335, %v1419
    %v1469 = vadd.f32 %v1337, %v1421
    %v1470 = vadd.f32 %v1339, %v1423
    %v1471 = vadd.f32 %v1341, %v1425
    %v1472 = vadd.f32 %v1468, %v851
    %v1473 = vadd.f32 %v1469, %v855
    %v1474 = vadd.f32 %v1470, %v851
    %v1475 = vadd.f32 %v1471, %v855
    %v1476 = vxor.u32 %v1472, 2147483648
    %v1477 = vxor.u32 %v1473, 2147483648
    %v1478 = vxor.u32 %v1474, 2147483648
    %v1479 = vxor.u32 %v1475, 2147483648
    %v1480 = vmul.f32 %v1476, 1.442695
    %v1481 = vpow.pop %v1480
    %v1482 = vmul.f32 %v1477, 1.442695
    %v1483 = vpow.pop %v1482
    %v1484 = vmul.f32 %v1478, 1.442695
    %v1485 = vpow.pop %v1484
    %v1486 = vmul.f32 %v1479, 1.442695
    %v1487 = vpow.pop %v1486
    %v1488 = vadd.f32 %v1481, 1.0
    %v1489 = vadd.f32 %v1483, 1.0
    %v1490 = vadd.f32 %v1485, 1.0
    %v1491 = vadd.f32 %v1487, 1.0
    %v1492 = vrcp.pop %v1488
    %v1493 = vmul.f32 1.0, %v1492
    %v1494 = vrcp.pop %v1489
    %v1495 = vmul.f32 1.0, %v1494
    %v1496 = vrcp.pop %v1490
    %v1497 = vmul.f32 1.0, %v1496
    %v1498 = vrcp.pop %v1491
    %v1499 = vmul.f32 1.0, %v1498
    %v1500 = vadd.f32 %v1378, %v890
    %v1501 = vadd.f32 %v1381, %v890
    %v1502 = vadd.f32 %v1462, %v898
    %v1503 = vadd.f32 %v1465, %v898
    %v1504 = vmul.f32 %v1493, %v1502
    %v1505 = vmul.f32 %v1497, %v1503
    %v1506 = vadd.f32 %v1500, %v1504
    %v1507 = vadd.f32 %v1501, %v1505
    %v1508 = vtanh.pop %v1506
    %v1509 = vtanh.pop %v1507
    %v1510 = vsub.f32 %v1213, %v1508
    %v1511 = vsub.f32 %v1214, %v1509
    %v1512 = vmul.f32 %v1495, %v1510
    %v1513 = vmul.f32 %v1499, %v1511
    %v1514 = vadd.f32 %v1508, %v1512
    %v1515 = vadd.f32 %v1509, %v1513
    %v1516 = vpack.c.bf16 %v1515, %v1514
    %1517 = vmatprep.subr.bf16.mxu0 0
    %1518 = vmatpush1.bf16.msra.mxu0 %v244
    %1519 = vmatprep.subr.bf16.mxu0 0
    %1520 = vmatpush1.bf16.msra.mxu0 %v245
    %1521 = vmatprep.subr.bf16.mxu0 0
    %1522 = vmatpush1.bf16.msra.mxu0 %v246
    %1523 = vmatprep.subr.bf16.mxu0 0
    %1524 = vmatpush1.bf16.msra.mxu0 %v247
    %1525 = vmatprep.subr.bf16.mxu0 0
    %1526 = vmatpush1.bf16.msra.mxu0 %v248
    %1527 = vmatprep.subr.bf16.mxu0 0
    %1528 = vmatpush1.bf16.msra.mxu0 %v249
    %1529 = vmatprep.subr.bf16.mxu0 0
    %1530 = vmatpush1.bf16.msra.mxu0 %v250
    %1531 = vmatprep.subr.bf16.mxu0 0
    %1532 = vmatpush1.bf16.msra.mxu0 %v251
    %1533 = vmatprep.subr.bf16.mxu0 0
    %1534 = vmatpush1.bf16.msra.mxu0 0
    %1535 = vmatprep.subr.bf16.mxu0 0
    %1536 = vmatpush1.bf16.msra.mxu0 0
    %1537 = vmatprep.subr.bf16.mxu0 0
    %1538 = vmatpush1.bf16.msra.mxu0 0
    %1539 = vmatprep.subr.bf16.mxu0 0
    %1540 = vmatpush1.bf16.msra.mxu0 0
    %1541 = vmatprep.subr.bf16.mxu0 0
    %1542 = vmatpush1.bf16.msra.mxu0 0
    %1543 = vmatprep.subr.bf16.mxu0 0
    %1544 = vmatpush1.bf16.msra.mxu0 0
    %1545 = vmatprep.subr.bf16.mxu0 0
    %1546 = vmatpush1.bf16.msra.mxu0 0
    %1547 = vmatprep.subr.bf16.mxu0 0
    %1548 = vmatpush1.bf16.msra.mxu0 0
    %1549 = vmatprep.mubr.bf16.mxu0 0
    %1550 = vmatmul.mubr.bf16.gmra.mrb[0].mxu0 %v1516
    %v1551 = vpop.f32.mrb[0].mxu0
    %v1552 = vadd.f32 %v210, %v1551
    %v1553 = vpop.f32.mrb[0].mxu0
    %v1554 = vpop.f32.mrb[0].mxu0
    %v1555 = vadd.f32 %v210, %v1554
    %v1556 = vpop.f32.mrb[0].mxu0
    %1557 = vdwg.mxu0
    %v1558 = vpack.c.bf16 %v1555, %v1552
    %1559 = vmatprep.subr.bf16.mxu0 0
    %1560 = vmatpush1.bf16.msra.mxu0 %v1558
    %1561 = vmatprep.subr.bf16.mxu0 0
    %1562 = vmatpush1.bf16.msra.mxu0 0
    %1563 = vmatprep.subr.bf16.mxu0 0
    %1564 = vmatpush1.bf16.msra.mxu0 0
    %1565 = vmatprep.subr.bf16.mxu0 0
    %1566 = vmatpush1.bf16.msra.mxu0 0
    %1567 = vmatprep.subr.bf16.mxu0 0
    %1568 = vmatpush1.bf16.msra.mxu0 0
    %1569 = vmatprep.subr.bf16.mxu0 0
    %1570 = vmatpush1.bf16.msra.mxu0 0
    %1571 = vmatprep.subr.bf16.mxu0 0
    %1572 = vmatpush1.bf16.msra.mxu0 0
    %1573 = vmatprep.subr.bf16.mxu0 0
    %1574 = vmatpush1.bf16.msra.mxu0 0
    %1575 = vmatprep.subr.bf16.mxu0 0
    %1576 = vmatpush1.bf16.msra.mxu0 0
    %1577 = vmatprep.subr.bf16.mxu0 0
    %1578 = vmatpush1.bf16.msra.mxu0 0
    %1579 = vmatprep.subr.bf16.mxu0 0
    %1580 = vmatpush1.bf16.msra.mxu0 0
    %1581 = vmatprep.subr.bf16.mxu0 0
    %1582 = vmatpush1.bf16.msra.mxu0 0
    %1583 = vmatprep.subr.bf16.mxu0 0
    %1584 = vmatpush1.bf16.msra.mxu0 0
    %1585 = vmatprep.subr.bf16.mxu0 0
    %1586 = vmatpush1.bf16.msra.mxu0 0
    %1587 = vmatprep.subr.bf16.mxu0 0
    %1588 = vmatpush1.bf16.msra.mxu0 0
    %1589 = vmatprep.subr.bf16.mxu0 0
    %1590 = vmatpush1.bf16.msra.mxu0 0
    %1591 = vmatprep.mubr.bf16.mxu0 0
    %1592 = vmatmul.mubr.bf16.gmra.mrb[0].mxu0 %v311
    %v1593 = vpop.f32.mrb[0].mxu0
    %v1594 = vadd.f32 0.0, %v1593
    %v1595 = vpop.f32.mrb[0].mxu0
    %v1596 = vpop.f32.mrb[0].mxu0
    %v1597 = vadd.f32 0.0, %v1596
    %v1598 = vpop.f32.mrb[0].mxu0
    %1599 = vdwg.mxu0
    %v1600 = vpack.c.bf16 %v1597, %v1594
    %1601 = vmatprep.subr.bf16.mxu0 %v468
    %1602 = vmatpush1.bf16.msra.mxu0 %v467
    %1603 = vmatprep.subr.bf16.mxu0 %v471
    %1604 = vmatpush1.bf16.msra.mxu0 %v470
    %1605 = vmatprep.subr.bf16.mxu0 %v474
    %1606 = vmatpush1.bf16.msra.mxu0 %v473
    %1607 = vmatprep.subr.bf16.mxu0 %v477
    %1608 = vmatpush1.bf16.msra.mxu0 %v476
    %1609 = vmatprep.subr.bf16.mxu0 %v480
    %1610 = vmatpush1.bf16.msra.mxu0 %v479
    %1611 = vmatprep.subr.bf16.mxu0 %v483
    %1612 = vmatpush1.bf16.msra.mxu0 %v482
    %1613 = vmatprep.subr.bf16.mxu0 %v486
    %1614 = vmatpush1.bf16.msra.mxu0 %v485
    %1615 = vmatprep.subr.bf16.mxu0 %v489
    %1616 = vmatpush1.bf16.msra.mxu0 %v488
    %1617 = vmatprep.subr.bf16.mxu0 0
    %1618 = vmatpush1.bf16.msra.mxu0 0
    %1619 = vmatprep.subr.bf16.mxu0 0
    %1620 = vmatpush1.bf16.msra.mxu0 0
    %1621 = vmatprep.subr.bf16.mxu0 0
    %1622 = vmatpush1.bf16.msra.mxu0 0
    %1623 = vmatprep.subr.bf16.mxu0 0
    %1624 = vmatpush1.bf16.msra.mxu0 0
    %1625 = vmatprep.subr.bf16.mxu0 0
    %1626 = vmatpush1.bf16.msra.mxu0 0
    %1627 = vmatprep.subr.bf16.mxu0 0
    %1628 = vmatpush1.bf16.msra.mxu0 0
    %1629 = vmatprep.subr.bf16.mxu0 0
    %1630 = vmatpush1.bf16.msra.mxu0 0
    %1631 = vmatprep.subr.bf16.mxu0 0
    %1632 = vmatpush1.bf16.msra.mxu0 0
    %1633 = vmatprep.mubr.bf16.mxu0 0
    %1634 = vmatmul.mubr.bf16.gmra.mrb[0].mxu0 %v1600
    %v1635 = vpop.f32.mrb[0].mxu0
    %v1636 = vadd.f32 0.0, %v1635
    %v1637 = vpop.f32.mrb[0].mxu0
    %v1638 = vadd.f32 0.0, %v1637
    %v1639 = vpop.f32.mrb[0].mxu0
    %v1640 = vadd.f32 0.0, %v1639
    %v1641 = vpop.f32.mrb[0].mxu0
    %v1642 = vadd.f32 0.0, %v1641
    %1643 = vdwg.mxu0
    %1644 = vmatprep.subr.bf16.mxu0 0
    %1645 = vmatpush1.bf16.msra.mxu0 %v469
    %1646 = vmatprep.subr.bf16.mxu0 0
    %1647 = vmatpush1.bf16.msra.mxu0 %v472
    %1648 = vmatprep.subr.bf16.mxu0 0
    %1649 = vmatpush1.bf16.msra.mxu0 %v475
    %1650 = vmatprep.subr.bf16.mxu0 0
    %1651 = vmatpush1.bf16.msra.mxu0 %v478
    %1652 = vmatprep.subr.bf16.mxu0 0
    %1653 = vmatpush1.bf16.msra.mxu0 %v481
    %1654 = vmatprep.subr.bf16.mxu0 0
    %1655 = vmatpush1.bf16.msra.mxu0 %v484
    %1656 = vmatprep.subr.bf16.mxu0 0
    %1657 = vmatpush1.bf16.msra.mxu0 %v487
    %1658 = vmatprep.subr.bf16.mxu0 0
    %1659 = vmatpush1.bf16.msra.mxu0 %v490
    %1660 = vmatprep.subr.bf16.mxu0 0
    %1661 = vmatpush1.bf16.msra.mxu0 0
    %1662 = vmatprep.subr.bf16.mxu0 0
    %1663 = vmatpush1.bf16.msra.mxu0 0
    %1664 = vmatprep.subr.bf16.mxu0 0
    %1665 = vmatpush1.bf16.msra.mxu0 0
    %1666 = vmatprep.subr.bf16.mxu0 0
    %1667 = vmatpush1.bf16.msra.mxu0 0
    %1668 = vmatprep.subr.bf16.mxu0 0
    %1669 = vmatpush1.bf16.msra.mxu0 0
    %1670 = vmatprep.subr.bf16.mxu0 0
    %1671 = vmatpush1.bf16.msra.mxu0 0
    %1672 = vmatprep.subr.bf16.mxu0 0
    %1673 = vmatpush1.bf16.msra.mxu0 0
    %1674 = vmatprep.subr.bf16.mxu0 0
    %1675 = vmatpush1.bf16.msra.mxu0 0
    %1676 = vmatprep.mubr.bf16.mxu0 0
    %1677 = vmatmul.mubr.bf16.gmra.mrb[0].mxu0 %v1600
    %v1678 = vpop.f32.mrb[0].mxu0
    %v1679 = vadd.f32 0.0, %v1678
    %v1680 = vpop.f32.mrb[0].mxu0
    %v1681 = vpop.f32.mrb[0].mxu0
    %v1682 = vadd.f32 0.0, %v1681
    %v1683 = vpop.f32.mrb[0].mxu0
    %1684 = vdwg.mxu0
    %1685 = vmatprep.subr.bf16.mxu0 %v712
    %1686 = vmatpush1.bf16.msra.mxu0 %v711
    %1687 = vmatprep.subr.bf16.mxu0 %v715
    %1688 = vmatpush1.bf16.msra.mxu0 %v714
    %1689 = vmatprep.subr.bf16.mxu0 %v718
    %1690 = vmatpush1.bf16.msra.mxu0 %v717
    %1691 = vmatprep.subr.bf16.mxu0 %v721
    %1692 = vmatpush1.bf16.msra.mxu0 %v720
    %1693 = vmatprep.subr.bf16.mxu0 %v724
    %1694 = vmatpush1.bf16.msra.mxu0 %v723
    %1695 = vmatprep.subr.bf16.mxu0 %v727
    %1696 = vmatpush1.bf16.msra.mxu0 %v726
    %1697 = vmatprep.subr.bf16.mxu0 %v730
    %1698 = vmatpush1.bf16.msra.mxu0 %v729
    %1699 = vmatprep.subr.bf16.mxu0 %v733
    %1700 = vmatpush1.bf16.msra.mxu0 %v732
    %1701 = vmatprep.subr.bf16.mxu0 0
    %1702 = vmatpush1.bf16.msra.mxu0 0
    %1703 = vmatprep.subr.bf16.mxu0 0
    %1704 = vmatpush1.bf16.msra.mxu0 0
    %1705 = vmatprep.subr.bf16.mxu0 0
    %1706 = vmatpush1.bf16.msra.mxu0 0
    %1707 = vmatprep.subr.bf16.mxu0 0
    %1708 = vmatpush1.bf16.msra.mxu0 0
    %1709 = vmatprep.subr.bf16.mxu0 0
    %1710 = vmatpush1.bf16.msra.mxu0 0
    %1711 = vmatprep.subr.bf16.mxu0 0
    %1712 = vmatpush1.bf16.msra.mxu0 0
    %1713 = vmatprep.subr.bf16.mxu0 0
    %1714 = vmatpush1.bf16.msra.mxu0 0
    %1715 = vmatprep.subr.bf16.mxu0 0
    %1716 = vmatpush1.bf16.msra.mxu0 0
    %1717 = vmatprep.mubr.bf16.mxu0 0
    %1718 = vmatmul.mubr.bf16.gmra.mrb[0].mxu0 %v1516
    %v1719 = vpop.f32.mrb[0].mxu0
    %v1720 = vadd.f32 0.0, %v1719
    %v1721 = vpop.f32.mrb[0].mxu0
    %v1722 = vadd.f32 0.0, %v1721
    %v1723 = vpop.f32.mrb[0].mxu0
    %v1724 = vadd.f32 0.0, %v1723
    %v1725 = vpop.f32.mrb[0].mxu0
    %v1726 = vadd.f32 0.0, %v1725
    %1727 = vdwg.mxu0
    %1728 = vmatprep.subr.bf16.mxu0 0
    %1729 = vmatpush1.bf16.msra.mxu0 %v713
    %1730 = vmatprep.subr.bf16.mxu0 0
    %1731 = vmatpush1.bf16.msra.mxu0 %v716
    %1732 = vmatprep.subr.bf16.mxu0 0
    %1733 = vmatpush1.bf16.msra.mxu0 %v719
    %1734 = vmatprep.subr.bf16.mxu0 0
    %1735 = vmatpush1.bf16.msra.mxu0 %v722
    %1736 = vmatprep.subr.bf16.mxu0 0
    %1737 = vmatpush1.bf16.msra.mxu0 %v725
    %1738 = vmatprep.subr.bf16.mxu0 0
    %1739 = vmatpush1.bf16.msra.mxu0 %v728
    %1740 = vmatprep.subr.bf16.mxu0 0
    %1741 = vmatpush1.bf16.msra.mxu0 %v731
    %1742 = vmatprep.subr.bf16.mxu0 0
    %1743 = vmatpush1.bf16.msra.mxu0 %v734
    %1744 = vmatprep.subr.bf16.mxu0 0
    %1745 = vmatpush1.bf16.msra.mxu0 0
    %1746 = vmatprep.subr.bf16.mxu0 0
    %1747 = vmatpush1.bf16.msra.mxu0 0
    %1748 = vmatprep.subr.bf16.mxu0 0
    %1749 = vmatpush1.bf16.msra.mxu0 0
    %1750 = vmatprep.subr.bf16.mxu0 0
    %1751 = vmatpush1.bf16.msra.mxu0 0
    %1752 = vmatprep.subr.bf16.mxu0 0
    %1753 = vmatpush1.bf16.msra.mxu0 0
    %1754 = vmatprep.subr.bf16.mxu0 0
    %1755 = vmatpush1.bf16.msra.mxu0 0
    %1756 = vmatprep.subr.bf16.mxu0 0
    %1757 = vmatpush1.bf16.msra.mxu0 0
    %1758 = vmatprep.subr.bf16.mxu0 0
    %1759 = vmatpush1.bf16.msra.mxu0 0
    %1760 = vmatprep.mubr.bf16.mxu0 0
    %1761 = vmatmul.mubr.bf16.gmra.mrb[0].mxu0 %v1516
    %v1762 = vpop.f32.mrb[0].mxu0
    %v1763 = vadd.f32 0.0, %v1762
    %v1764 = vpop.f32.mrb[0].mxu0
    %v1765 = vpop.f32.mrb[0].mxu0
    %v1766 = vadd.f32 0.0, %v1765
    %v1767 = vpop.f32.mrb[0].mxu0
    %1768 = vdwg.mxu0
    %v1769 = vadd.f32 %v1636, %v1720
    %v1770 = vadd.f32 %v1638, %v1722
    %v1771 = vadd.f32 %v1640, %v1724
    %v1772 = vadd.f32 %v1642, %v1726
    %v1773 = vadd.f32 %v1769, %v851
    %v1774 = vadd.f32 %v1770, %v855
    %v1775 = vadd.f32 %v1771, %v851
    %v1776 = vadd.f32 %v1772, %v855
    %v1777 = vxor.u32 %v1773, 2147483648
    %v1778 = vxor.u32 %v1774, 2147483648
    %v1779 = vxor.u32 %v1775, 2147483648
    %v1780 = vxor.u32 %v1776, 2147483648
    %v1781 = vmul.f32 %v1777, 1.442695
    %v1782 = vpow.pop %v1781
    %v1783 = vmul.f32 %v1778, 1.442695
    %v1784 = vpow.pop %v1783
    %v1785 = vmul.f32 %v1779, 1.442695
    %v1786 = vpow.pop %v1785
    %v1787 = vmul.f32 %v1780, 1.442695
    %v1788 = vpow.pop %v1787
    %v1789 = vadd.f32 %v1782, 1.0
    %v1790 = vadd.f32 %v1784, 1.0
    %v1791 = vadd.f32 %v1786, 1.0
    %v1792 = vadd.f32 %v1788, 1.0
    %v1793 = vrcp.pop %v1789
    %v1794 = vmul.f32 1.0, %v1793
    %v1795 = vrcp.pop %v1790
    %v1796 = vmul.f32 1.0, %v1795
    %v1797 = vrcp.pop %v1791
    %v1798 = vmul.f32 1.0, %v1797
    %v1799 = vrcp.pop %v1792
    %v1800 = vmul.f32 1.0, %v1799
    %v1801 = vadd.f32 %v1679, %v890
    %v1802 = vadd.f32 %v1682, %v890
    %v1803 = vadd.f32 %v1763, %v898
    %v1804 = vadd.f32 %v1766, %v898
    %v1805 = vmul.f32 %v1794, %v1803
    %v1806 = vmul.f32 %v1798, %v1804
    %v1807 = vadd.f32 %v1801, %v1805
    %v1808 = vadd.f32 %v1802, %v1806
    %v1809 = vtanh.pop %v1807
    %v1810 = vtanh.pop %v1808
    %v1811 = vsub.f32 %v1514, %v1809
    %v1812 = vsub.f32 %v1515, %v1810
    %v1813 = vmul.f32 %v1796, %v1811
    %v1814 = vmul.f32 %v1800, %v1812
    %v1815 = vadd.f32 %v1809, %v1813
    %v1816 = vadd.f32 %v1810, %v1814
    %v1817 = vpack.c.bf16 %v1816, %v1815
    %1818 = vmatprep.subr.bf16.mxu0 0
    %1819 = vmatpush1.bf16.msra.mxu0 %v244
    %1820 = vmatprep.subr.bf16.mxu0 0
    %1821 = vmatpush1.bf16.msra.mxu0 %v245
    %1822 = vmatprep.subr.bf16.mxu0 0
    %1823 = vmatpush1.bf16.msra.mxu0 %v246
    %1824 = vmatprep.subr.bf16.mxu0 0
    %1825 = vmatpush1.bf16.msra.mxu0 %v247
    %1826 = vmatprep.subr.bf16.mxu0 0
    %1827 = vmatpush1.bf16.msra.mxu0 %v248
    %1828 = vmatprep.subr.bf16.mxu0 0
    %1829 = vmatpush1.bf16.msra.mxu0 %v249
    %1830 = vmatprep.subr.bf16.mxu0 0
    %1831 = vmatpush1.bf16.msra.mxu0 %v250
    %1832 = vmatprep.subr.bf16.mxu0 0
    %1833 = vmatpush1.bf16.msra.mxu0 %v251
    %1834 = vmatprep.subr.bf16.mxu0 0
    %1835 = vmatpush1.bf16.msra.mxu0 0
    %1836 = vmatprep.subr.bf16.mxu0 0
    %1837 = vmatpush1.bf16.msra.mxu0 0
    %1838 = vmatprep.subr.bf16.mxu0 0
    %1839 = vmatpush1.bf16.msra.mxu0 0
    %1840 = vmatprep.subr.bf16.mxu0 0
    %1841 = vmatpush1.bf16.msra.mxu0 0
    %1842 = vmatprep.subr.bf16.mxu0 0
    %1843 = vmatpush1.bf16.msra.mxu0 0
    %1844 = vmatprep.subr.bf16.mxu0 0
    %1845 = vmatpush1.bf16.msra.mxu0 0
    %1846 = vmatprep.subr.bf16.mxu0 0
    %1847 = vmatpush1.bf16.msra.mxu0 0
    %1848 = vmatprep.subr.bf16.mxu0 0
    %1849 = vmatpush1.bf16.msra.mxu0 0
    %1850 = vmatprep.mubr.bf16.mxu0 0
    %1851 = vmatmul.mubr.bf16.gmra.mrb[0].mxu0 %v1817
    %v1852 = vpop.f32.mrb[0].mxu0
    %v1853 = vadd.f32 %v210, %v1852
    %v1854 = vpop.f32.mrb[0].mxu0
    %v1855 = vpop.f32.mrb[0].mxu0
    %v1856 = vadd.f32 %v210, %v1855
    %v1857 = vpop.f32.mrb[0].mxu0
    %1858 = vdwg.mxu0
    %v1859 = vpack.c.bf16 %v1856, %v1853
    %1860 = vmatprep.subr.bf16.mxu0 0
    %1861 = vmatpush1.bf16.msra.mxu0 %v1859
    %1862 = vmatprep.subr.bf16.mxu0 0
    %1863 = vmatpush1.bf16.msra.mxu0 0
    %1864 = vmatprep.subr.bf16.mxu0 0
    %1865 = vmatpush1.bf16.msra.mxu0 0
    %1866 = vmatprep.subr.bf16.mxu0 0
    %1867 = vmatpush1.bf16.msra.mxu0 0
    %1868 = vmatprep.subr.bf16.mxu0 0
    %1869 = vmatpush1.bf16.msra.mxu0 0
    %1870 = vmatprep.subr.bf16.mxu0 0
    %1871 = vmatpush1.bf16.msra.mxu0 0
    %1872 = vmatprep.subr.bf16.mxu0 0
    %1873 = vmatpush1.bf16.msra.mxu0 0
    %1874 = vmatprep.subr.bf16.mxu0 0
    %1875 = vmatpush1.bf16.msra.mxu0 0
    %1876 = vmatprep.subr.bf16.mxu0 0
    %1877 = vmatpush1.bf16.msra.mxu0 0
    %1878 = vmatprep.subr.bf16.mxu0 0
    %1879 = vmatpush1.bf16.msra.mxu0 0
    %1880 = vmatprep.subr.bf16.mxu0 0
    %1881 = vmatpush1.bf16.msra.mxu0 0
    %1882 = vmatprep.subr.bf16.mxu0 0
    %1883 = vmatpush1.bf16.msra.mxu0 0
    %1884 = vmatprep.subr.bf16.mxu0 0
    %1885 = vmatpush1.bf16.msra.mxu0 0
    %1886 = vmatprep.subr.bf16.mxu0 0
    %1887 = vmatpush1.bf16.msra.mxu0 0
    %1888 = vmatprep.subr.bf16.mxu0 0
    %1889 = vmatpush1.bf16.msra.mxu0 0
    %1890 = vmatprep.subr.bf16.mxu0 0
    %1891 = vmatpush1.bf16.msra.mxu0 0
    %1892 = vmatprep.mubr.bf16.mxu0 0
    %1893 = vmatmul.mubr.bf16.gmra.mrb[0].mxu0 %v311
    %v1894 = vpop.f32.mrb[0].mxu0
    %v1895 = vadd.f32 0.0, %v1894
    %v1896 = vpop.f32.mrb[0].mxu0
    %v1897 = vpop.f32.mrb[0].mxu0
    %v1898 = vadd.f32 0.0, %v1897
    %v1899 = vpop.f32.mrb[0].mxu0
    %1900 = vdwg.mxu0
    %v1901 = vpack.c.bf16 %v1898, %v1895
    %1902 = vmatprep.subr.bf16.mxu0 %v468
    %1903 = vmatpush1.bf16.msra.mxu0 %v467
    %1904 = vmatprep.subr.bf16.mxu0 %v471
    %1905 = vmatpush1.bf16.msra.mxu0 %v470
    %1906 = vmatprep.subr.bf16.mxu0 %v474
    %1907 = vmatpush1.bf16.msra.mxu0 %v473
    %1908 = vmatprep.subr.bf16.mxu0 %v477
    %1909 = vmatpush1.bf16.msra.mxu0 %v476
    %1910 = vmatprep.subr.bf16.mxu0 %v480
    %1911 = vmatpush1.bf16.msra.mxu0 %v479
    %1912 = vmatprep.subr.bf16.mxu0 %v483
    %1913 = vmatpush1.bf16.msra.mxu0 %v482
    %1914 = vmatprep.subr.bf16.mxu0 %v486
    %1915 = vmatpush1.bf16.msra.mxu0 %v485
    %1916 = vmatprep.subr.bf16.mxu0 %v489
    %1917 = vmatpush1.bf16.msra.mxu0 %v488
    %1918 = vmatprep.subr.bf16.mxu0 0
    %1919 = vmatpush1.bf16.msra.mxu0 0
    %1920 = vmatprep.subr.bf16.mxu0 0
    %1921 = vmatpush1.bf16.msra.mxu0 0
    %1922 = vmatprep.subr.bf16.mxu0 0
    %1923 = vmatpush1.bf16.msra.mxu0 0
    %1924 = vmatprep.subr.bf16.mxu0 0
    %1925 = vmatpush1.bf16.msra.mxu0 0
    %1926 = vmatprep.subr.bf16.mxu0 0
    %1927 = vmatpush1.bf16.msra.mxu0 0
    %1928 = vmatprep.subr.bf16.mxu0 0
    %1929 = vmatpush1.bf16.msra.mxu0 0
    %1930 = vmatprep.subr.bf16.mxu0 0
    %1931 = vmatpush1.bf16.msra.mxu0 0
    %1932 = vmatprep.subr.bf16.mxu0 0
    %1933 = vmatpush1.bf16.msra.mxu0 0
    %1934 = vmatprep.mubr.bf16.mxu0 0
    %1935 = vmatmul.mubr.bf16.gmra.mrb[0].mxu0 %v1901
    %v1936 = vpop.f32.mrb[0].mxu0
    %v1937 = vadd.f32 0.0, %v1936
    %v1938 = vpop.f32.mrb[0].mxu0
    %v1939 = vadd.f32 0.0, %v1938
    %v1940 = vpop.f32.mrb[0].mxu0
    %v1941 = vadd.f32 0.0, %v1940
    %v1942 = vpop.f32.mrb[0].mxu0
    %v1943 = vadd.f32 0.0, %v1942
    %1944 = vdwg.mxu0
    %1945 = vmatprep.subr.bf16.mxu0 0
    %1946 = vmatpush1.bf16.msra.mxu0 %v469
    %1947 = vmatprep.subr.bf16.mxu0 0
    %1948 = vmatpush1.bf16.msra.mxu0 %v472
    %1949 = vmatprep.subr.bf16.mxu0 0
    %1950 = vmatpush1.bf16.msra.mxu0 %v475
    %1951 = vmatprep.subr.bf16.mxu0 0
    %1952 = vmatpush1.bf16.msra.mxu0 %v478
    %1953 = vmatprep.subr.bf16.mxu0 0
    %1954 = vmatpush1.bf16.msra.mxu0 %v481
    %1955 = vmatprep.subr.bf16.mxu0 0
    %1956 = vmatpush1.bf16.msra.mxu0 %v484
    %1957 = vmatprep.subr.bf16.mxu0 0
    %1958 = vmatpush1.bf16.msra.mxu0 %v487
    %1959 = vmatprep.subr.bf16.mxu0 0
    %1960 = vmatpush1.bf16.msra.mxu0 %v490
    %1961 = vmatprep.subr.bf16.mxu0 0
    %1962 = vmatpush1.bf16.msra.mxu0 0
    %1963 = vmatprep.subr.bf16.mxu0 0
    %1964 = vmatpush1.bf16.msra.mxu0 0
    %1965 = vmatprep.subr.bf16.mxu0 0
    %1966 = vmatpush1.bf16.msra.mxu0 0
    %1967 = vmatprep.subr.bf16.mxu0 0
    %1968 = vmatpush1.bf16.msra.mxu0 0
    %1969 = vmatprep.subr.bf16.mxu0 0
    %1970 = vmatpush1.bf16.msra.mxu0 0
    %1971 = vmatprep.subr.bf16.mxu0 0
    %1972 = vmatpush1.bf16.msra.mxu0 0
    %1973 = vmatprep.subr.bf16.mxu0 0
    %1974 = vmatpush1.bf16.msra.mxu0 0
    %1975 = vmatprep.subr.bf16.mxu0 0
    %1976 = vmatpush1.bf16.msra.mxu0 0
    %1977 = vmatprep.mubr.bf16.mxu0 0
    %1978 = vmatmul.mubr.bf16.gmra.mrb[0].mxu0 %v1901
    %v1979 = vpop.f32.mrb[0].mxu0
    %v1980 = vadd.f32 0.0, %v1979
    %v1981 = vpop.f32.mrb[0].mxu0
    %v1982 = vpop.f32.mrb[0].mxu0
    %v1983 = vadd.f32 0.0, %v1982
    %v1984 = vpop.f32.mrb[0].mxu0
    %1985 = vdwg.mxu0
    %1986 = vmatprep.subr.bf16.mxu0 %v712
    %1987 = vmatpush1.bf16.msra.mxu0 %v711
    %1988 = vmatprep.subr.bf16.mxu0 %v715
    %1989 = vmatpush1.bf16.msra.mxu0 %v714
    %1990 = vmatprep.subr.bf16.mxu0 %v718
    %1991 = vmatpush1.bf16.msra.mxu0 %v717
    %1992 = vmatprep.subr.bf16.mxu0 %v721
    %1993 = vmatpush1.bf16.msra.mxu0 %v720
    %1994 = vmatprep.subr.bf16.mxu0 %v724
    %1995 = vmatpush1.bf16.msra.mxu0 %v723
    %1996 = vmatprep.subr.bf16.mxu0 %v727
    %1997 = vmatpush1.bf16.msra.mxu0 %v726
    %1998 = vmatprep.subr.bf16.mxu0 %v730
    %1999 = vmatpush1.bf16.msra.mxu0 %v729
    %2000 = vmatprep.subr.bf16.mxu0 %v733
    %2001 = vmatpush1.bf16.msra.mxu0 %v732
    %2002 = vmatprep.subr.bf16.mxu0 0
    %2003 = vmatpush1.bf16.msra.mxu0 0
    %2004 = vmatprep.subr.bf16.mxu0 0
    %2005 = vmatpush1.bf16.msra.mxu0 0
    %2006 = vmatprep.subr.bf16.mxu0 0
    %2007 = vmatpush1.bf16.msra.mxu0 0
    %2008 = vmatprep.subr.bf16.mxu0 0
    %2009 = vmatpush1.bf16.msra.mxu0 0
    %2010 = vmatprep.subr.bf16.mxu0 0
    %2011 = vmatpush1.bf16.msra.mxu0 0
    %2012 = vmatprep.subr.bf16.mxu0 0
    %2013 = vmatpush1.bf16.msra.mxu0 0
    %2014 = vmatprep.subr.bf16.mxu0 0
    %2015 = vmatpush1.bf16.msra.mxu0 0
    %2016 = vmatprep.subr.bf16.mxu0 0
    %2017 = vmatpush1.bf16.msra.mxu0 0
    %2018 = vmatprep.mubr.bf16.mxu0 0
    %2019 = vmatmul.mubr.bf16.gmra.mrb[0].mxu0 %v1817
    %v2020 = vpop.f32.mrb[0].mxu0
    %v2021 = vadd.f32 0.0, %v2020
    %v2022 = vpop.f32.mrb[0].mxu0
    %v2023 = vadd.f32 0.0, %v2022
    %v2024 = vpop.f32.mrb[0].mxu0
    %v2025 = vadd.f32 0.0, %v2024
    %v2026 = vpop.f32.mrb[0].mxu0
    %v2027 = vadd.f32 0.0, %v2026
    %2028 = vdwg.mxu0
    %2029 = vmatprep.subr.bf16.mxu0 0
    %2030 = vmatpush1.bf16.msra.mxu0 %v713
    %2031 = vmatprep.subr.bf16.mxu0 0
    %2032 = vmatpush1.bf16.msra.mxu0 %v716
    %2033 = vmatprep.subr.bf16.mxu0 0
    %2034 = vmatpush1.bf16.msra.mxu0 %v719
    %2035 = vmatprep.subr.bf16.mxu0 0
    %2036 = vmatpush1.bf16.msra.mxu0 %v722
    %2037 = vmatprep.subr.bf16.mxu0 0
    %2038 = vmatpush1.bf16.msra.mxu0 %v725
    %2039 = vmatprep.subr.bf16.mxu0 0
    %2040 = vmatpush1.bf16.msra.mxu0 %v728
    %2041 = vmatprep.subr.bf16.mxu0 0
    %2042 = vmatpush1.bf16.msra.mxu0 %v731
    %2043 = vmatprep.subr.bf16.mxu0 0
    %2044 = vmatpush1.bf16.msra.mxu0 %v734
    %2045 = vmatprep.subr.bf16.mxu0 0
    %2046 = vmatpush1.bf16.msra.mxu0 0
    %2047 = vmatprep.subr.bf16.mxu0 0
    %2048 = vmatpush1.bf16.msra.mxu0 0
    %2049 = vmatprep.subr.bf16.mxu0 0
    %2050 = vmatpush1.bf16.msra.mxu0 0
    %2051 = vmatprep.subr.bf16.mxu0 0
    %2052 = vmatpush1.bf16.msra.mxu0 0
    %2053 = vmatprep.subr.bf16.mxu0 0
    %2054 = vmatpush1.bf16.msra.mxu0 0
    %2055 = vmatprep.subr.bf16.mxu0 0
    %2056 = vmatpush1.bf16.msra.mxu0 0
    %2057 = vmatprep.subr.bf16.mxu0 0
    %2058 = vmatpush1.bf16.msra.mxu0 0
    %2059 = vmatprep.subr.bf16.mxu0 0
    %2060 = vmatpush1.bf16.msra.mxu0 0
    %2061 = vmatprep.mubr.bf16.mxu0 0
    %2062 = vmatmul.mubr.bf16.gmra.mrb[0].mxu0 %v1817
    %v2063 = vpop.f32.mrb[0].mxu0
    %v2064 = vadd.f32 0.0, %v2063
    %v2065 = vpop.f32.mrb[0].mxu0
    %v2066 = vpop.f32.mrb[0].mxu0
    %v2067 = vadd.f32 0.0, %v2066
    %v2068 = vpop.f32.mrb[0].mxu0
    %2069 = vdwg.mxu0
    %v2070 = vadd.f32 %v1937, %v2021
    %v2071 = vadd.f32 %v1939, %v2023
    %v2072 = vadd.f32 %v1941, %v2025
    %v2073 = vadd.f32 %v1943, %v2027
    %v2074 = vadd.f32 %v2070, %v851
    %v2075 = vadd.f32 %v2071, %v855
    %v2076 = vadd.f32 %v2072, %v851
    %v2077 = vadd.f32 %v2073, %v855
    %v2078 = vxor.u32 %v2074, 2147483648
    %v2079 = vxor.u32 %v2075, 2147483648
    %v2080 = vxor.u32 %v2076, 2147483648
    %v2081 = vxor.u32 %v2077, 2147483648
    %v2082 = vmul.f32 %v2078, 1.442695
    %v2083 = vpow.pop %v2082
    %v2084 = vmul.f32 %v2079, 1.442695
    %v2085 = vpow.pop %v2084
    %v2086 = vmul.f32 %v2080, 1.442695
    %v2087 = vpow.pop %v2086
    %v2088 = vmul.f32 %v2081, 1.442695
    %v2089 = vpow.pop %v2088
    %v2090 = vadd.f32 %v2083, 1.0
    %v2091 = vadd.f32 %v2085, 1.0
    %v2092 = vadd.f32 %v2087, 1.0
    %v2093 = vadd.f32 %v2089, 1.0
    %v2094 = vrcp.pop %v2090
    %v2095 = vmul.f32 1.0, %v2094
    %v2096 = vrcp.pop %v2091
    %v2097 = vmul.f32 1.0, %v2096
    %v2098 = vrcp.pop %v2092
    %v2099 = vmul.f32 1.0, %v2098
    %v2100 = vrcp.pop %v2093
    %v2101 = vmul.f32 1.0, %v2100
    %v2102 = vadd.f32 %v1980, %v890
    %v2103 = vadd.f32 %v1983, %v890
    %v2104 = vadd.f32 %v2064, %v898
    %v2105 = vadd.f32 %v2067, %v898
    %v2106 = vmul.f32 %v2095, %v2104
    %v2107 = vmul.f32 %v2099, %v2105
    %v2108 = vadd.f32 %v2102, %v2106
    %v2109 = vadd.f32 %v2103, %v2107
    %v2110 = vtanh.pop %v2108
    %v2111 = vtanh.pop %v2109
    %v2112 = vsub.f32 %v1815, %v2110
    %v2113 = vsub.f32 %v1816, %v2111
    %v2114 = vmul.f32 %v2097, %v2112
    %v2115 = vmul.f32 %v2101, %v2113
    %v2116 = vadd.f32 %v2110, %v2114
    %v2117 = vadd.f32 %v2111, %v2115
    %v2118 = vld [vmem:[%s12] sm:$0x1]
    %v2119 = vld [vmem:[%s13] sm:$0x3]
    %v2120 = vld [vmem:[%s14] sm:$0x1]
    %v2121 = vld [vmem:[%s15] sm:$0x1]
    %v2122 = vpack.c.bf16 %v2117, %v2116
    %v2123 = vld [vmem:[#allocation11] sm:$0xf]
    %v2124 = vld [vmem:[#allocation11 + $0x4] sm:$0xf]
    %v2125 = vld [vmem:[#allocation11 + $0x8] sm:$0xf]
    %v2126 = vld [vmem:[#allocation11 + $0xc] sm:$0xf]
    %v2127 = vld [vmem:[#allocation11 + $0x10] sm:$0xf]
    %v2128 = vld [vmem:[#allocation11 + $0x14] sm:$0xf]
    %v2129 = vld [vmem:[#allocation11 + $0x18] sm:$0xf]
    %v2130 = vld [vmem:[#allocation11 + $0x1c] sm:$0xf]
    %v2131 = vld [vmem:[#allocation11 + $0x20] sm:$0xf]
    %v2132 = vld [vmem:[#allocation11 + $0x24] sm:$0xf]
    %v2133 = vld [vmem:[#allocation11 + $0x28] sm:$0xf]
    %v2134 = vld [vmem:[#allocation11 + $0x2c] sm:$0xf]
    %v2135 = vld [vmem:[#allocation11 + $0x30] sm:$0xf]
    %v2136 = vld [vmem:[#allocation11 + $0x34] sm:$0xf]
    %v2137 = vld [vmem:[#allocation11 + $0x38] sm:$0xf]
    %v2138 = vld [vmem:[#allocation11 + $0x3c] sm:$0xf]
    %v2140 = vlaneseq
    %v2141 = vshrl.u32 %v2140, 7
    %v2142 = vsub.s32 0, %v2141
    %v2143 = vrot.slane %v2118, %v2142
    %v2161 = vunpack.c.l.b16 %v2123
    %v2162 = vunpack.c.l.b16 %v2124
    %v2163 = vunpack.c.l.b16 %v2125
    %v2164 = vunpack.c.l.b16 %v2126
    %v2165 = vunpack.c.l.b16 %v2127
    %v2166 = vunpack.c.l.b16 %v2128
    %v2167 = vunpack.c.l.b16 %v2129
    %v2168 = vunpack.c.l.b16 %v2130
    %v2169 = vunpack.c.l.b16 %v2131
    %v2170 = vunpack.c.l.b16 %v2132
    %v2171 = vunpack.c.l.b16 %v2133
    %v2172 = vunpack.c.l.b16 %v2134
    %v2173 = vunpack.c.l.b16 %v2135
    %v2174 = vunpack.c.l.b16 %v2136
    %v2175 = vunpack.c.l.b16 %v2137
    %v2176 = vunpack.c.l.b16 %v2138
    %v2177 = vpack.c.b16 %v2162, %v2161
    %v2178 = vpack.c.b16 %v2164, %v2163
    %v2179 = vpack.c.b16 %v2166, %v2165
    %v2180 = vpack.c.b16 %v2168, %v2167
    %v2181 = vpack.c.b16 %v2170, %v2169
    %v2182 = vpack.c.b16 %v2172, %v2171
    %v2183 = vpack.c.b16 %v2174, %v2173
    %v2184 = vpack.c.b16 %v2176, %v2175
    %2193 = vmatprep.subr.bf16.mxu0 0
    %2194 = vmatpush1.bf16.msra.mxu0 %v2177
    %2195 = vmatprep.subr.bf16.mxu0 0
    %2196 = vmatpush1.bf16.msra.mxu0 %v2178
    %2197 = vmatprep.subr.bf16.mxu0 0
    %2198 = vmatpush1.bf16.msra.mxu0 %v2179
    %2199 = vmatprep.subr.bf16.mxu0 0
    %2200 = vmatpush1.bf16.msra.mxu0 %v2180
    %2201 = vmatprep.subr.bf16.mxu0 0
    %2202 = vmatpush1.bf16.msra.mxu0 %v2181
    %2203 = vmatprep.subr.bf16.mxu0 0
    %2204 = vmatpush1.bf16.msra.mxu0 %v2182
    %2205 = vmatprep.subr.bf16.mxu0 0
    %2206 = vmatpush1.bf16.msra.mxu0 %v2183
    %2207 = vmatprep.subr.bf16.mxu0 0
    %2208 = vmatpush1.bf16.msra.mxu0 %v2184
    %2209 = vmatprep.subr.bf16.mxu0 0
    %2210 = vmatpush1.bf16.msra.mxu0 0
    %2211 = vmatprep.subr.bf16.mxu0 0
    %2212 = vmatpush1.bf16.msra.mxu0 0
    %2213 = vmatprep.subr.bf16.mxu0 0
    %2214 = vmatpush1.bf16.msra.mxu0 0
    %2215 = vmatprep.subr.bf16.mxu0 0
    %2216 = vmatpush1.bf16.msra.mxu0 0
    %2217 = vmatprep.subr.bf16.mxu0 0
    %2218 = vmatpush1.bf16.msra.mxu0 0
    %2219 = vmatprep.subr.bf16.mxu0 0
    %2220 = vmatpush1.bf16.msra.mxu0 0
    %2221 = vmatprep.subr.bf16.mxu0 0
    %2222 = vmatpush1.bf16.msra.mxu0 0
    %2223 = vmatprep.subr.bf16.mxu0 0
    %2224 = vmatpush1.bf16.msra.mxu0 0
    %2225 = vmatprep.mubr.bf16.mxu0 0
    %2226 = vmatmul.mubr.bf16.gmra.mrb[0].mxu0 %v2122
    %v2227 = vpop.f32.mrb[0].mxu0
    %v2228 = vadd.f32 %v2143, %v2227
    %v2229 = vpop.f32.mrb[0].mxu0
    %v2230 = vpop.f32.mrb[0].mxu0
    %v2231 = vadd.f32 %v2143, %v2230
    %v2232 = vpop.f32.mrb[0].mxu0
    %2233 = vdwg.mxu0
    %v2234 = vpack.c.bf16 %v2231, %v2228
    %2235 = vmatprep.subr.bf16.mxu0 0
    %2236 = vmatpush1.bf16.msra.mxu0 %v2234
    %2237 = vmatprep.subr.bf16.mxu0 0
    %2238 = vmatpush1.bf16.msra.mxu0 0
    %2239 = vmatprep.subr.bf16.mxu0 0
    %2240 = vmatpush1.bf16.msra.mxu0 0
    %2241 = vmatprep.subr.bf16.mxu0 0
    %2242 = vmatpush1.bf16.msra.mxu0 0
    %2243 = vmatprep.subr.bf16.mxu0 0
    %2244 = vmatpush1.bf16.msra.mxu0 0
    %2245 = vmatprep.subr.bf16.mxu0 0
    %2246 = vmatpush1.bf16.msra.mxu0 0
    %2247 = vmatprep.subr.bf16.mxu0 0
    %2248 = vmatpush1.bf16.msra.mxu0 0
    %2249 = vmatprep.subr.bf16.mxu0 0
    %2250 = vmatpush1.bf16.msra.mxu0 0
    %2251 = vmatprep.subr.bf16.mxu0 0
    %2252 = vmatpush1.bf16.msra.mxu0 0
    %2253 = vmatprep.subr.bf16.mxu0 0
    %2254 = vmatpush1.bf16.msra.mxu0 0
    %2255 = vmatprep.subr.bf16.mxu0 0
    %2256 = vmatpush1.bf16.msra.mxu0 0
    %2257 = vmatprep.subr.bf16.mxu0 0
    %2258 = vmatpush1.bf16.msra.mxu0 0
    %2259 = vmatprep.subr.bf16.mxu0 0
    %2260 = vmatpush1.bf16.msra.mxu0 0
    %2261 = vmatprep.subr.bf16.mxu0 0
    %2262 = vmatpush1.bf16.msra.mxu0 0
    %2263 = vmatprep.subr.bf16.mxu0 0
    %2264 = vmatpush1.bf16.msra.mxu0 0
    %2265 = vmatprep.subr.bf16.mxu0 0
    %2266 = vmatpush1.bf16.msra.mxu0 0
    %2267 = vmatprep.mubr.bf16.mxu0 0
    %2268 = vmatmul.mubr.bf16.gmra.mrb[0].mxu0 %v311
    %v2269 = vpop.f32.mrb[0].mxu0
    %v2270 = vadd.f32 0.0, %v2269
    %v2271 = vpop.f32.mrb[0].mxu0
    %v2272 = vpop.f32.mrb[0].mxu0
    %v2273 = vadd.f32 0.0, %v2272
    %v2274 = vpop.f32.mrb[0].mxu0
    %2275 = vdwg.mxu0
    %v2276 = vpack.c.bf16 %v2273, %v2270
    %v2277 = vld [vmem:[#allocation13] sm:$0xff]
    %v2278 = vld [vmem:[#allocation13 + $0x8] sm:$0xf]
    %v2279 = vld [vmem:[#allocation13 + $0xc] sm:$0xff]
    %v2280 = vld [vmem:[#allocation13 + $0x14] sm:$0xf]
    %v2281 = vld [vmem:[#allocation13 + $0x18] sm:$0xff]
    %v2282 = vld [vmem:[#allocation13 + $0x20] sm:$0xf]
    %v2283 = vld [vmem:[#allocation13 + $0x24] sm:$0xff]
    %v2284 = vld [vmem:[#allocation13 + $0x2c] sm:$0xf]
    %v2285 = vld [vmem:[#allocation13 + $0x30] sm:$0xff]
    %v2286 = vld [vmem:[#allocation13 + $0x38] sm:$0xf]
    %v2287 = vld [vmem:[#allocation13 + $0x3c] sm:$0xff]
    %v2288 = vld [vmem:[#allocation13 + $0x44] sm:$0xf]
    %v2289 = vld [vmem:[#allocation13 + $0x48] sm:$0xff]
    %v2290 = vld [vmem:[#allocation13 + $0x50] sm:$0xf]
    %v2291 = vld [vmem:[#allocation13 + $0x54] sm:$0xff]
    %v2292 = vld [vmem:[#allocation13 + $0x5c] sm:$0xf]
    %v2293 = vld [vmem:[#allocation13 + $0x60] sm:$0xff]
    %v2294 = vld [vmem:[#allocation13 + $0x68] sm:$0xf]
    %v2295 = vld [vmem:[#allocation13 + $0x6c] sm:$0xff]
    %v2296 = vld [vmem:[#allocation13 + $0x74] sm:$0xf]
    %v2297 = vld [vmem:[#allocation13 + $0x78] sm:$0xff]
    %v2298 = vld [vmem:[#allocation13 + $0x80] sm:$0xf]
    %v2299 = vld [vmem:[#allocation13 + $0x84] sm:$0xff]
    %v2300 = vld [vmem:[#allocation13 + $0x8c] sm:$0xf]
    %v2301 = vld [vmem:[#allocation13 + $0x90] sm:$0xff]
    %v2302 = vld [vmem:[#allocation13 + $0x98] sm:$0xf]
    %v2303 = vld [vmem:[#allocation13 + $0x9c] sm:$0xff]
    %v2304 = vld [vmem:[#allocation13 + $0xa4] sm:$0xf]
    %v2305 = vld [vmem:[#allocation13 + $0xa8] sm:$0xff]
    %v2306 = vld [vmem:[#allocation13 + $0xb0] sm:$0xf]
    %v2307 = vld [vmem:[#allocation13 + $0xb4] sm:$0xff]
    %v2308 = vld [vmem:[#allocation13 + $0xbc] sm:$0xf]
    %v2341 = vunpack.c.l.b16 %v2277
    %v2342 = vunpack.c.h.b16 %v2277
    %v2343 = vunpack.c.l.b16 %v2278
    %v2344 = vunpack.c.l.b16 %v2279
    %v2345 = vunpack.c.h.b16 %v2279
    %v2346 = vunpack.c.l.b16 %v2280
    %v2347 = vunpack.c.l.b16 %v2281
    %v2348 = vunpack.c.h.b16 %v2281
    %v2349 = vunpack.c.l.b16 %v2282
    %v2350 = vunpack.c.l.b16 %v2283
    %v2351 = vunpack.c.h.b16 %v2283
    %v2352 = vunpack.c.l.b16 %v2284
    %v2353 = vunpack.c.l.b16 %v2285
    %v2354 = vunpack.c.h.b16 %v2285
    %v2355 = vunpack.c.l.b16 %v2286
    %v2356 = vunpack.c.l.b16 %v2287
    %v2357 = vunpack.c.h.b16 %v2287
    %v2358 = vunpack.c.l.b16 %v2288
    %v2359 = vunpack.c.l.b16 %v2289
    %v2360 = vunpack.c.h.b16 %v2289
    %v2361 = vunpack.c.l.b16 %v2290
    %v2362 = vunpack.c.l.b16 %v2291
    %v2363 = vunpack.c.h.b16 %v2291
    %v2364 = vunpack.c.l.b16 %v2292
    %v2365 = vunpack.c.l.b16 %v2293
    %v2366 = vunpack.c.h.b16 %v2293
    %v2367 = vunpack.c.l.b16 %v2294
    %v2368 = vunpack.c.l.b16 %v2295
    %v2369 = vunpack.c.h.b16 %v2295
    %v2370 = vunpack.c.l.b16 %v2296
    %v2371 = vunpack.c.l.b16 %v2297
    %v2372 = vunpack.c.h.b16 %v2297
    %v2373 = vunpack.c.l.b16 %v2298
    %v2374 = vunpack.c.l.b16 %v2299
    %v2375 = vunpack.c.h.b16 %v2299
    %v2376 = vunpack.c.l.b16 %v2300
    %v2377 = vunpack.c.l.b16 %v2301
    %v2378 = vunpack.c.h.b16 %v2301
    %v2379 = vunpack.c.l.b16 %v2302
    %v2380 = vunpack.c.l.b16 %v2303
    %v2381 = vunpack.c.h.b16 %v2303
    %v2382 = vunpack.c.l.b16 %v2304
    %v2383 = vunpack.c.l.b16 %v2305
    %v2384 = vunpack.c.h.b16 %v2305
    %v2385 = vunpack.c.l.b16 %v2306
    %v2386 = vunpack.c.l.b16 %v2307
    %v2387 = vunpack.c.h.b16 %v2307
    %v2388 = vunpack.c.l.b16 %v2308
    %v2389 = vpack.c.b16 %v2344, %v2341
    %v2390 = vpack.c.b16 %v2345, %v2342
    %v2391 = vpack.c.b16 %v2346, %v2343
    %v2392 = vpack.c.b16 %v2350, %v2347
    %v2393 = vpack.c.b16 %v2351, %v2348
    %v2394 = vpack.c.b16 %v2352, %v2349
    %v2395 = vpack.c.b16 %v2356, %v2353
    %v2396 = vpack.c.b16 %v2357, %v2354
    %v2397 = vpack.c.b16 %v2358, %v2355
    %v2398 = vpack.c.b16 %v2362, %v2359
    %v2399 = vpack.c.b16 %v2363, %v2360
    %v2400 = vpack.c.b16 %v2364, %v2361
    %v2401 = vpack.c.b16 %v2368, %v2365
    %v2402 = vpack.c.b16 %v2369, %v2366
    %v2403 = vpack.c.b16 %v2370, %v2367
    %v2404 = vpack.c.b16 %v2374, %v2371
    %v2405 = vpack.c.b16 %v2375, %v2372
    %v2406 = vpack.c.b16 %v2376, %v2373
    %v2407 = vpack.c.b16 %v2380, %v2377
    %v2408 = vpack.c.b16 %v2381, %v2378
    %v2409 = vpack.c.b16 %v2382, %v2379
    %v2410 = vpack.c.b16 %v2386, %v2383
    %v2411 = vpack.c.b16 %v2387, %v2384
    %v2412 = vpack.c.b16 %v2388, %v2385
    %2437 = vmatprep.subr.bf16.mxu0 %v2390
    %2438 = vmatpush1.bf16.msra.mxu0 %v2389
    %2439 = vmatprep.subr.bf16.mxu0 %v2393
    %2440 = vmatpush1.bf16.msra.mxu0 %v2392
    %2441 = vmatprep.subr.bf16.mxu0 %v2396
    %2442 = vmatpush1.bf16.msra.mxu0 %v2395
    %2443 = vmatprep.subr.bf16.mxu0 %v2399
    %2444 = vmatpush1.bf16.msra.mxu0 %v2398
    %2445 = vmatprep.subr.bf16.mxu0 %v2402
    %2446 = vmatpush1.bf16.msra.mxu0 %v2401
    %2447 = vmatprep.subr.bf16.mxu0 %v2405
    %2448 = vmatpush1.bf16.msra.mxu0 %v2404
    %2449 = vmatprep.subr.bf16.mxu0 %v2408
    %2450 = vmatpush1.bf16.msra.mxu0 %v2407
    %2451 = vmatprep.subr.bf16.mxu0 %v2411
    %2452 = vmatpush1.bf16.msra.mxu0 %v2410
    %2453 = vmatprep.subr.bf16.mxu0 0
    %2454 = vmatpush1.bf16.msra.mxu0 0
    %2455 = vmatprep.subr.bf16.mxu0 0
    %2456 = vmatpush1.bf16.msra.mxu0 0
    %2457 = vmatprep.subr.bf16.mxu0 0
    %2458 = vmatpush1.bf16.msra.mxu0 0
    %2459 = vmatprep.subr.bf16.mxu0 0
    %2460 = vmatpush1.bf16.msra.mxu0 0
    %2461 = vmatprep.subr.bf16.mxu0 0
    %2462 = vmatpush1.bf16.msra.mxu0 0
    %2463 = vmatprep.subr.bf16.mxu0 0
    %2464 = vmatpush1.bf16.msra.mxu0 0
    %2465 = vmatprep.subr.bf16.mxu0 0
    %2466 = vmatpush1.bf16.msra.mxu0 0
    %2467 = vmatprep.subr.bf16.mxu0 0
    %2468 = vmatpush1.bf16.msra.mxu0 0
    %2469 = vmatprep.mubr.bf16.mxu0 0
    %2470 = vmatmul.mubr.bf16.gmra.mrb[0].mxu0 %v2276
    %v2471 = vpop.f32.mrb[0].mxu0
    %v2472 = vadd.f32 0.0, %v2471
    %v2473 = vpop.f32.mrb[0].mxu0
    %v2474 = vadd.f32 0.0, %v2473
    %v2475 = vpop.f32.mrb[0].mxu0
    %v2476 = vadd.f32 0.0, %v2475
    %v2477 = vpop.f32.mrb[0].mxu0
    %v2478 = vadd.f32 0.0, %v2477
    %2479 = vdwg.mxu0
    %2480 = vmatprep.subr.bf16.mxu0 0
    %2481 = vmatpush1.bf16.msra.mxu0 %v2391
    %2482 = vmatprep.subr.bf16.mxu0 0
    %2483 = vmatpush1.bf16.msra.mxu0 %v2394
    %2484 = vmatprep.subr.bf16.mxu0 0
    %2485 = vmatpush1.bf16.msra.mxu0 %v2397
    %2486 = vmatprep.subr.bf16.mxu0 0
    %2487 = vmatpush1.bf16.msra.mxu0 %v2400
    %2488 = vmatprep.subr.bf16.mxu0 0
    %2489 = vmatpush1.bf16.msra.mxu0 %v2403
    %2490 = vmatprep.subr.bf16.mxu0 0
    %2491 = vmatpush1.bf16.msra.mxu0 %v2406
    %2492 = vmatprep.subr.bf16.mxu0 0
    %2493 = vmatpush1.bf16.msra.mxu0 %v2409
    %2494 = vmatprep.subr.bf16.mxu0 0
    %2495 = vmatpush1.bf16.msra.mxu0 %v2412
    %2496 = vmatprep.subr.bf16.mxu0 0
    %2497 = vmatpush1.bf16.msra.mxu0 0
    %2498 = vmatprep.subr.bf16.mxu0 0
    %2499 = vmatpush1.bf16.msra.mxu0 0
    %2500 = vmatprep.subr.bf16.mxu0 0
    %2501 = vmatpush1.bf16.msra.mxu0 0
    %2502 = vmatprep.subr.bf16.mxu0 0
    %2503 = vmatpush1.bf16.msra.mxu0 0
    %2504 = vmatprep.subr.bf16.mxu0 0
    %2505 = vmatpush1.bf16.msra.mxu0 0
    %2506 = vmatprep.subr.bf16.mxu0 0
    %2507 = vmatpush1.bf16.msra.mxu0 0
    %2508 = vmatprep.subr.bf16.mxu0 0
    %2509 = vmatpush1.bf16.msra.mxu0 0
    %2510 = vmatprep.subr.bf16.mxu0 0
    %2511 = vmatpush1.bf16.msra.mxu0 0
    %2512 = vmatprep.mubr.bf16.mxu0 0
    %2513 = vmatmul.mubr.bf16.gmra.mrb[0].mxu0 %v2276
    %v2514 = vpop.f32.mrb[0].mxu0
    %v2515 = vadd.f32 0.0, %v2514
    %v2516 = vpop.f32.mrb[0].mxu0
    %v2517 = vpop.f32.mrb[0].mxu0
    %v2518 = vadd.f32 0.0, %v2517
    %v2519 = vpop.f32.mrb[0].mxu0
    %2520 = vdwg.mxu0
    %v2521 = vld [vmem:[#allocation14] sm:$0xff]
    %v2522 = vld [vmem:[#allocation14 + $0x8] sm:$0xf]
    %v2523 = vld [vmem:[#allocation14 + $0xc] sm:$0xff]
    %v2524 = vld [vmem:[#allocation14 + $0x14] sm:$0xf]
    %v2525 = vld [vmem:[#allocation14 + $0x18] sm:$0xff]
    %v2526 = vld [vmem:[#allocation14 + $0x20] sm:$0xf]
    %v2527 = vld [vmem:[#allocation14 + $0x24] sm:$0xff]
    %v2528 = vld [vmem:[#allocation14 + $0x2c] sm:$0xf]
    %v2529 = vld [vmem:[#allocation14 + $0x30] sm:$0xff]
    %v2530 = vld [vmem:[#allocation14 + $0x38] sm:$0xf]
    %v2531 = vld [vmem:[#allocation14 + $0x3c] sm:$0xff]
    %v2532 = vld [vmem:[#allocation14 + $0x44] sm:$0xf]
    %v2533 = vld [vmem:[#allocation14 + $0x48] sm:$0xff]
    %v2534 = vld [vmem:[#allocation14 + $0x50] sm:$0xf]
    %v2535 = vld [vmem:[#allocation14 + $0x54] sm:$0xff]
    %v2536 = vld [vmem:[#allocation14 + $0x5c] sm:$0xf]
    %v2537 = vld [vmem:[#allocation14 + $0x60] sm:$0xff]
    %v2538 = vld [vmem:[#allocation14 + $0x68] sm:$0xf]
    %v2539 = vld [vmem:[#allocation14 + $0x6c] sm:$0xff]
    %v2540 = vld [vmem:[#allocation14 + $0x74] sm:$0xf]
    %v2541 = vld [vmem:[#allocation14 + $0x78] sm:$0xff]
    %v2542 = vld [vmem:[#allocation14 + $0x80] sm:$0xf]
    %v2543 = vld [vmem:[#allocation14 + $0x84] sm:$0xff]
    %v2544 = vld [vmem:[#allocation14 + $0x8c] sm:$0xf]
    %v2545 = vld [vmem:[#allocation14 + $0x90] sm:$0xff]
    %v2546 = vld [vmem:[#allocation14 + $0x98] sm:$0xf]
    %v2547 = vld [vmem:[#allocation14 + $0x9c] sm:$0xff]
    %v2548 = vld [vmem:[#allocation14 + $0xa4] sm:$0xf]
    %v2549 = vld [vmem:[#allocation14 + $0xa8] sm:$0xff]
    %v2550 = vld [vmem:[#allocation14 + $0xb0] sm:$0xf]
    %v2551 = vld [vmem:[#allocation14 + $0xb4] sm:$0xff]
    %v2552 = vld [vmem:[#allocation14 + $0xbc] sm:$0xf]
    %v2585 = vunpack.c.l.b16 %v2521
    %v2586 = vunpack.c.h.b16 %v2521
    %v2587 = vunpack.c.l.b16 %v2522
    %v2588 = vunpack.c.l.b16 %v2523
    %v2589 = vunpack.c.h.b16 %v2523
    %v2590 = vunpack.c.l.b16 %v2524
    %v2591 = vunpack.c.l.b16 %v2525
    %v2592 = vunpack.c.h.b16 %v2525
    %v2593 = vunpack.c.l.b16 %v2526
    %v2594 = vunpack.c.l.b16 %v2527
    %v2595 = vunpack.c.h.b16 %v2527
    %v2596 = vunpack.c.l.b16 %v2528
    %v2597 = vunpack.c.l.b16 %v2529
    %v2598 = vunpack.c.h.b16 %v2529
    %v2599 = vunpack.c.l.b16 %v2530
    %v2600 = vunpack.c.l.b16 %v2531
    %v2601 = vunpack.c.h.b16 %v2531
    %v2602 = vunpack.c.l.b16 %v2532
    %v2603 = vunpack.c.l.b16 %v2533
    %v2604 = vunpack.c.h.b16 %v2533
    %v2605 = vunpack.c.l.b16 %v2534
    %v2606 = vunpack.c.l.b16 %v2535
    %v2607 = vunpack.c.h.b16 %v2535
    %v2608 = vunpack.c.l.b16 %v2536
    %v2609 = vunpack.c.l.b16 %v2537
    %v2610 = vunpack.c.h.b16 %v2537
    %v2611 = vunpack.c.l.b16 %v2538
    %v2612 = vunpack.c.l.b16 %v2539
    %v2613 = vunpack.c.h.b16 %v2539
    %v2614 = vunpack.c.l.b16 %v2540
    %v2615 = vunpack.c.l.b16 %v2541
    %v2616 = vunpack.c.h.b16 %v2541
    %v2617 = vunpack.c.l.b16 %v2542
    %v2618 = vunpack.c.l.b16 %v2543
    %v2619 = vunpack.c.h.b16 %v2543
    %v2620 = vunpack.c.l.b16 %v2544
    %v2621 = vunpack.c.l.b16 %v2545
    %v2622 = vunpack.c.h.b16 %v2545
    %v2623 = vunpack.c.l.b16 %v2546
    %v2624 = vunpack.c.l.b16 %v2547
    %v2625 = vunpack.c.h.b16 %v2547
    %v2626 = vunpack.c.l.b16 %v2548
    %v2627 = vunpack.c.l.b16 %v2549
    %v2628 = vunpack.c.h.b16 %v2549
    %v2629 = vunpack.c.l.b16 %v2550
    %v2630 = vunpack.c.l.b16 %v2551
    %v2631 = vunpack.c.h.b16 %v2551
    %v2632 = vunpack.c.l.b16 %v2552
    %v2633 = vpack.c.b16 %v2588, %v2585
    %v2634 = vpack.c.b16 %v2589, %v2586
    %v2635 = vpack.c.b16 %v2590, %v2587
    %v2636 = vpack.c.b16 %v2594, %v2591
    %v2637 = vpack.c.b16 %v2595, %v2592
    %v2638 = vpack.c.b16 %v2596, %v2593
    %v2639 = vpack.c.b16 %v2600, %v2597
    %v2640 = vpack.c.b16 %v2601, %v2598
    %v2641 = vpack.c.b16 %v2602, %v2599
    %v2642 = vpack.c.b16 %v2606, %v2603
    %v2643 = vpack.c.b16 %v2607, %v2604
    %v2644 = vpack.c.b16 %v2608, %v2605
    %v2645 = vpack.c.b16 %v2612, %v2609
    %v2646 = vpack.c.b16 %v2613, %v2610
    %v2647 = vpack.c.b16 %v2614, %v2611
    %v2648 = vpack.c.b16 %v2618, %v2615
    %v2649 = vpack.c.b16 %v2619, %v2616
    %v2650 = vpack.c.b16 %v2620, %v2617
    %v2651 = vpack.c.b16 %v2624, %v2621
    %v2652 = vpack.c.b16 %v2625, %v2622
    %v2653 = vpack.c.b16 %v2626, %v2623
    %v2654 = vpack.c.b16 %v2630, %v2627
    %v2655 = vpack.c.b16 %v2631, %v2628
    %v2656 = vpack.c.b16 %v2632, %v2629
    %2681 = vmatprep.subr.bf16.mxu0 %v2634
    %2682 = vmatpush1.bf16.msra.mxu0 %v2633
    %2683 = vmatprep.subr.bf16.mxu0 %v2637
    %2684 = vmatpush1.bf16.msra.mxu0 %v2636
    %2685 = vmatprep.subr.bf16.mxu0 %v2640
    %2686 = vmatpush1.bf16.msra.mxu0 %v2639
    %2687 = vmatprep.subr.bf16.mxu0 %v2643
    %2688 = vmatpush1.bf16.msra.mxu0 %v2642
    %2689 = vmatprep.subr.bf16.mxu0 %v2646
    %2690 = vmatpush1.bf16.msra.mxu0 %v2645
    %2691 = vmatprep.subr.bf16.mxu0 %v2649
    %2692 = vmatpush1.bf16.msra.mxu0 %v2648
    %2693 = vmatprep.subr.bf16.mxu0 %v2652
    %2694 = vmatpush1.bf16.msra.mxu0 %v2651
    %2695 = vmatprep.subr.bf16.mxu0 %v2655
    %2696 = vmatpush1.bf16.msra.mxu0 %v2654
    %2697 = vmatprep.subr.bf16.mxu0 0
    %2698 = vmatpush1.bf16.msra.mxu0 0
    %2699 = vmatprep.subr.bf16.mxu0 0
    %2700 = vmatpush1.bf16.msra.mxu0 0
    %2701 = vmatprep.subr.bf16.mxu0 0
    %2702 = vmatpush1.bf16.msra.mxu0 0
    %2703 = vmatprep.subr.bf16.mxu0 0
    %2704 = vmatpush1.bf16.msra.mxu0 0
    %2705 = vmatprep.subr.bf16.mxu0 0
    %2706 = vmatpush1.bf16.msra.mxu0 0
    %2707 = vmatprep.subr.bf16.mxu0 0
    %2708 = vmatpush1.bf16.msra.mxu0 0
    %2709 = vmatprep.subr.bf16.mxu0 0
    %2710 = vmatpush1.bf16.msra.mxu0 0
    %2711 = vmatprep.subr.bf16.mxu0 0
    %2712 = vmatpush1.bf16.msra.mxu0 0
    %2713 = vmatprep.mubr.bf16.mxu0 0
    %2714 = vmatmul.mubr.bf16.gmra.mrb[0].mxu0 %v2122
    %v2715 = vpop.f32.mrb[0].mxu0
    %v2716 = vadd.f32 0.0, %v2715
    %v2717 = vpop.f32.mrb[0].mxu0
    %v2718 = vadd.f32 0.0, %v2717
    %v2719 = vpop.f32.mrb[0].mxu0
    %v2720 = vadd.f32 0.0, %v2719
    %v2721 = vpop.f32.mrb[0].mxu0
    %v2722 = vadd.f32 0.0, %v2721
    %2723 = vdwg.mxu0
    %2724 = vmatprep.subr.bf16.mxu0 0
    %2725 = vmatpush1.bf16.msra.mxu0 %v2635
    %2726 = vmatprep.subr.bf16.mxu0 0
    %2727 = vmatpush1.bf16.msra.mxu0 %v2638
    %2728 = vmatprep.subr.bf16.mxu0 0
    %2729 = vmatpush1.bf16.msra.mxu0 %v2641
    %2730 = vmatprep.subr.bf16.mxu0 0
    %2731 = vmatpush1.bf16.msra.mxu0 %v2644
    %2732 = vmatprep.subr.bf16.mxu0 0
    %2733 = vmatpush1.bf16.msra.mxu0 %v2647
    %2734 = vmatprep.subr.bf16.mxu0 0
    %2735 = vmatpush1.bf16.msra.mxu0 %v2650
    %2736 = vmatprep.subr.bf16.mxu0 0
    %2737 = vmatpush1.bf16.msra.mxu0 %v2653
    %2738 = vmatprep.subr.bf16.mxu0 0
    %2739 = vmatpush1.bf16.msra.mxu0 %v2656
    %2740 = vmatprep.subr.bf16.mxu0 0
    %2741 = vmatpush1.bf16.msra.mxu0 0
    %2742 = vmatprep.subr.bf16.mxu0 0
    %2743 = vmatpush1.bf16.msra.mxu0 0
    %2744 = vmatprep.subr.bf16.mxu0 0
    %2745 = vmatpush1.bf16.msra.mxu0 0
    %2746 = vmatprep.subr.bf16.mxu0 0
    %2747 = vmatpush1.bf16.msra.mxu0 0
    %2748 = vmatprep.subr.bf16.mxu0 0
    %2749 = vmatpush1.bf16.msra.mxu0 0
    %2750 = vmatprep.subr.bf16.mxu0 0
    %2751 = vmatpush1.bf16.msra.mxu0 0
    %2752 = vmatprep.subr.bf16.mxu0 0
    %2753 = vmatpush1.bf16.msra.mxu0 0
    %2754 = vmatprep.subr.bf16.mxu0 0
    %2755 = vmatpush1.bf16.msra.mxu0 0
    %2756 = vmatprep.mubr.bf16.mxu0 0
    %2757 = vmatmul.mubr.bf16.gmra.mrb[0].mxu0 %v2122
    %v2758 = vpop.f32.mrb[0].mxu0
    %v2759 = vadd.f32 0.0, %v2758
    %v2760 = vpop.f32.mrb[0].mxu0
    %v2761 = vpop.f32.mrb[0].mxu0
    %v2762 = vadd.f32 0.0, %v2761
    %v2763 = vpop.f32.mrb[0].mxu0
    %2764 = vdwg.mxu0
    %v2765 = vadd.f32 %v2472, %v2716
    %v2766 = vadd.f32 %v2474, %v2718
    %v2767 = vadd.f32 %v2476, %v2720
    %v2768 = vadd.f32 %v2478, %v2722
    %v2770 = vlaneseq
    %v2771 = vshrl.u32 %v2770, 7
    %v2772 = vsub.s32 0, %v2771
    %v2773 = vrot.slane %v2119, %v2772
    %v2774 = vlaneseq
    %v2775 = vshrl.u32 %v2774, 7
    %v2776 = vsub.s32 1, %v2775
    %v2777 = vrot.slane %v2119, %v2776
    %v2780 = vadd.f32 %v2765, %v2773
    %v2781 = vadd.f32 %v2766, %v2777
    %v2782 = vadd.f32 %v2767, %v2773
    %v2783 = vadd.f32 %v2768, %v2777
    %v2784 = vxor.u32 %v2780, 2147483648
    %v2785 = vxor.u32 %v2781, 2147483648
    %v2786 = vxor.u32 %v2782, 2147483648
    %v2787 = vxor.u32 %v2783, 2147483648
    %v2788 = vmul.f32 %v2784, 1.442695
    %v2789 = vpow.pop %v2788
    %v2790 = vmul.f32 %v2785, 1.442695
    %v2791 = vpow.pop %v2790
    %v2792 = vmul.f32 %v2786, 1.442695
    %v2793 = vpow.pop %v2792
    %v2794 = vmul.f32 %v2787, 1.442695
    %v2795 = vpow.pop %v2794
    %v2796 = vadd.f32 %v2789, 1.0
    %v2797 = vadd.f32 %v2791, 1.0
    %v2798 = vadd.f32 %v2793, 1.0
    %v2799 = vadd.f32 %v2795, 1.0
    %v2800 = vrcp.pop %v2796
    %v2801 = vmul.f32 1.0, %v2800
    %v2802 = vrcp.pop %v2797
    %v2803 = vmul.f32 1.0, %v2802
    %v2804 = vrcp.pop %v2798
    %v2805 = vmul.f32 1.0, %v2804
    %v2806 = vrcp.pop %v2799
    %v2807 = vmul.f32 1.0, %v2806
    %v2809 = vlaneseq
    %v2810 = vshrl.u32 %v2809, 7
    %v2811 = vsub.s32 0, %v2810
    %v2812 = vrot.slane %v2120, %v2811
    %v2814 = vadd.f32 %v2515, %v2812
    %v2815 = vadd.f32 %v2518, %v2812
    %v2817 = vlaneseq
    %v2818 = vshrl.u32 %v2817, 7
    %v2819 = vsub.s32 0, %v2818
    %v2820 = vrot.slane %v2121, %v2819
    %v2822 = vadd.f32 %v2759, %v2820
    %v2823 = vadd.f32 %v2762, %v2820
    %v2824 = vmul.f32 %v2801, %v2822
    %v2825 = vmul.f32 %v2805, %v2823
    %v2826 = vadd.f32 %v2814, %v2824
    %v2827 = vadd.f32 %v2815, %v2825
    %v2828 = vtanh.pop %v2826
    %v2829 = vtanh.pop %v2827
    %v2830 = vsub.f32 %v2116, %v2828
    %v2831 = vsub.f32 %v2117, %v2829
    %v2832 = vmul.f32 %v2803, %v2830
    %v2833 = vmul.f32 %v2807, %v2831
    %v2834 = vadd.f32 %v2828, %v2832
    %v2835 = vadd.f32 %v2829, %v2833
    %v2836 = vpack.c.bf16 %v2835, %v2834
    %2837 = vmatprep.subr.bf16.mxu0 0
    %2838 = vmatpush1.bf16.msra.mxu0 %v2177
    %2839 = vmatprep.subr.bf16.mxu0 0
    %2840 = vmatpush1.bf16.msra.mxu0 %v2178
    %2841 = vmatprep.subr.bf16.mxu0 0
    %2842 = vmatpush1.bf16.msra.mxu0 %v2179
    %2843 = vmatprep.subr.bf16.mxu0 0
    %2844 = vmatpush1.bf16.msra.mxu0 %v2180
    %2845 = vmatprep.subr.bf16.mxu0 0
    %2846 = vmatpush1.bf16.msra.mxu0 %v2181
    %2847 = vmatprep.subr.bf16.mxu0 0
    %2848 = vmatpush1.bf16.msra.mxu0 %v2182
    %2849 = vmatprep.subr.bf16.mxu0 0
    %2850 = vmatpush1.bf16.msra.mxu0 %v2183
    %2851 = vmatprep.subr.bf16.mxu0 0
    %2852 = vmatpush1.bf16.msra.mxu0 %v2184
    %2853 = vmatprep.subr.bf16.mxu0 0
    %2854 = vmatpush1.bf16.msra.mxu0 0
    %2855 = vmatprep.subr.bf16.mxu0 0
    %2856 = vmatpush1.bf16.msra.mxu0 0
    %2857 = vmatprep.subr.bf16.mxu0 0
    %2858 = vmatpush1.bf16.msra.mxu0 0
    %2859 = vmatprep.subr.bf16.mxu0 0
    %2860 = vmatpush1.bf16.msra.mxu0 0
    %2861 = vmatprep.subr.bf16.mxu0 0
    %2862 = vmatpush1.bf16.msra.mxu0 0
    %2863 = vmatprep.subr.bf16.mxu0 0
    %2864 = vmatpush1.bf16.msra.mxu0 0
    %2865 = vmatprep.subr.bf16.mxu0 0
    %2866 = vmatpush1.bf16.msra.mxu0 0
    %2867 = vmatprep.subr.bf16.mxu0 0
    %2868 = vmatpush1.bf16.msra.mxu0 0
    %2869 = vmatprep.mubr.bf16.mxu0 0
    %2870 = vmatmul.mubr.bf16.gmra.mrb[0].mxu0 %v2836
    %v2871 = vpop.f32.mrb[0].mxu0
    %v2872 = vadd.f32 %v2143, %v2871
    %v2873 = vpop.f32.mrb[0].mxu0
    %v2874 = vpop.f32.mrb[0].mxu0
    %v2875 = vadd.f32 %v2143, %v2874
    %v2876 = vpop.f32.mrb[0].mxu0
    %2877 = vdwg.mxu0
    %v2878 = vpack.c.bf16 %v2875, %v2872
    %2879 = vmatprep.subr.bf16.mxu0 0
    %2880 = vmatpush1.bf16.msra.mxu0 %v2878
    %2881 = vmatprep.subr.bf16.mxu0 0
    %2882 = vmatpush1.bf16.msra.mxu0 0
    %2883 = vmatprep.subr.bf16.mxu0 0
    %2884 = vmatpush1.bf16.msra.mxu0 0
    %2885 = vmatprep.subr.bf16.mxu0 0
    %2886 = vmatpush1.bf16.msra.mxu0 0
    %2887 = vmatprep.subr.bf16.mxu0 0
    %2888 = vmatpush1.bf16.msra.mxu0 0
    %2889 = vmatprep.subr.bf16.mxu0 0
    %2890 = vmatpush1.bf16.msra.mxu0 0
    %2891 = vmatprep.subr.bf16.mxu0 0
    %2892 = vmatpush1.bf16.msra.mxu0 0
    %2893 = vmatprep.subr.bf16.mxu0 0
    %2894 = vmatpush1.bf16.msra.mxu0 0
    %2895 = vmatprep.subr.bf16.mxu0 0
    %2896 = vmatpush1.bf16.msra.mxu0 0
    %2897 = vmatprep.subr.bf16.mxu0 0
    %2898 = vmatpush1.bf16.msra.mxu0 0
    %2899 = vmatprep.subr.bf16.mxu0 0
    %2900 = vmatpush1.bf16.msra.mxu0 0
    %2901 = vmatprep.subr.bf16.mxu0 0
    %2902 = vmatpush1.bf16.msra.mxu0 0
    %2903 = vmatprep.subr.bf16.mxu0 0
    %2904 = vmatpush1.bf16.msra.mxu0 0
    %2905 = vmatprep.subr.bf16.mxu0 0
    %2906 = vmatpush1.bf16.msra.mxu0 0
    %2907 = vmatprep.subr.bf16.mxu0 0
    %2908 = vmatpush1.bf16.msra.mxu0 0
    %2909 = vmatprep.subr.bf16.mxu0 0
    %2910 = vmatpush1.bf16.msra.mxu0 0
    %2911 = vmatprep.mubr.bf16.mxu0 0
    %2912 = vmatmul.mubr.bf16.gmra.mrb[0].mxu0 %v311
    %v2913 = vpop.f32.mrb[0].mxu0
    %v2914 = vadd.f32 0.0, %v2913
    %v2915 = vpop.f32.mrb[0].mxu0
    %v2916 = vpop.f32.mrb[0].mxu0
    %v2917 = vadd.f32 0.0, %v2916
    %v2918 = vpop.f32.mrb[0].mxu0
    %2919 = vdwg.mxu0
    %v2920 = vpack.c.bf16 %v2917, %v2914
    %2921 = vmatprep.subr.bf16.mxu0 %v2390
    %2922 = vmatpush1.bf16.msra.mxu0 %v2389
    %2923 = vmatprep.subr.bf16.mxu0 %v2393
    %2924 = vmatpush1.bf16.msra.mxu0 %v2392
    %2925 = vmatprep.subr.bf16.mxu0 %v2396
    %2926 = vmatpush1.bf16.msra.mxu0 %v2395
    %2927 = vmatprep.subr.bf16.mxu0 %v2399
    %2928 = vmatpush1.bf16.msra.mxu0 %v2398
    %2929 = vmatprep.subr.bf16.mxu0 %v2402
    %2930 = vmatpush1.bf16.msra.mxu0 %v2401
    %2931 = vmatprep.subr.bf16.mxu0 %v2405
    %2932 = vmatpush1.bf16.msra.mxu0 %v2404
    %2933 = vmatprep.subr.bf16.mxu0 %v2408
    %2934 = vmatpush1.bf16.msra.mxu0 %v2407
    %2935 = vmatprep.subr.bf16.mxu0 %v2411
    %2936 = vmatpush1.bf16.msra.mxu0 %v2410
    %2937 = vmatprep.subr.bf16.mxu0 0
    %2938 = vmatpush1.bf16.msra.mxu0 0
    %2939 = vmatprep.subr.bf16.mxu0 0
    %2940 = vmatpush1.bf16.msra.mxu0 0
    %2941 = vmatprep.subr.bf16.mxu0 0
    %2942 = vmatpush1.bf16.msra.mxu0 0
    %2943 = vmatprep.subr.bf16.mxu0 0
    %2944 = vmatpush1.bf16.msra.mxu0 0
    %2945 = vmatprep.subr.bf16.mxu0 0
    %2946 = vmatpush1.bf16.msra.mxu0 0
    %2947 = vmatprep.subr.bf16.mxu0 0
    %2948 = vmatpush1.bf16.msra.mxu0 0
    %2949 = vmatprep.subr.bf16.mxu0 0
    %2950 = vmatpush1.bf16.msra.mxu0 0
    %2951 = vmatprep.subr.bf16.mxu0 0
    %2952 = vmatpush1.bf16.msra.mxu0 0
    %2953 = vmatprep.mubr.bf16.mxu0 0
    %2954 = vmatmul.mubr.bf16.gmra.mrb[0].mxu0 %v2920
    %v2955 = vpop.f32.mrb[0].mxu0
    %v2956 = vadd.f32 0.0, %v2955
    %v2957 = vpop.f32.mrb[0].mxu0
    %v2958 = vadd.f32 0.0, %v2957
    %v2959 = vpop.f32.mrb[0].mxu0
    %v2960 = vadd.f32 0.0, %v2959
    %v2961 = vpop.f32.mrb[0].mxu0
    %v2962 = vadd.f32 0.0, %v2961
    %2963 = vdwg.mxu0
    %2964 = vmatprep.subr.bf16.mxu0 0
    %2965 = vmatpush1.bf16.msra.mxu0 %v2391
    %2966 = vmatprep.subr.bf16.mxu0 0
    %2967 = vmatpush1.bf16.msra.mxu0 %v2394
    %2968 = vmatprep.subr.bf16.mxu0 0
    %2969 = vmatpush1.bf16.msra.mxu0 %v2397
    %2970 = vmatprep.subr.bf16.mxu0 0
    %2971 = vmatpush1.bf16.msra.mxu0 %v2400
    %2972 = vmatprep.subr.bf16.mxu0 0
    %2973 = vmatpush1.bf16.msra.mxu0 %v2403
    %2974 = vmatprep.subr.bf16.mxu0 0
    %2975 = vmatpush1.bf16.msra.mxu0 %v2406
    %2976 = vmatprep.subr.bf16.mxu0 0
    %2977 = vmatpush1.bf16.msra.mxu0 %v2409
    %2978 = vmatprep.subr.bf16.mxu0 0
    %2979 = vmatpush1.bf16.msra.mxu0 %v2412
    %2980 = vmatprep.subr.bf16.mxu0 0
    %2981 = vmatpush1.bf16.msra.mxu0 0
    %2982 = vmatprep.subr.bf16.mxu0 0
    %2983 = vmatpush1.bf16.msra.mxu0 0
    %2984 = vmatprep.subr.bf16.mxu0 0
    %2985 = vmatpush1.bf16.msra.mxu0 0
    %2986 = vmatprep.subr.bf16.mxu0 0
    %2987 = vmatpush1.bf16.msra.mxu0 0
    %2988 = vmatprep.subr.bf16.mxu0 0
    %2989 = vmatpush1.bf16.msra.mxu0 0
    %2990 = vmatprep.subr.bf16.mxu0 0
    %2991 = vmatpush1.bf16.msra.mxu0 0
    %2992 = vmatprep.subr.bf16.mxu0 0
    %2993 = vmatpush1.bf16.msra.mxu0 0
    %2994 = vmatprep.subr.bf16.mxu0 0
    %2995 = vmatpush1.bf16.msra.mxu0 0
    %2996 = vmatprep.mubr.bf16.mxu0 0
    %2997 = vmatmul.mubr.bf16.gmra.mrb[0].mxu0 %v2920
    %v2998 = vpop.f32.mrb[0].mxu0
    %v2999 = vadd.f32 0.0, %v2998
    %v3000 = vpop.f32.mrb[0].mxu0
    %v3001 = vpop.f32.mrb[0].mxu0
    %v3002 = vadd.f32 0.0, %v3001
    %v3003 = vpop.f32.mrb[0].mxu0
    %3004 = vdwg.mxu0
    %3005 = vmatprep.subr.bf16.mxu0 %v2634
    %3006 = vmatpush1.bf16.msra.mxu0 %v2633
    %3007 = vmatprep.subr.bf16.mxu0 %v2637
    %3008 = vmatpush1.bf16.msra.mxu0 %v2636
    %3009 = vmatprep.subr.bf16.mxu0 %v2640
    %3010 = vmatpush1.bf16.msra.mxu0 %v2639
    %3011 = vmatprep.subr.bf16.mxu0 %v2643
    %3012 = vmatpush1.bf16.msra.mxu0 %v2642
    %3013 = vmatprep.subr.bf16.mxu0 %v2646
    %3014 = vmatpush1.bf16.msra.mxu0 %v2645
    %3015 = vmatprep.subr.bf16.mxu0 %v2649
    %3016 = vmatpush1.bf16.msra.mxu0 %v2648
    %3017 = vmatprep.subr.bf16.mxu0 %v2652
    %3018 = vmatpush1.bf16.msra.mxu0 %v2651
    %3019 = vmatprep.subr.bf16.mxu0 %v2655
    %3020 = vmatpush1.bf16.msra.mxu0 %v2654
    %3021 = vmatprep.subr.bf16.mxu0 0
    %3022 = vmatpush1.bf16.msra.mxu0 0
    %3023 = vmatprep.subr.bf16.mxu0 0
    %3024 = vmatpush1.bf16.msra.mxu0 0
    %3025 = vmatprep.subr.bf16.mxu0 0
    %3026 = vmatpush1.bf16.msra.mxu0 0
    %3027 = vmatprep.subr.bf16.mxu0 0
    %3028 = vmatpush1.bf16.msra.mxu0 0
    %3029 = vmatprep.subr.bf16.mxu0 0
    %3030 = vmatpush1.bf16.msra.mxu0 0
    %3031 = vmatprep.subr.bf16.mxu0 0
    %3032 = vmatpush1.bf16.msra.mxu0 0
    %3033 = vmatprep.subr.bf16.mxu0 0
    %3034 = vmatpush1.bf16.msra.mxu0 0
    %3035 = vmatprep.subr.bf16.mxu0 0
    %3036 = vmatpush1.bf16.msra.mxu0 0
    %3037 = vmatprep.mubr.bf16.mxu0 0
    %3038 = vmatmul.mubr.bf16.gmra.mrb[0].mxu0 %v2836
    %v3039 = vpop.f32.mrb[0].mxu0
    %v3040 = vadd.f32 0.0, %v3039
    %v3041 = vpop.f32.mrb[0].mxu0
    %v3042 = vadd.f32 0.0, %v3041
    %v3043 = vpop.f32.mrb[0].mxu0
    %v3044 = vadd.f32 0.0, %v3043
    %v3045 = vpop.f32.mrb[0].mxu0
    %v3046 = vadd.f32 0.0, %v3045
    %3047 = vdwg.mxu0
    %3048 = vmatprep.subr.bf16.mxu0 0
    %3049 = vmatpush1.bf16.msra.mxu0 %v2635
    %3050 = vmatprep.subr.bf16.mxu0 0
    %3051 = vmatpush1.bf16.msra.mxu0 %v2638
    %3052 = vmatprep.subr.bf16.mxu0 0
    %3053 = vmatpush1.bf16.msra.mxu0 %v2641
    %3054 = vmatprep.subr.bf16.mxu0 0
    %3055 = vmatpush1.bf16.msra.mxu0 %v2644
    %3056 = vmatprep.subr.bf16.mxu0 0
    %3057 = vmatpush1.bf16.msra.mxu0 %v2647
    %3058 = vmatprep.subr.bf16.mxu0 0
    %3059 = vmatpush1.bf16.msra.mxu0 %v2650
    %3060 = vmatprep.subr.bf16.mxu0 0
    %3061 = vmatpush1.bf16.msra.mxu0 %v2653
    %3062 = vmatprep.subr.bf16.mxu0 0
    %3063 = vmatpush1.bf16.msra.mxu0 %v2656
    %3064 = vmatprep.subr.bf16.mxu0 0
    %3065 = vmatpush1.bf16.msra.mxu0 0
    %3066 = vmatprep.subr.bf16.mxu0 0
    %3067 = vmatpush1.bf16.msra.mxu0 0
    %3068 = vmatprep.subr.bf16.mxu0 0
    %3069 = vmatpush1.bf16.msra.mxu0 0
    %3070 = vmatprep.subr.bf16.mxu0 0
    %3071 = vmatpush1.bf16.msra.mxu0 0
    %3072 = vmatprep.subr.bf16.mxu0 0
    %3073 = vmatpush1.bf16.msra.mxu0 0
    %3074 = vmatprep.subr.bf16.mxu0 0
    %3075 = vmatpush1.bf16.msra.mxu0 0
    %3076 = vmatprep.subr.bf16.mxu0 0
    %3077 = vmatpush1.bf16.msra.mxu0 0
    %3078 = vmatprep.subr.bf16.mxu0 0
    %3079 = vmatpush1.bf16.msra.mxu0 0
    %3080 = vmatprep.mubr.bf16.mxu0 0
    %3081 = vmatmul.mubr.bf16.gmra.mrb[0].mxu0 %v2836
    %v3082 = vpop.f32.mrb[0].mxu0
    %v3083 = vadd.f32 0.0, %v3082
    %v3084 = vpop.f32.mrb[0].mxu0
    %v3085 = vpop.f32.mrb[0].mxu0
    %v3086 = vadd.f32 0.0, %v3085
    %v3087 = vpop.f32.mrb[0].mxu0
    %3088 = vdwg.mxu0
    %v3089 = vadd.f32 %v2956, %v3040
    %v3090 = vadd.f32 %v2958, %v3042
    %v3091 = vadd.f32 %v2960, %v3044
    %v3092 = vadd.f32 %v2962, %v3046
    %v3093 = vadd.f32 %v3089, %v2773
    %v3094 = vadd.f32 %v3090, %v2777
    %v3095 = vadd.f32 %v3091, %v2773
    %v3096 = vadd.f32 %v3092, %v2777
    %v3097 = vxor.u32 %v3093, 2147483648
    %v3098 = vxor.u32 %v3094, 2147483648
    %v3099 = vxor.u32 %v3095, 2147483648
    %v3100 = vxor.u32 %v3096, 2147483648
    %v3101 = vmul.f32 %v3097, 1.442695
    %v3102 = vpow.pop %v3101
    %v3103 = vmul.f32 %v3098, 1.442695
    %v3104 = vpow.pop %v3103
    %v3105 = vmul.f32 %v3099, 1.442695
    %v3106 = vpow.pop %v3105
    %v3107 = vmul.f32 %v3100, 1.442695
    %v3108 = vpow.pop %v3107
    %v3109 = vadd.f32 %v3102, 1.0
    %v3110 = vadd.f32 %v3104, 1.0
    %v3111 = vadd.f32 %v3106, 1.0
    %v3112 = vadd.f32 %v3108, 1.0
    %v3113 = vrcp.pop %v3109
    %v3114 = vmul.f32 1.0, %v3113
    %v3115 = vrcp.pop %v3110
    %v3116 = vmul.f32 1.0, %v3115
    %v3117 = vrcp.pop %v3111
    %v3118 = vmul.f32 1.0, %v3117
    %v3119 = vrcp.pop %v3112
    %v3120 = vmul.f32 1.0, %v3119
    %v3121 = vadd.f32 %v2999, %v2812
    %v3122 = vadd.f32 %v3002, %v2812
    %v3123 = vadd.f32 %v3083, %v2820
    %v3124 = vadd.f32 %v3086, %v2820
    %v3125 = vmul.f32 %v3114, %v3123
    %v3126 = vmul.f32 %v3118, %v3124
    %v3127 = vadd.f32 %v3121, %v3125
    %v3128 = vadd.f32 %v3122, %v3126
    %v3129 = vtanh.pop %v3127
    %v3130 = vtanh.pop %v3128
    %v3131 = vsub.f32 %v2834, %v3129
    %v3132 = vsub.f32 %v2835, %v3130
    %v3133 = vmul.f32 %v3116, %v3131
    %v3134 = vmul.f32 %v3120, %v3132
    %v3135 = vadd.f32 %v3129, %v3133
    %v3136 = vadd.f32 %v3130, %v3134
    %v3137 = vpack.c.bf16 %v3136, %v3135
    %3138 = vmatprep.subr.bf16.mxu0 0
    %3139 = vmatpush1.bf16.msra.mxu0 %v2177
    %3140 = vmatprep.subr.bf16.mxu0 0
    %3141 = vmatpush1.bf16.msra.mxu0 %v2178
    %3142 = vmatprep.subr.bf16.mxu0 0
    %3143 = vmatpush1.bf16.msra.mxu0 %v2179
    %3144 = vmatprep.subr.bf16.mxu0 0
    %3145 = vmatpush1.bf16.msra.mxu0 %v2180
    %3146 = vmatprep.subr.bf16.mxu0 0
    %3147 = vmatpush1.bf16.msra.mxu0 %v2181
    %3148 = vmatprep.subr.bf16.mxu0 0
    %3149 = vmatpush1.bf16.msra.mxu0 %v2182
    %3150 = vmatprep.subr.bf16.mxu0 0
    %3151 = vmatpush1.bf16.msra.mxu0 %v2183
    %3152 = vmatprep.subr.bf16.mxu0 0
    %3153 = vmatpush1.bf16.msra.mxu0 %v2184
    %3154 = vmatprep.subr.bf16.mxu0 0
    %3155 = vmatpush1.bf16.msra.mxu0 0
    %3156 = vmatprep.subr.bf16.mxu0 0
    %3157 = vmatpush1.bf16.msra.mxu0 0
    %3158 = vmatprep.subr.bf16.mxu0 0
    %3159 = vmatpush1.bf16.msra.mxu0 0
    %3160 = vmatprep.subr.bf16.mxu0 0
    %3161 = vmatpush1.bf16.msra.mxu0 0
    %3162 = vmatprep.subr.bf16.mxu0 0
    %3163 = vmatpush1.bf16.msra.mxu0 0
    %3164 = vmatprep.subr.bf16.mxu0 0
    %3165 = vmatpush1.bf16.msra.mxu0 0
    %3166 = vmatprep.subr.bf16.mxu0 0
    %3167 = vmatpush1.bf16.msra.mxu0 0
    %3168 = vmatprep.subr.bf16.mxu0 0
    %3169 = vmatpush1.bf16.msra.mxu0 0
    %3170 = vmatprep.mubr.bf16.mxu0 0
    %3171 = vmatmul.mubr.bf16.gmra.mrb[0].mxu0 %v3137
    %v3172 = vpop.f32.mrb[0].mxu0
    %v3173 = vadd.f32 %v2143, %v3172
    %v3174 = vpop.f32.mrb[0].mxu0
    %v3175 = vpop.f32.mrb[0].mxu0
    %v3176 = vadd.f32 %v2143, %v3175
    %v3177 = vpop.f32.mrb[0].mxu0
    %3178 = vdwg.mxu0
    %v3179 = vpack.c.bf16 %v3176, %v3173
    %3180 = vmatprep.subr.bf16.mxu0 0
    %3181 = vmatpush1.bf16.msra.mxu0 %v3179
    %3182 = vmatprep.subr.bf16.mxu0 0
    %3183 = vmatpush1.bf16.msra.mxu0 0
    %3184 = vmatprep.subr.bf16.mxu0 0
    %3185 = vmatpush1.bf16.msra.mxu0 0
    %3186 = vmatprep.subr.bf16.mxu0 0
    %3187 = vmatpush1.bf16.msra.mxu0 0
    %3188 = vmatprep.subr.bf16.mxu0 0
    %3189 = vmatpush1.bf16.msra.mxu0 0
    %3190 = vmatprep.subr.bf16.mxu0 0
    %3191 = vmatpush1.bf16.msra.mxu0 0
    %3192 = vmatprep.subr.bf16.mxu0 0
    %3193 = vmatpush1.bf16.msra.mxu0 0
    %3194 = vmatprep.subr.bf16.mxu0 0
    %3195 = vmatpush1.bf16.msra.mxu0 0
    %3196 = vmatprep.subr.bf16.mxu0 0
    %3197 = vmatpush1.bf16.msra.mxu0 0
    %3198 = vmatprep.subr.bf16.mxu0 0
    %3199 = vmatpush1.bf16.msra.mxu0 0
    %3200 = vmatprep.subr.bf16.mxu0 0
    %3201 = vmatpush1.bf16.msra.mxu0 0
    %3202 = vmatprep.subr.bf16.mxu0 0
    %3203 = vmatpush1.bf16.msra.mxu0 0
    %3204 = vmatprep.subr.bf16.mxu0 0
    %3205 = vmatpush1.bf16.msra.mxu0 0
    %3206 = vmatprep.subr.bf16.mxu0 0
    %3207 = vmatpush1.bf16.msra.mxu0 0
    %3208 = vmatprep.subr.bf16.mxu0 0
    %3209 = vmatpush1.bf16.msra.mxu0 0
    %3210 = vmatprep.subr.bf16.mxu0 0
    %3211 = vmatpush1.bf16.msra.mxu0 0
    %3212 = vmatprep.mubr.bf16.mxu0 0
    %3213 = vmatmul.mubr.bf16.gmra.mrb[0].mxu0 %v311
    %v3214 = vpop.f32.mrb[0].mxu0
    %v3215 = vadd.f32 0.0, %v3214
    %v3216 = vpop.f32.mrb[0].mxu0
    %v3217 = vpop.f32.mrb[0].mxu0
    %v3218 = vadd.f32 0.0, %v3217
    %v3219 = vpop.f32.mrb[0].mxu0
    %3220 = vdwg.mxu0
    %v3221 = vpack.c.bf16 %v3218, %v3215
    %3222 = vmatprep.subr.bf16.mxu0 %v2390
    %3223 = vmatpush1.bf16.msra.mxu0 %v2389
    %3224 = vmatprep.subr.bf16.mxu0 %v2393
    %3225 = vmatpush1.bf16.msra.mxu0 %v2392
    %3226 = vmatprep.subr.bf16.mxu0 %v2396
    %3227 = vmatpush1.bf16.msra.mxu0 %v2395
    %3228 = vmatprep.subr.bf16.mxu0 %v2399
    %3229 = vmatpush1.bf16.msra.mxu0 %v2398
    %3230 = vmatprep.subr.bf16.mxu0 %v2402
    %3231 = vmatpush1.bf16.msra.mxu0 %v2401
    %3232 = vmatprep.subr.bf16.mxu0 %v2405
    %3233 = vmatpush1.bf16.msra.mxu0 %v2404
    %3234 = vmatprep.subr.bf16.mxu0 %v2408
    %3235 = vmatpush1.bf16.msra.mxu0 %v2407
    %3236 = vmatprep.subr.bf16.mxu0 %v2411
    %3237 = vmatpush1.bf16.msra.mxu0 %v2410
    %3238 = vmatprep.subr.bf16.mxu0 0
    %3239 = vmatpush1.bf16.msra.mxu0 0
    %3240 = vmatprep.subr.bf16.mxu0 0
    %3241 = vmatpush1.bf16.msra.mxu0 0
    %3242 = vmatprep.subr.bf16.mxu0 0
    %3243 = vmatpush1.bf16.msra.mxu0 0
    %3244 = vmatprep.subr.bf16.mxu0 0
    %3245 = vmatpush1.bf16.msra.mxu0 0
    %3246 = vmatprep.subr.bf16.mxu0 0
    %3247 = vmatpush1.bf16.msra.mxu0 0
    %3248 = vmatprep.subr.bf16.mxu0 0
    %3249 = vmatpush1.bf16.msra.mxu0 0
    %3250 = vmatprep.subr.bf16.mxu0 0
    %3251 = vmatpush1.bf16.msra.mxu0 0
    %3252 = vmatprep.subr.bf16.mxu0 0
    %3253 = vmatpush1.bf16.msra.mxu0 0
    %3254 = vmatprep.mubr.bf16.mxu0 0
    %3255 = vmatmul.mubr.bf16.gmra.mrb[0].mxu0 %v3221
    %v3256 = vpop.f32.mrb[0].mxu0
    %v3257 = vadd.f32 0.0, %v3256
    %v3258 = vpop.f32.mrb[0].mxu0
    %v3259 = vadd.f32 0.0, %v3258
    %v3260 = vpop.f32.mrb[0].mxu0
    %v3261 = vadd.f32 0.0, %v3260
    %v3262 = vpop.f32.mrb[0].mxu0
    %v3263 = vadd.f32 0.0, %v3262
    %3264 = vdwg.mxu0
    %3265 = vmatprep.subr.bf16.mxu0 0
    %3266 = vmatpush1.bf16.msra.mxu0 %v2391
    %3267 = vmatprep.subr.bf16.mxu0 0
    %3268 = vmatpush1.bf16.msra.mxu0 %v2394
    %3269 = vmatprep.subr.bf16.mxu0 0
    %3270 = vmatpush1.bf16.msra.mxu0 %v2397
    %3271 = vmatprep.subr.bf16.mxu0 0
    %3272 = vmatpush1.bf16.msra.mxu0 %v2400
    %3273 = vmatprep.subr.bf16.mxu0 0
    %3274 = vmatpush1.bf16.msra.mxu0 %v2403
    %3275 = vmatprep.subr.bf16.mxu0 0
    %3276 = vmatpush1.bf16.msra.mxu0 %v2406
    %3277 = vmatprep.subr.bf16.mxu0 0
    %3278 = vmatpush1.bf16.msra.mxu0 %v2409
    %3279 = vmatprep.subr.bf16.mxu0 0
    %3280 = vmatpush1.bf16.msra.mxu0 %v2412
    %3281 = vmatprep.subr.bf16.mxu0 0
    %3282 = vmatpush1.bf16.msra.mxu0 0
    %3283 = vmatprep.subr.bf16.mxu0 0
    %3284 = vmatpush1.bf16.msra.mxu0 0
    %3285 = vmatprep.subr.bf16.mxu0 0
    %3286 = vmatpush1.bf16.msra.mxu0 0
    %3287 = vmatprep.subr.bf16.mxu0 0
    %3288 = vmatpush1.bf16.msra.mxu0 0
    %3289 = vmatprep.subr.bf16.mxu0 0
    %3290 = vmatpush1.bf16.msra.mxu0 0
    %3291 = vmatprep.subr.bf16.mxu0 0
    %3292 = vmatpush1.bf16.msra.mxu0 0
    %3293 = vmatprep.subr.bf16.mxu0 0
    %3294 = vmatpush1.bf16.msra.mxu0 0
    %3295 = vmatprep.subr.bf16.mxu0 0
    %3296 = vmatpush1.bf16.msra.mxu0 0
    %3297 = vmatprep.mubr.bf16.mxu0 0
    %3298 = vmatmul.mubr.bf16.gmra.mrb[0].mxu0 %v3221
    %v3299 = vpop.f32.mrb[0].mxu0
    %v3300 = vadd.f32 0.0, %v3299
    %v3301 = vpop.f32.mrb[0].mxu0
    %v3302 = vpop.f32.mrb[0].mxu0
    %v3303 = vadd.f32 0.0, %v3302
    %v3304 = vpop.f32.mrb[0].mxu0
    %3305 = vdwg.mxu0
    %3306 = vmatprep.subr.bf16.mxu0 %v2634
    %3307 = vmatpush1.bf16.msra.mxu0 %v2633
    %3308 = vmatprep.subr.bf16.mxu0 %v2637
    %3309 = vmatpush1.bf16.msra.mxu0 %v2636
    %3310 = vmatprep.subr.bf16.mxu0 %v2640
    %3311 = vmatpush1.bf16.msra.mxu0 %v2639
    %3312 = vmatprep.subr.bf16.mxu0 %v2643
    %3313 = vmatpush1.bf16.msra.mxu0 %v2642
    %3314 = vmatprep.subr.bf16.mxu0 %v2646
    %3315 = vmatpush1.bf16.msra.mxu0 %v2645
    %3316 = vmatprep.subr.bf16.mxu0 %v2649
    %3317 = vmatpush1.bf16.msra.mxu0 %v2648
    %3318 = vmatprep.subr.bf16.mxu0 %v2652
    %3319 = vmatpush1.bf16.msra.mxu0 %v2651
    %3320 = vmatprep.subr.bf16.mxu0 %v2655
    %3321 = vmatpush1.bf16.msra.mxu0 %v2654
    %3322 = vmatprep.subr.bf16.mxu0 0
    %3323 = vmatpush1.bf16.msra.mxu0 0
    %3324 = vmatprep.subr.bf16.mxu0 0
    %3325 = vmatpush1.bf16.msra.mxu0 0
    %3326 = vmatprep.subr.bf16.mxu0 0
    %3327 = vmatpush1.bf16.msra.mxu0 0
    %3328 = vmatprep.subr.bf16.mxu0 0
    %3329 = vmatpush1.bf16.msra.mxu0 0
    %3330 = vmatprep.subr.bf16.mxu0 0
    %3331 = vmatpush1.bf16.msra.mxu0 0
    %3332 = vmatprep.subr.bf16.mxu0 0
    %3333 = vmatpush1.bf16.msra.mxu0 0
    %3334 = vmatprep.subr.bf16.mxu0 0
    %3335 = vmatpush1.bf16.msra.mxu0 0
    %3336 = vmatprep.subr.bf16.mxu0 0
    %3337 = vmatpush1.bf16.msra.mxu0 0
    %3338 = vmatprep.mubr.bf16.mxu0 0
    %3339 = vmatmul.mubr.bf16.gmra.mrb[0].mxu0 %v3137
    %v3340 = vpop.f32.mrb[0].mxu0
    %v3341 = vadd.f32 0.0, %v3340
    %v3342 = vpop.f32.mrb[0].mxu0
    %v3343 = vadd.f32 0.0, %v3342
    %v3344 = vpop.f32.mrb[0].mxu0
    %v3345 = vadd.f32 0.0, %v3344
    %v3346 = vpop.f32.mrb[0].mxu0
    %v3347 = vadd.f32 0.0, %v3346
    %3348 = vdwg.mxu0
    %3349 = vmatprep.subr.bf16.mxu0 0
    %3350 = vmatpush1.bf16.msra.mxu0 %v2635
    %3351 = vmatprep.subr.bf16.mxu0 0
    %3352 = vmatpush1.bf16.msra.mxu0 %v2638
    %3353 = vmatprep.subr.bf16.mxu0 0
    %3354 = vmatpush1.bf16.msra.mxu0 %v2641
    %3355 = vmatprep.subr.bf16.mxu0 0
    %3356 = vmatpush1.bf16.msra.mxu0 %v2644
    %3357 = vmatprep.subr.bf16.mxu0 0
    %3358 = vmatpush1.bf16.msra.mxu0 %v2647
    %3359 = vmatprep.subr.bf16.mxu0 0
    %3360 = vmatpush1.bf16.msra.mxu0 %v2650
    %3361 = vmatprep.subr.bf16.mxu0 0
    %3362 = vmatpush1.bf16.msra.mxu0 %v2653
    %3363 = vmatprep.subr.bf16.mxu0 0
    %3364 = vmatpush1.bf16.msra.mxu0 %v2656
    %3365 = vmatprep.subr.bf16.mxu0 0
    %3366 = vmatpush1.bf16.msra.mxu0 0
    %3367 = vmatprep.subr.bf16.mxu0 0
    %3368 = vmatpush1.bf16.msra.mxu0 0
    %3369 = vmatprep.subr.bf16.mxu0 0
    %3370 = vmatpush1.bf16.msra.mxu0 0
    %3371 = vmatprep.subr.bf16.mxu0 0
    %3372 = vmatpush1.bf16.msra.mxu0 0
    %3373 = vmatprep.subr.bf16.mxu0 0
    %3374 = vmatpush1.bf16.msra.mxu0 0
    %3375 = vmatprep.subr.bf16.mxu0 0
    %3376 = vmatpush1.bf16.msra.mxu0 0
    %3377 = vmatprep.subr.bf16.mxu0 0
    %3378 = vmatpush1.bf16.msra.mxu0 0
    %3379 = vmatprep.subr.bf16.mxu0 0
    %3380 = vmatpush1.bf16.msra.mxu0 0
    %3381 = vmatprep.mubr.bf16.mxu0 0
    %3382 = vmatmul.mubr.bf16.gmra.mrb[0].mxu0 %v3137
    %v3383 = vpop.f32.mrb[0].mxu0
    %v3384 = vadd.f32 0.0, %v3383
    %v3385 = vpop.f32.mrb[0].mxu0
    %v3386 = vpop.f32.mrb[0].mxu0
    %v3387 = vadd.f32 0.0, %v3386
    %v3388 = vpop.f32.mrb[0].mxu0
    %3389 = vdwg.mxu0
    %v3390 = vadd.f32 %v3257, %v3341
    %v3391 = vadd.f32 %v3259, %v3343
    %v3392 = vadd.f32 %v3261, %v3345
    %v3393 = vadd.f32 %v3263, %v3347
    %v3394 = vadd.f32 %v3390, %v2773
    %v3395 = vadd.f32 %v3391, %v2777
    %v3396 = vadd.f32 %v3392, %v2773
    %v3397 = vadd.f32 %v3393, %v2777
    %v3398 = vxor.u32 %v3394, 2147483648
    %v3399 = vxor.u32 %v3395, 2147483648
    %v3400 = vxor.u32 %v3396, 2147483648
    %v3401 = vxor.u32 %v3397, 2147483648
    %v3402 = vmul.f32 %v3398, 1.442695
    %v3403 = vpow.pop %v3402
    %v3404 = vmul.f32 %v3399, 1.442695
    %v3405 = vpow.pop %v3404
    %v3406 = vmul.f32 %v3400, 1.442695
    %v3407 = vpow.pop %v3406
    %v3408 = vmul.f32 %v3401, 1.442695
    %v3409 = vpow.pop %v3408
    %v3410 = vadd.f32 %v3403, 1.0
    %v3411 = vadd.f32 %v3405, 1.0
    %v3412 = vadd.f32 %v3407, 1.0
    %v3413 = vadd.f32 %v3409, 1.0
    %v3414 = vrcp.pop %v3410
    %v3415 = vmul.f32 1.0, %v3414
    %v3416 = vrcp.pop %v3411
    %v3417 = vmul.f32 1.0, %v3416
    %v3418 = vrcp.pop %v3412
    %v3419 = vmul.f32 1.0, %v3418
    %v3420 = vrcp.pop %v3413
    %v3421 = vmul.f32 1.0, %v3420
    %v3422 = vadd.f32 %v3300, %v2812
    %v3423 = vadd.f32 %v3303, %v2812
    %v3424 = vadd.f32 %v3384, %v2820
    %v3425 = vadd.f32 %v3387, %v2820
    %v3426 = vmul.f32 %v3415, %v3424
    %v3427 = vmul.f32 %v3419, %v3425
    %v3428 = vadd.f32 %v3422, %v3426
    %v3429 = vadd.f32 %v3423, %v3427
    %v3430 = vtanh.pop %v3428
    %v3431 = vtanh.pop %v3429
    %v3432 = vsub.f32 %v3135, %v3430
    %v3433 = vsub.f32 %v3136, %v3431
    %v3434 = vmul.f32 %v3417, %v3432
    %v3435 = vmul.f32 %v3421, %v3433
    %v3436 = vadd.f32 %v3430, %v3434
    %v3437 = vadd.f32 %v3431, %v3435
    %v3438 = vpack.c.bf16 %v3437, %v3436
    %3439 = vmatprep.subr.bf16.mxu0 0
    %3440 = vmatpush1.bf16.msra.mxu0 %v2177
    %3441 = vmatprep.subr.bf16.mxu0 0
    %3442 = vmatpush1.bf16.msra.mxu0 %v2178
    %3443 = vmatprep.subr.bf16.mxu0 0
    %3444 = vmatpush1.bf16.msra.mxu0 %v2179
    %3445 = vmatprep.subr.bf16.mxu0 0
    %3446 = vmatpush1.bf16.msra.mxu0 %v2180
    %3447 = vmatprep.subr.bf16.mxu0 0
    %3448 = vmatpush1.bf16.msra.mxu0 %v2181
    %3449 = vmatprep.subr.bf16.mxu0 0
    %3450 = vmatpush1.bf16.msra.mxu0 %v2182
    %3451 = vmatprep.subr.bf16.mxu0 0
    %3452 = vmatpush1.bf16.msra.mxu0 %v2183
    %3453 = vmatprep.subr.bf16.mxu0 0
    %3454 = vmatpush1.bf16.msra.mxu0 %v2184
    %3455 = vmatprep.subr.bf16.mxu0 0
    %3456 = vmatpush1.bf16.msra.mxu0 0
    %3457 = vmatprep.subr.bf16.mxu0 0
    %3458 = vmatpush1.bf16.msra.mxu0 0
    %3459 = vmatprep.subr.bf16.mxu0 0
    %3460 = vmatpush1.bf16.msra.mxu0 0
    %3461 = vmatprep.subr.bf16.mxu0 0
    %3462 = vmatpush1.bf16.msra.mxu0 0
    %3463 = vmatprep.subr.bf16.mxu0 0
    %3464 = vmatpush1.bf16.msra.mxu0 0
    %3465 = vmatprep.subr.bf16.mxu0 0
    %3466 = vmatpush1.bf16.msra.mxu0 0
    %3467 = vmatprep.subr.bf16.mxu0 0
    %3468 = vmatpush1.bf16.msra.mxu0 0
    %3469 = vmatprep.subr.bf16.mxu0 0
    %3470 = vmatpush1.bf16.msra.mxu0 0
    %3471 = vmatprep.mubr.bf16.mxu0 0
    %3472 = vmatmul.mubr.bf16.gmra.mrb[0].mxu0 %v3438
    %v3473 = vpop.f32.mrb[0].mxu0
    %v3474 = vadd.f32 %v2143, %v3473
    %v3475 = vpop.f32.mrb[0].mxu0
    %v3476 = vpop.f32.mrb[0].mxu0
    %v3477 = vadd.f32 %v2143, %v3476
    %v3478 = vpop.f32.mrb[0].mxu0
    %3479 = vdwg.mxu0
    %v3480 = vpack.c.bf16 %v3477, %v3474
    %3481 = vmatprep.subr.bf16.mxu0 0
    %3482 = vmatpush1.bf16.msra.mxu0 %v3480
    %3483 = vmatprep.subr.bf16.mxu0 0
    %3484 = vmatpush1.bf16.msra.mxu0 0
    %3485 = vmatprep.subr.bf16.mxu0 0
    %3486 = vmatpush1.bf16.msra.mxu0 0
    %3487 = vmatprep.subr.bf16.mxu0 0
    %3488 = vmatpush1.bf16.msra.mxu0 0
    %3489 = vmatprep.subr.bf16.mxu0 0
    %3490 = vmatpush1.bf16.msra.mxu0 0
    %3491 = vmatprep.subr.bf16.mxu0 0
    %3492 = vmatpush1.bf16.msra.mxu0 0
    %3493 = vmatprep.subr.bf16.mxu0 0
    %3494 = vmatpush1.bf16.msra.mxu0 0
    %3495 = vmatprep.subr.bf16.mxu0 0
    %3496 = vmatpush1.bf16.msra.mxu0 0
    %3497 = vmatprep.subr.bf16.mxu0 0
    %3498 = vmatpush1.bf16.msra.mxu0 0
    %3499 = vmatprep.subr.bf16.mxu0 0
    %3500 = vmatpush1.bf16.msra.mxu0 0
    %3501 = vmatprep.subr.bf16.mxu0 0
    %3502 = vmatpush1.bf16.msra.mxu0 0
    %3503 = vmatprep.subr.bf16.mxu0 0
    %3504 = vmatpush1.bf16.msra.mxu0 0
    %3505 = vmatprep.subr.bf16.mxu0 0
    %3506 = vmatpush1.bf16.msra.mxu0 0
    %3507 = vmatprep.subr.bf16.mxu0 0
    %3508 = vmatpush1.bf16.msra.mxu0 0
    %3509 = vmatprep.subr.bf16.mxu0 0
    %3510 = vmatpush1.bf16.msra.mxu0 0
    %3511 = vmatprep.subr.bf16.mxu0 0
    %3512 = vmatpush1.bf16.msra.mxu0 0
    %3513 = vmatprep.mubr.bf16.mxu0 0
    %3514 = vmatmul.mubr.bf16.gmra.mrb[0].mxu0 %v311
    %v3515 = vpop.f32.mrb[0].mxu0
    %v3516 = vadd.f32 0.0, %v3515
    %v3517 = vpop.f32.mrb[0].mxu0
    %v3518 = vpop.f32.mrb[0].mxu0
    %v3519 = vadd.f32 0.0, %v3518
    %v3520 = vpop.f32.mrb[0].mxu0
    %3521 = vdwg.mxu0
    %v3522 = vpack.c.bf16 %v3519, %v3516
    %3523 = vmatprep.subr.bf16.mxu0 %v2390
    %3524 = vmatpush1.bf16.msra.mxu0 %v2389
    %3525 = vmatprep.subr.bf16.mxu0 %v2393
    %3526 = vmatpush1.bf16.msra.mxu0 %v2392
    %3527 = vmatprep.subr.bf16.mxu0 %v2396
    %3528 = vmatpush1.bf16.msra.mxu0 %v2395
    %3529 = vmatprep.subr.bf16.mxu0 %v2399
    %3530 = vmatpush1.bf16.msra.mxu0 %v2398
    %3531 = vmatprep.subr.bf16.mxu0 %v2402
    %3532 = vmatpush1.bf16.msra.mxu0 %v2401
    %3533 = vmatprep.subr.bf16.mxu0 %v2405
    %3534 = vmatpush1.bf16.msra.mxu0 %v2404
    %3535 = vmatprep.subr.bf16.mxu0 %v2408
    %3536 = vmatpush1.bf16.msra.mxu0 %v2407
    %3537 = vmatprep.subr.bf16.mxu0 %v2411
    %3538 = vmatpush1.bf16.msra.mxu0 %v2410
    %3539 = vmatprep.subr.bf16.mxu0 0
    %3540 = vmatpush1.bf16.msra.mxu0 0
    %3541 = vmatprep.subr.bf16.mxu0 0
    %3542 = vmatpush1.bf16.msra.mxu0 0
    %3543 = vmatprep.subr.bf16.mxu0 0
    %3544 = vmatpush1.bf16.msra.mxu0 0
    %3545 = vmatprep.subr.bf16.mxu0 0
    %3546 = vmatpush1.bf16.msra.mxu0 0
    %3547 = vmatprep.subr.bf16.mxu0 0
    %3548 = vmatpush1.bf16.msra.mxu0 0
    %3549 = vmatprep.subr.bf16.mxu0 0
    %3550 = vmatpush1.bf16.msra.mxu0 0
    %3551 = vmatprep.subr.bf16.mxu0 0
    %3552 = vmatpush1.bf16.msra.mxu0 0
    %3553 = vmatprep.subr.bf16.mxu0 0
    %3554 = vmatpush1.bf16.msra.mxu0 0
    %3555 = vmatprep.mubr.bf16.mxu0 0
    %3556 = vmatmul.mubr.bf16.gmra.mrb[0].mxu0 %v3522
    %v3557 = vpop.f32.mrb[0].mxu0
    %v3558 = vadd.f32 0.0, %v3557
    %v3559 = vpop.f32.mrb[0].mxu0
    %v3560 = vadd.f32 0.0, %v3559
    %v3561 = vpop.f32.mrb[0].mxu0
    %v3562 = vadd.f32 0.0, %v3561
    %v3563 = vpop.f32.mrb[0].mxu0
    %v3564 = vadd.f32 0.0, %v3563
    %3565 = vdwg.mxu0
    %3566 = vmatprep.subr.bf16.mxu0 0
    %3567 = vmatpush1.bf16.msra.mxu0 %v2391
    %3568 = vmatprep.subr.bf16.mxu0 0
    %3569 = vmatpush1.bf16.msra.mxu0 %v2394
    %3570 = vmatprep.subr.bf16.mxu0 0
    %3571 = vmatpush1.bf16.msra.mxu0 %v2397
    %3572 = vmatprep.subr.bf16.mxu0 0
    %3573 = vmatpush1.bf16.msra.mxu0 %v2400
    %3574 = vmatprep.subr.bf16.mxu0 0
    %3575 = vmatpush1.bf16.msra.mxu0 %v2403
    %3576 = vmatprep.subr.bf16.mxu0 0
    %3577 = vmatpush1.bf16.msra.mxu0 %v2406
    %3578 = vmatprep.subr.bf16.mxu0 0
    %3579 = vmatpush1.bf16.msra.mxu0 %v2409
    %3580 = vmatprep.subr.bf16.mxu0 0
    %3581 = vmatpush1.bf16.msra.mxu0 %v2412
    %3582 = vmatprep.subr.bf16.mxu0 0
    %3583 = vmatpush1.bf16.msra.mxu0 0
    %3584 = vmatprep.subr.bf16.mxu0 0
    %3585 = vmatpush1.bf16.msra.mxu0 0
    %3586 = vmatprep.subr.bf16.mxu0 0
    %3587 = vmatpush1.bf16.msra.mxu0 0
    %3588 = vmatprep.subr.bf16.mxu0 0
    %3589 = vmatpush1.bf16.msra.mxu0 0
    %3590 = vmatprep.subr.bf16.mxu0 0
    %3591 = vmatpush1.bf16.msra.mxu0 0
    %3592 = vmatprep.subr.bf16.mxu0 0
    %3593 = vmatpush1.bf16.msra.mxu0 0
    %3594 = vmatprep.subr.bf16.mxu0 0
    %3595 = vmatpush1.bf16.msra.mxu0 0
    %3596 = vmatprep.subr.bf16.mxu0 0
    %3597 = vmatpush1.bf16.msra.mxu0 0
    %3598 = vmatprep.mubr.bf16.mxu0 0
    %3599 = vmatmul.mubr.bf16.gmra.mrb[0].mxu0 %v3522
    %v3600 = vpop.f32.mrb[0].mxu0
    %v3601 = vadd.f32 0.0, %v3600
    %v3602 = vpop.f32.mrb[0].mxu0
    %v3603 = vpop.f32.mrb[0].mxu0
    %v3604 = vadd.f32 0.0, %v3603
    %v3605 = vpop.f32.mrb[0].mxu0
    %3606 = vdwg.mxu0
    %3607 = vmatprep.subr.bf16.mxu0 %v2634
    %3608 = vmatpush1.bf16.msra.mxu0 %v2633
    %3609 = vmatprep.subr.bf16.mxu0 %v2637
    %3610 = vmatpush1.bf16.msra.mxu0 %v2636
    %3611 = vmatprep.subr.bf16.mxu0 %v2640
    %3612 = vmatpush1.bf16.msra.mxu0 %v2639
    %3613 = vmatprep.subr.bf16.mxu0 %v2643
    %3614 = vmatpush1.bf16.msra.mxu0 %v2642
    %3615 = vmatprep.subr.bf16.mxu0 %v2646
    %3616 = vmatpush1.bf16.msra.mxu0 %v2645
    %3617 = vmatprep.subr.bf16.mxu0 %v2649
    %3618 = vmatpush1.bf16.msra.mxu0 %v2648
    %3619 = vmatprep.subr.bf16.mxu0 %v2652
    %3620 = vmatpush1.bf16.msra.mxu0 %v2651
    %3621 = vmatprep.subr.bf16.mxu0 %v2655
    %3622 = vmatpush1.bf16.msra.mxu0 %v2654
    %3623 = vmatprep.subr.bf16.mxu0 0
    %3624 = vmatpush1.bf16.msra.mxu0 0
    %3625 = vmatprep.subr.bf16.mxu0 0
    %3626 = vmatpush1.bf16.msra.mxu0 0
    %3627 = vmatprep.subr.bf16.mxu0 0
    %3628 = vmatpush1.bf16.msra.mxu0 0
    %3629 = vmatprep.subr.bf16.mxu0 0
    %3630 = vmatpush1.bf16.msra.mxu0 0
    %3631 = vmatprep.subr.bf16.mxu0 0
    %3632 = vmatpush1.bf16.msra.mxu0 0
    %3633 = vmatprep.subr.bf16.mxu0 0
    %3634 = vmatpush1.bf16.msra.mxu0 0
    %3635 = vmatprep.subr.bf16.mxu0 0
    %3636 = vmatpush1.bf16.msra.mxu0 0
    %3637 = vmatprep.subr.bf16.mxu0 0
    %3638 = vmatpush1.bf16.msra.mxu0 0
    %3639 = vmatprep.mubr.bf16.mxu0 0
    %3640 = vmatmul.mubr.bf16.gmra.mrb[0].mxu0 %v3438
    %v3641 = vpop.f32.mrb[0].mxu0
    %v3642 = vadd.f32 0.0, %v3641
    %v3643 = vpop.f32.mrb[0].mxu0
    %v3644 = vadd.f32 0.0, %v3643
    %v3645 = vpop.f32.mrb[0].mxu0
    %v3646 = vadd.f32 0.0, %v3645
    %v3647 = vpop.f32.mrb[0].mxu0
    %v3648 = vadd.f32 0.0, %v3647
    %3649 = vdwg.mxu0
    %3650 = vmatprep.subr.bf16.mxu0 0
    %3651 = vmatpush1.bf16.msra.mxu0 %v2635
    %3652 = vmatprep.subr.bf16.mxu0 0
    %3653 = vmatpush1.bf16.msra.mxu0 %v2638
    %3654 = vmatprep.subr.bf16.mxu0 0
    %3655 = vmatpush1.bf16.msra.mxu0 %v2641
    %3656 = vmatprep.subr.bf16.mxu0 0
    %3657 = vmatpush1.bf16.msra.mxu0 %v2644
    %3658 = vmatprep.subr.bf16.mxu0 0
    %3659 = vmatpush1.bf16.msra.mxu0 %v2647
    %3660 = vmatprep.subr.bf16.mxu0 0
    %3661 = vmatpush1.bf16.msra.mxu0 %v2650
    %3662 = vmatprep.subr.bf16.mxu0 0
    %3663 = vmatpush1.bf16.msra.mxu0 %v2653
    %3664 = vmatprep.subr.bf16.mxu0 0
    %3665 = vmatpush1.bf16.msra.mxu0 %v2656
    %3666 = vmatprep.subr.bf16.mxu0 0
    %3667 = vmatpush1.bf16.msra.mxu0 0
    %3668 = vmatprep.subr.bf16.mxu0 0
    %3669 = vmatpush1.bf16.msra.mxu0 0
    %3670 = vmatprep.subr.bf16.mxu0 0
    %3671 = vmatpush1.bf16.msra.mxu0 0
    %3672 = vmatprep.subr.bf16.mxu0 0
    %3673 = vmatpush1.bf16.msra.mxu0 0
    %3674 = vmatprep.subr.bf16.mxu0 0
    %3675 = vmatpush1.bf16.msra.mxu0 0
    %3676 = vmatprep.subr.bf16.mxu0 0
    %3677 = vmatpush1.bf16.msra.mxu0 0
    %3678 = vmatprep.subr.bf16.mxu0 0
    %3679 = vmatpush1.bf16.msra.mxu0 0
    %3680 = vmatprep.subr.bf16.mxu0 0
    %3681 = vmatpush1.bf16.msra.mxu0 0
    %3682 = vmatprep.mubr.bf16.mxu0 0
    %3683 = vmatmul.mubr.bf16.gmra.mrb[0].mxu0 %v3438
    %v3684 = vpop.f32.mrb[0].mxu0
    %v3685 = vadd.f32 0.0, %v3684
    %v3686 = vpop.f32.mrb[0].mxu0
    %v3687 = vpop.f32.mrb[0].mxu0
    %v3688 = vadd.f32 0.0, %v3687
    %v3689 = vpop.f32.mrb[0].mxu0
    %3690 = vdwg.mxu0
    %v3691 = vadd.f32 %v3558, %v3642
    %v3692 = vadd.f32 %v3560, %v3644
    %v3693 = vadd.f32 %v3562, %v3646
    %v3694 = vadd.f32 %v3564, %v3648
    %v3695 = vadd.f32 %v3691, %v2773
    %v3696 = vadd.f32 %v3692, %v2777
    %v3697 = vadd.f32 %v3693, %v2773
    %v3698 = vadd.f32 %v3694, %v2777
    %v3699 = vxor.u32 %v3695, 2147483648
    %v3700 = vxor.u32 %v3696, 2147483648
    %v3701 = vxor.u32 %v3697, 2147483648
    %v3702 = vxor.u32 %v3698, 2147483648
    %v3703 = vmul.f32 %v3699, 1.442695
    %v3704 = vpow.pop %v3703
    %v3705 = vmul.f32 %v3700, 1.442695
    %v3706 = vpow.pop %v3705
    %v3707 = vmul.f32 %v3701, 1.442695
    %v3708 = vpow.pop %v3707
    %v3709 = vmul.f32 %v3702, 1.442695
    %v3710 = vpow.pop %v3709
    %v3711 = vadd.f32 %v3704, 1.0
    %v3712 = vadd.f32 %v3706, 1.0
    %v3713 = vadd.f32 %v3708, 1.0
    %v3714 = vadd.f32 %v3710, 1.0
    %v3715 = vrcp.pop %v3711
    %v3716 = vmul.f32 1.0, %v3715
    %v3717 = vrcp.pop %v3712
    %v3718 = vmul.f32 1.0, %v3717
    %v3719 = vrcp.pop %v3713
    %v3720 = vmul.f32 1.0, %v3719
    %v3721 = vrcp.pop %v3714
    %v3722 = vmul.f32 1.0, %v3721
    %v3723 = vadd.f32 %v3601, %v2812
    %v3724 = vadd.f32 %v3604, %v2812
    %v3725 = vadd.f32 %v3685, %v2820
    %v3726 = vadd.f32 %v3688, %v2820
    %v3727 = vmul.f32 %v3716, %v3725
    %v3728 = vmul.f32 %v3720, %v3726
    %v3729 = vadd.f32 %v3723, %v3727
    %v3730 = vadd.f32 %v3724, %v3728
    %v3731 = vtanh.pop %v3729
    %v3732 = vtanh.pop %v3730
    %v3733 = vsub.f32 %v3436, %v3731
    %v3734 = vsub.f32 %v3437, %v3732
    %v3735 = vmul.f32 %v3718, %v3733
    %v3736 = vmul.f32 %v3722, %v3734
    %v3737 = vadd.f32 %v3731, %v3735
    %v3738 = vadd.f32 %v3732, %v3736
    %v3739 = vpack.c.bf16 %v3738, %v3737
    %3740 = vmatprep.subr.bf16.mxu0 0
    %3741 = vmatpush1.bf16.msra.mxu0 %v2177
    %3742 = vmatprep.subr.bf16.mxu0 0
    %3743 = vmatpush1.bf16.msra.mxu0 %v2178
    %3744 = vmatprep.subr.bf16.mxu0 0
    %3745 = vmatpush1.bf16.msra.mxu0 %v2179
    %3746 = vmatprep.subr.bf16.mxu0 0
    %3747 = vmatpush1.bf16.msra.mxu0 %v2180
    %3748 = vmatprep.subr.bf16.mxu0 0
    %3749 = vmatpush1.bf16.msra.mxu0 %v2181
    %3750 = vmatprep.subr.bf16.mxu0 0
    %3751 = vmatpush1.bf16.msra.mxu0 %v2182
    %3752 = vmatprep.subr.bf16.mxu0 0
    %3753 = vmatpush1.bf16.msra.mxu0 %v2183
    %3754 = vmatprep.subr.bf16.mxu0 0
    %3755 = vmatpush1.bf16.msra.mxu0 %v2184
    %3756 = vmatprep.subr.bf16.mxu0 0
    %3757 = vmatpush1.bf16.msra.mxu0 0
    %3758 = vmatprep.subr.bf16.mxu0 0
    %3759 = vmatpush1.bf16.msra.mxu0 0
    %3760 = vmatprep.subr.bf16.mxu0 0
    %3761 = vmatpush1.bf16.msra.mxu0 0
    %3762 = vmatprep.subr.bf16.mxu0 0
    %3763 = vmatpush1.bf16.msra.mxu0 0
    %3764 = vmatprep.subr.bf16.mxu0 0
    %3765 = vmatpush1.bf16.msra.mxu0 0
    %3766 = vmatprep.subr.bf16.mxu0 0
    %3767 = vmatpush1.bf16.msra.mxu0 0
    %3768 = vmatprep.subr.bf16.mxu0 0
    %3769 = vmatpush1.bf16.msra.mxu0 0
    %3770 = vmatprep.subr.bf16.mxu0 0
    %3771 = vmatpush1.bf16.msra.mxu0 0
    %3772 = vmatprep.mubr.bf16.mxu0 0
    %3773 = vmatmul.mubr.bf16.gmra.mrb[0].mxu0 %v3739
    %v3774 = vpop.f32.mrb[0].mxu0
    %v3775 = vadd.f32 %v2143, %v3774
    %v3776 = vpop.f32.mrb[0].mxu0
    %v3777 = vpop.f32.mrb[0].mxu0
    %v3778 = vadd.f32 %v2143, %v3777
    %v3779 = vpop.f32.mrb[0].mxu0
    %3780 = vdwg.mxu0
    %v3781 = vpack.c.bf16 %v3778, %v3775
    %3782 = vmatprep.subr.bf16.mxu0 0
    %3783 = vmatpush1.bf16.msra.mxu0 %v3781
    %3784 = vmatprep.subr.bf16.mxu0 0
    %3785 = vmatpush1.bf16.msra.mxu0 0
    %3786 = vmatprep.subr.bf16.mxu0 0
    %3787 = vmatpush1.bf16.msra.mxu0 0
    %3788 = vmatprep.subr.bf16.mxu0 0
    %3789 = vmatpush1.bf16.msra.mxu0 0
    %3790 = vmatprep.subr.bf16.mxu0 0
    %3791 = vmatpush1.bf16.msra.mxu0 0
    %3792 = vmatprep.subr.bf16.mxu0 0
    %3793 = vmatpush1.bf16.msra.mxu0 0
    %3794 = vmatprep.subr.bf16.mxu0 0
    %3795 = vmatpush1.bf16.msra.mxu0 0
    %3796 = vmatprep.subr.bf16.mxu0 0
    %3797 = vmatpush1.bf16.msra.mxu0 0
    %3798 = vmatprep.subr.bf16.mxu0 0
    %3799 = vmatpush1.bf16.msra.mxu0 0
    %3800 = vmatprep.subr.bf16.mxu0 0
    %3801 = vmatpush1.bf16.msra.mxu0 0
    %3802 = vmatprep.subr.bf16.mxu0 0
    %3803 = vmatpush1.bf16.msra.mxu0 0
    %3804 = vmatprep.subr.bf16.mxu0 0
    %3805 = vmatpush1.bf16.msra.mxu0 0
    %3806 = vmatprep.subr.bf16.mxu0 0
    %3807 = vmatpush1.bf16.msra.mxu0 0
    %3808 = vmatprep.subr.bf16.mxu0 0
    %3809 = vmatpush1.bf16.msra.mxu0 0
    %3810 = vmatprep.subr.bf16.mxu0 0
    %3811 = vmatpush1.bf16.msra.mxu0 0
    %3812 = vmatprep.subr.bf16.mxu0 0
    %3813 = vmatpush1.bf16.msra.mxu0 0
    %3814 = vmatprep.mubr.bf16.mxu0 0
    %3815 = vmatmul.mubr.bf16.gmra.mrb[0].mxu0 %v311
    %v3816 = vpop.f32.mrb[0].mxu0
    %v3817 = vadd.f32 0.0, %v3816
    %v3818 = vpop.f32.mrb[0].mxu0
    %v3819 = vpop.f32.mrb[0].mxu0
    %v3820 = vadd.f32 0.0, %v3819
    %v3821 = vpop.f32.mrb[0].mxu0
    %3822 = vdwg.mxu0
    %v3823 = vpack.c.bf16 %v3820, %v3817
    %3824 = vmatprep.subr.bf16.mxu0 %v2390
    %3825 = vmatpush1.bf16.msra.mxu0 %v2389
    %3826 = vmatprep.subr.bf16.mxu0 %v2393
    %3827 = vmatpush1.bf16.msra.mxu0 %v2392
    %3828 = vmatprep.subr.bf16.mxu0 %v2396
    %3829 = vmatpush1.bf16.msra.mxu0 %v2395
    %3830 = vmatprep.subr.bf16.mxu0 %v2399
    %3831 = vmatpush1.bf16.msra.mxu0 %v2398
    %3832 = vmatprep.subr.bf16.mxu0 %v2402
    %3833 = vmatpush1.bf16.msra.mxu0 %v2401
    %3834 = vmatprep.subr.bf16.mxu0 %v2405
    %3835 = vmatpush1.bf16.msra.mxu0 %v2404
    %3836 = vmatprep.subr.bf16.mxu0 %v2408
    %3837 = vmatpush1.bf16.msra.mxu0 %v2407
    %3838 = vmatprep.subr.bf16.mxu0 %v2411
    %3839 = vmatpush1.bf16.msra.mxu0 %v2410
    %3840 = vmatprep.subr.bf16.mxu0 0
    %3841 = vmatpush1.bf16.msra.mxu0 0
    %3842 = vmatprep.subr.bf16.mxu0 0
    %3843 = vmatpush1.bf16.msra.mxu0 0
    %3844 = vmatprep.subr.bf16.mxu0 0
    %3845 = vmatpush1.bf16.msra.mxu0 0
    %3846 = vmatprep.subr.bf16.mxu0 0
    %3847 = vmatpush1.bf16.msra.mxu0 0
    %3848 = vmatprep.subr.bf16.mxu0 0
    %3849 = vmatpush1.bf16.msra.mxu0 0
    %3850 = vmatprep.subr.bf16.mxu0 0
    %3851 = vmatpush1.bf16.msra.mxu0 0
    %3852 = vmatprep.subr.bf16.mxu0 0
    %3853 = vmatpush1.bf16.msra.mxu0 0
    %3854 = vmatprep.subr.bf16.mxu0 0
    %3855 = vmatpush1.bf16.msra.mxu0 0
    %3856 = vmatprep.mubr.bf16.mxu0 0
    %3857 = vmatmul.mubr.bf16.gmra.mrb[0].mxu0 %v3823
    %v3858 = vpop.f32.mrb[0].mxu0
    %v3859 = vadd.f32 0.0, %v3858
    %v3860 = vpop.f32.mrb[0].mxu0
    %v3861 = vadd.f32 0.0, %v3860
    %v3862 = vpop.f32.mrb[0].mxu0
    %v3863 = vadd.f32 0.0, %v3862
    %v3864 = vpop.f32.mrb[0].mxu0
    %v3865 = vadd.f32 0.0, %v3864
    %3866 = vdwg.mxu0
    %3867 = vmatprep.subr.bf16.mxu0 0
    %3868 = vmatpush1.bf16.msra.mxu0 %v2391
    %3869 = vmatprep.subr.bf16.mxu0 0
    %3870 = vmatpush1.bf16.msra.mxu0 %v2394
    %3871 = vmatprep.subr.bf16.mxu0 0
    %3872 = vmatpush1.bf16.msra.mxu0 %v2397
    %3873 = vmatprep.subr.bf16.mxu0 0
    %3874 = vmatpush1.bf16.msra.mxu0 %v2400
    %3875 = vmatprep.subr.bf16.mxu0 0
    %3876 = vmatpush1.bf16.msra.mxu0 %v2403
    %3877 = vmatprep.subr.bf16.mxu0 0
    %3878 = vmatpush1.bf16.msra.mxu0 %v2406
    %3879 = vmatprep.subr.bf16.mxu0 0
    %3880 = vmatpush1.bf16.msra.mxu0 %v2409
    %3881 = vmatprep.subr.bf16.mxu0 0
    %3882 = vmatpush1.bf16.msra.mxu0 %v2412
    %3883 = vmatprep.subr.bf16.mxu0 0
    %3884 = vmatpush1.bf16.msra.mxu0 0
    %3885 = vmatprep.subr.bf16.mxu0 0
    %3886 = vmatpush1.bf16.msra.mxu0 0
    %3887 = vmatprep.subr.bf16.mxu0 0
    %3888 = vmatpush1.bf16.msra.mxu0 0
    %3889 = vmatprep.subr.bf16.mxu0 0
    %3890 = vmatpush1.bf16.msra.mxu0 0
    %3891 = vmatprep.subr.bf16.mxu0 0
    %3892 = vmatpush1.bf16.msra.mxu0 0
    %3893 = vmatprep.subr.bf16.mxu0 0
    %3894 = vmatpush1.bf16.msra.mxu0 0
    %3895 = vmatprep.subr.bf16.mxu0 0
    %3896 = vmatpush1.bf16.msra.mxu0 0
    %3897 = vmatprep.subr.bf16.mxu0 0
    %3898 = vmatpush1.bf16.msra.mxu0 0
    %3899 = vmatprep.mubr.bf16.mxu0 0
    %3900 = vmatmul.mubr.bf16.gmra.mrb[0].mxu0 %v3823
    %v3901 = vpop.f32.mrb[0].mxu0
    %v3902 = vadd.f32 0.0, %v3901
    %v3903 = vpop.f32.mrb[0].mxu0
    %v3904 = vpop.f32.mrb[0].mxu0
    %v3905 = vadd.f32 0.0, %v3904
    %v3906 = vpop.f32.mrb[0].mxu0
    %3907 = vdwg.mxu0
    %3908 = vmatprep.subr.bf16.mxu0 %v2634
    %3909 = vmatpush1.bf16.msra.mxu0 %v2633
    %3910 = vmatprep.subr.bf16.mxu0 %v2637
    %3911 = vmatpush1.bf16.msra.mxu0 %v2636
    %3912 = vmatprep.subr.bf16.mxu0 %v2640
    %3913 = vmatpush1.bf16.msra.mxu0 %v2639
    %3914 = vmatprep.subr.bf16.mxu0 %v2643
    %3915 = vmatpush1.bf16.msra.mxu0 %v2642
    %3916 = vmatprep.subr.bf16.mxu0 %v2646
    %3917 = vmatpush1.bf16.msra.mxu0 %v2645
    %3918 = vmatprep.subr.bf16.mxu0 %v2649
    %3919 = vmatpush1.bf16.msra.mxu0 %v2648
    %3920 = vmatprep.subr.bf16.mxu0 %v2652
    %3921 = vmatpush1.bf16.msra.mxu0 %v2651
    %3922 = vmatprep.subr.bf16.mxu0 %v2655
    %3923 = vmatpush1.bf16.msra.mxu0 %v2654
    %3924 = vmatprep.subr.bf16.mxu0 0
    %3925 = vmatpush1.bf16.msra.mxu0 0
    %3926 = vmatprep.subr.bf16.mxu0 0
    %3927 = vmatpush1.bf16.msra.mxu0 0
    %3928 = vmatprep.subr.bf16.mxu0 0
    %3929 = vmatpush1.bf16.msra.mxu0 0
    %3930 = vmatprep.subr.bf16.mxu0 0
    %3931 = vmatpush1.bf16.msra.mxu0 0
    %3932 = vmatprep.subr.bf16.mxu0 0
    %3933 = vmatpush1.bf16.msra.mxu0 0
    %3934 = vmatprep.subr.bf16.mxu0 0
    %3935 = vmatpush1.bf16.msra.mxu0 0
    %3936 = vmatprep.subr.bf16.mxu0 0
    %3937 = vmatpush1.bf16.msra.mxu0 0
    %3938 = vmatprep.subr.bf16.mxu0 0
    %3939 = vmatpush1.bf16.msra.mxu0 0
    %3940 = vmatprep.mubr.bf16.mxu0 0
    %3941 = vmatmul.mubr.bf16.gmra.mrb[0].mxu0 %v3739
    %v3942 = vpop.f32.mrb[0].mxu0
    %v3943 = vadd.f32 0.0, %v3942
    %v3944 = vpop.f32.mrb[0].mxu0
    %v3945 = vadd.f32 0.0, %v3944
    %v3946 = vpop.f32.mrb[0].mxu0
    %v3947 = vadd.f32 0.0, %v3946
    %v3948 = vpop.f32.mrb[0].mxu0
    %v3949 = vadd.f32 0.0, %v3948
    %3950 = vdwg.mxu0
    %3951 = vmatprep.subr.bf16.mxu0 0
    %3952 = vmatpush1.bf16.msra.mxu0 %v2635
    %3953 = vmatprep.subr.bf16.mxu0 0
    %3954 = vmatpush1.bf16.msra.mxu0 %v2638
    %3955 = vmatprep.subr.bf16.mxu0 0
    %3956 = vmatpush1.bf16.msra.mxu0 %v2641
    %3957 = vmatprep.subr.bf16.mxu0 0
    %3958 = vmatpush1.bf16.msra.mxu0 %v2644
    %3959 = vmatprep.subr.bf16.mxu0 0
    %3960 = vmatpush1.bf16.msra.mxu0 %v2647
    %3961 = vmatprep.subr.bf16.mxu0 0
    %3962 = vmatpush1.bf16.msra.mxu0 %v2650
    %3963 = vmatprep.subr.bf16.mxu0 0
    %3964 = vmatpush1.bf16.msra.mxu0 %v2653
    %3965 = vmatprep.subr.bf16.mxu0 0
    %3966 = vmatpush1.bf16.msra.mxu0 %v2656
    %3967 = vmatprep.subr.bf16.mxu0 0
    %3968 = vmatpush1.bf16.msra.mxu0 0
    %3969 = vmatprep.subr.bf16.mxu0 0
    %3970 = vmatpush1.bf16.msra.mxu0 0
    %3971 = vmatprep.subr.bf16.mxu0 0
    %3972 = vmatpush1.bf16.msra.mxu0 0
    %3973 = vmatprep.subr.bf16.mxu0 0
    %3974 = vmatpush1.bf16.msra.mxu0 0
    %3975 = vmatprep.subr.bf16.mxu0 0
    %3976 = vmatpush1.bf16.msra.mxu0 0
    %3977 = vmatprep.subr.bf16.mxu0 0
    %3978 = vmatpush1.bf16.msra.mxu0 0
    %3979 = vmatprep.subr.bf16.mxu0 0
    %3980 = vmatpush1.bf16.msra.mxu0 0
    %3981 = vmatprep.subr.bf16.mxu0 0
    %3982 = vmatpush1.bf16.msra.mxu0 0
    %3983 = vmatprep.mubr.bf16.mxu0 0
    %3984 = vmatmul.mubr.bf16.gmra.mrb[0].mxu0 %v3739
    %v3985 = vpop.f32.mrb[0].mxu0
    %v3986 = vadd.f32 0.0, %v3985
    %v3987 = vpop.f32.mrb[0].mxu0
    %v3988 = vpop.f32.mrb[0].mxu0
    %v3989 = vadd.f32 0.0, %v3988
    %v3990 = vpop.f32.mrb[0].mxu0
    %3991 = vdwg.mxu0
    %v3992 = vadd.f32 %v3859, %v3943
    %v3993 = vadd.f32 %v3861, %v3945
    %v3994 = vadd.f32 %v3863, %v3947
    %v3995 = vadd.f32 %v3865, %v3949
    %v3996 = vadd.f32 %v3992, %v2773
    %v3997 = vadd.f32 %v3993, %v2777
    %v3998 = vadd.f32 %v3994, %v2773
    %v3999 = vadd.f32 %v3995, %v2777
    %v4000 = vxor.u32 %v3996, 2147483648
    %v4001 = vxor.u32 %v3997, 2147483648
    %v4002 = vxor.u32 %v3998, 2147483648
    %v4003 = vxor.u32 %v3999, 2147483648
    %v4004 = vmul.f32 %v4000, 1.442695
    %v4005 = vpow.pop %v4004
    %v4006 = vmul.f32 %v4001, 1.442695
    %v4007 = vpow.pop %v4006
    %v4008 = vmul.f32 %v4002, 1.442695
    %v4009 = vpow.pop %v4008
    %v4010 = vmul.f32 %v4003, 1.442695
    %v4011 = vpow.pop %v4010
    %v4012 = vadd.f32 %v4005, 1.0
    %v4013 = vadd.f32 %v4007, 1.0
    %v4014 = vadd.f32 %v4009, 1.0
    %v4015 = vadd.f32 %v4011, 1.0
    %v4016 = vrcp.pop %v4012
    %v4017 = vmul.f32 1.0, %v4016
    %v4018 = vrcp.pop %v4013
    %v4019 = vmul.f32 1.0, %v4018
    %v4020 = vrcp.pop %v4014
    %v4021 = vmul.f32 1.0, %v4020
    %v4022 = vrcp.pop %v4015
    %v4023 = vmul.f32 1.0, %v4022
    %v4024 = vadd.f32 %v3902, %v2812
    %v4025 = vadd.f32 %v3905, %v2812
    %v4026 = vadd.f32 %v3986, %v2820
    %v4027 = vadd.f32 %v3989, %v2820
    %v4028 = vmul.f32 %v4017, %v4026
    %v4029 = vmul.f32 %v4021, %v4027
    %v4030 = vadd.f32 %v4024, %v4028
    %v4031 = vadd.f32 %v4025, %v4029
    %v4032 = vtanh.pop %v4030
    %v4033 = vtanh.pop %v4031
    %v4034 = vsub.f32 %v3737, %v4032
    %v4035 = vsub.f32 %v3738, %v4033
    %v4036 = vmul.f32 %v4019, %v4034
    %v4037 = vmul.f32 %v4023, %v4035
    %v4038 = vadd.f32 %v4032, %v4036
    %v4039 = vadd.f32 %v4033, %v4037
    %v4040 = vld [vmem:[#allocation16] sm:$0xff]
    %v4041 = vld [vmem:[#allocation16 + $0x8] sm:$0xff]
    %v4042 = vld [vmem:[#allocation16 + $0x10] sm:$0xff]
    %v4043 = vld [vmem:[#allocation16 + $0x18] sm:$0xff]
    %v4044 = vld [vmem:[#allocation16 + $0x20] sm:$0xff]
    %v4045 = vld [vmem:[#allocation16 + $0x28] sm:$0xff]
    %v4046 = vld [vmem:[#allocation16 + $0x30] sm:$0xff]
    %v4047 = vld [vmem:[#allocation16 + $0x38] sm:$0xff]
    %v4048 = vld [vmem:[#allocation16 + $0x40] sm:$0xff]
    %v4049 = vld [vmem:[#allocation16 + $0x48] sm:$0xff]
    %v4050 = vld [vmem:[#allocation16 + $0x50] sm:$0xff]
    %v4051 = vld [vmem:[#allocation16 + $0x58] sm:$0xff]
    %v4052 = vld [vmem:[#allocation16 + $0x60] sm:$0xff]
    %v4053 = vld [vmem:[#allocation16 + $0x68] sm:$0xff]
    %v4054 = vld [vmem:[#allocation16 + $0x70] sm:$0xff]
    %v4055 = vld [vmem:[#allocation16 + $0x78] sm:$0xff]
    %v4056 = vld [vmem:[%s17] sm:$0x1]
    %v4058 = vlaneseq
    %v4059 = vshrl.u32 %v4058, 7
    %v4060 = vsub.s32 0, %v4059
    %v4061 = vrot.slane %v4056, %v4060
    %4063 = vmatprep.subr.mxu0 0.0
    %4064 = vmatpush1.msra.mxu0 %v4040
    %4065 = vmatprep.subr.mxu0 0.0
    %4066 = vmatpush1.msra.mxu0 %v4041
    %4067 = vmatprep.subr.mxu0 0.0
    %4068 = vmatpush1.msra.mxu0 %v4042
    %4069 = vmatprep.subr.mxu0 0.0
    %4070 = vmatpush1.msra.mxu0 %v4043
    %4071 = vmatprep.subr.mxu0 0.0
    %4072 = vmatpush1.msra.mxu0 %v4044
    %4073 = vmatprep.subr.mxu0 0.0
    %4074 = vmatpush1.msra.mxu0 %v4045
    %4075 = vmatprep.subr.mxu0 0.0
    %4076 = vmatpush1.msra.mxu0 %v4046
    %4077 = vmatprep.subr.mxu0 0.0
    %4078 = vmatpush1.msra.mxu0 %v4047
    %4079 = vmatprep.subr.mxu0 0.0
    %4080 = vmatpush1.msra.mxu0 %v4048
    %4081 = vmatprep.subr.mxu0 0.0
    %4082 = vmatpush1.msra.mxu0 %v4049
    %4083 = vmatprep.subr.mxu0 0.0
    %4084 = vmatpush1.msra.mxu0 %v4050
    %4085 = vmatprep.subr.mxu0 0.0
    %4086 = vmatpush1.msra.mxu0 %v4051
    %4087 = vmatprep.subr.mxu0 0.0
    %4088 = vmatpush1.msra.mxu0 %v4052
    %4089 = vmatprep.subr.mxu0 0.0
    %4090 = vmatpush1.msra.mxu0 %v4053
    %4091 = vmatprep.subr.mxu0 0.0
    %4092 = vmatpush1.msra.mxu0 %v4054
    %4093 = vmatprep.subr.mxu0 0.0
    %4094 = vmatpush1.msra.mxu0 %v4055
    %4095 = vmatprep.subr.mxu0 0.0
    %4096 = vmatpush1.msra.mxu0 0.0
    %4097 = vmatprep.subr.mxu0 0.0
    %4098 = vmatpush1.msra.mxu0 0.0
    %4099 = vmatprep.subr.mxu0 0.0
    %4100 = vmatpush1.msra.mxu0 0.0
    %4101 = vmatprep.subr.mxu0 0.0
    %4102 = vmatpush1.msra.mxu0 0.0
    %4103 = vmatprep.subr.mxu0 0.0
    %4104 = vmatpush1.msra.mxu0 0.0
    %4105 = vmatprep.subr.mxu0 0.0
    %4106 = vmatpush1.msra.mxu0 0.0
    %4107 = vmatprep.subr.mxu0 0.0
    %4108 = vmatpush1.msra.mxu0 0.0
    %4109 = vmatprep.subr.mxu0 0.0
    %4110 = vmatpush1.msra.mxu0 0.0
    %4111 = vmatprep.subr.mxu0 0.0
    %4112 = vmatpush1.msra.mxu0 0.0
    %4113 = vmatprep.subr.mxu0 0.0
    %4114 = vmatpush1.msra.mxu0 0.0
    %4115 = vmatprep.subr.mxu0 0.0
    %4116 = vmatpush1.msra.mxu0 0.0
    %4117 = vmatprep.subr.mxu0 0.0
    %4118 = vmatpush1.msra.mxu0 0.0
    %4119 = vmatprep.subr.mxu0 0.0
    %4120 = vmatpush1.msra.mxu0 0.0
    %4121 = vmatprep.subr.mxu0 0.0
    %4122 = vmatpush1.msra.mxu0 0.0
    %4123 = vmatprep.subr.mxu0 0.0
    %4124 = vmatpush1.msra.mxu0 0.0
    %4125 = vmatprep.subr.mxu0 0.0
    %4126 = vmatpush1.msra.mxu0 0.0
    %4127 = vmatprep.mubr.f32.mxu0 0.0
    %4128 = vmatmul.mubr.f32.gmra.mrb[0].mxu0 %v4038
    %v4129 = vpop.f32.mrb[0].mxu0
    %v4130 = vadd.f32 %v4061, %v4129
    %v4131 = vpop.f32.mrb[0].mxu0
    %4132 = vmatprep.mubr.f32.mxu0 0.0
    %4133 = vmatmul.mubr.f32.gmra.mrb[0].mxu0 %v4039
    %v4134 = vpop.f32.mrb[0].mxu0
    %v4135 = vadd.f32 %v4061, %v4134
    %v4136 = vpop.f32.mrb[0].mxu0
    %4137 = vdwg.mxu0
    %4138 = vst [vmem:[#allocation17] sm:$0xff] %v4130
    %4139 = vst [vmem:[#allocation17 + $0x8] sm:$0xff] %v4135
    // Predicated region
    $region110: #{tpu_custom_call.1} parent=1 // pred_check
      _
    $region111: #{tpu_custom_call.1} parent=1 // pred_check_branch
      %4141 = sbr.rel (0) target = $region113
    $region112: #{tpu_custom_call.1} parent=1 // pred_region
      %s4143 = ssub.s32 256, 256
      %4144 = vsyncadd [#allocation4], %s4143
      %s4145 = sshll.u32 [#allocation17], 4
      %s4146 = int_to_ptr.vmem [resolvable:$true] %s4145
      %4151 = dma.vmem_to_hbm [thread:$0]  %s4146, 256, %s18, [#allocation4], 128, 128, 8
    $region113: #{tpu_custom_call.1} parent=1 // pred_fallthru
      _
    // Predicated region
    $region114: #{tpu_custom_call.1} parent=1 // pred_check
      _
    $region115: #{tpu_custom_call.1} parent=1 // pred_check_branch
      %4153 = sbr.rel (0) target = $region117
    $region116: #{tpu_custom_call.1} parent=1 // pred_region
      %4154 = dma.done [#allocation4], 256
    $region117: #{tpu_custom_call.1} parent=1 // pred_fallthru
      _
    %4155 = vsyncpa [#allocation3], 1
    %4156 = vsyncpa [#allocation6], 1
    %4157 = vsyncpa [#allocation9], 1
    %4158 = vsyncpa [#allocation12], 1
    %4159 = vsyncpa [#allocation15], 1
    %4160 = vsyncpa [#allocation4], 1

</llo_original>
